<compile_context>
chip_gen: v7x
topology: tpu7x:2x2x1
jax: 0.10.0
libtpu: 0.0.40
codegen_flags: <defaults>
</compile_context>

<pallas_src>
import functools
import math

import jax
import jax.numpy as jnp
from jax.experimental import pallas as pl
from jax.experimental.pallas import tpu as pltpu


def _vmem_limit_bytes():
    """Generation-aware VMEM budget: ~3/4 of physical (96 MiB v5e/v6e, 48 MiB v7x)."""
    try:
        cap = int(pltpu.get_tpu_info().vmem_capacity_bytes)
    except Exception:
        cap = 64 * 1024 * 1024
    return max(32 * 1024 * 1024, min((cap * 3) // 4, 112 * 1024 * 1024))


_VMEM_LIMIT_BYTES = _vmem_limit_bytes()


def _round_up(x, m):
    return ((x + m - 1) // m) * m


def _tile(dim, preferred, quantum):
    """Tile size: min(preferred, dim rounded up to quantum); preferred % quantum == 0."""
    return min(preferred, _round_up(dim, quantum))


def _pad2d(a, rows, cols):
    r, c = a.shape
    if r == rows and c == cols:
        return a
    return jnp.pad(a, ((0, rows - r), (0, cols - c)))


def _pick_bt(batch, cap=8):
    """Largest divisor of `batch` <= cap (sequences per transformer grid step)."""
    cap = max(1, min(batch, cap))
    for bt in range(cap, 0, -1):
        if batch % bt == 0:
            return bt
    return 1


def _vmem_spec():
    return pl.BlockSpec(memory_space=pltpu.MemorySpace.VMEM)


# ----------------------------------------------------------------------------
# GCN kernel 1:  y = x @ W + (W_b + te_b) + ts[:, None] * te_w      (bf16 out)
# ----------------------------------------------------------------------------
def _linear_temporal_kernel(x_ref, w_ref, bias_ref, ts_ref, tew_ref, o_ref):
    y = jnp.dot(x_ref[...], w_ref[...], preferred_element_type=jnp.float32)
    y = y + bias_ref[...] + ts_ref[...] * tew_ref[...]     # rank-1 temporal term
    o_ref[...] = y.astype(o_ref.dtype)


def pallas_linear_temporal(x, w, w_b, te_w, te_b, ts, tm=1024):
    N, H = x.shape
    tm = _tile(N, tm, 8)
    m_pad = _round_up(N, tm)
    x_p = _pad2d(x, m_pad, H).astype(jnp.bfloat16)
    ts_p = _pad2d(ts.reshape(N, 1).astype(jnp.float32), m_pad, 1)
    bias = (w_b.reshape(-1) + te_b.reshape(-1)).reshape(1, H).astype(jnp.float32)
    tew = te_w.reshape(1, H).astype(jnp.float32)

    out = pl.pallas_call(
        _linear_temporal_kernel,
        out_shape=jax.ShapeDtypeStruct((m_pad, H), jnp.bfloat16),
        grid=(m_pad // tm,),
        in_specs=[pl.BlockSpec((tm, H), lambda i: (i, 0)),
                  pl.BlockSpec((H, H), lambda i: (0, 0)),
                  pl.BlockSpec((1, H), lambda i: (0, 0)),
                  pl.BlockSpec((tm, 1), lambda i: (i, 0)),
                  pl.BlockSpec((1, H), lambda i: (0, 0))],
        out_specs=pl.BlockSpec((tm, H), lambda i: (i, 0)),
        compiler_params=pltpu.CompilerParams(
            dimension_semantics=("parallel",),
            vmem_limit_bytes=_VMEM_LIMIT_BYTES),
    )(x_p, w.astype(jnp.bfloat16), bias, ts_p, tew)
    return out[:N]


# ----------------------------------------------------------------------------
# GCN kernel 2:  out = relu((adj @ y) @ m1 + b1) @ m2 + b2   (MLP fused in finalize)
# ----------------------------------------------------------------------------
def _adj_mlp_kernel(adj_ref, y_ref, m1w_ref, m1b_ref, m2w_ref, m2b_ref,
                    o_ref, acc_ref):
    k = pl.program_id(1)

    @pl.when(k == 0)
    def _():
        acc_ref[...] = jnp.zeros_like(acc_ref)

    acc_ref[...] += jnp.dot(adj_ref[...], y_ref[...],
                            preferred_element_type=jnp.float32)

    @pl.when(k == pl.num_programs(1) - 1)
    def _():
        agg = acc_ref[...]
        h1 = jnp.maximum(
            jnp.dot(agg.astype(jnp.bfloat16), m1w_ref[...],
                    preferred_element_type=jnp.float32) + m1b_ref[...], 0.0)
        out = jnp.dot(h1.astype(jnp.bfloat16), m2w_ref[...],
                      preferred_element_type=jnp.float32) + m2b_ref[...]
        o_ref[...] = out.astype(o_ref.dtype)


def pallas_adj_mlp(adj, y, m1_w, m1_b, m2_w, m2_b, tm=1024, tk=1024):
    M, K = adj.shape
    K2, H = y.shape
    assert K == K2
    tm = _tile(M, tm, 8)
    tk = _tile(K, tk, 128)
    m_pad = _round_up(M, tm)
    k_pad = _round_up(K, tk)
    adj_p = _pad2d(adj, m_pad, k_pad).astype(jnp.bfloat16)   # zero cols kill padded-row garbage
    y_p = _pad2d(y.astype(jnp.bfloat16), k_pad, H)
    grid = (m_pad // tm, k_pad // tk)                        # reduction axis last

    out = pl.pallas_call(
        _adj_mlp_kernel,
        out_shape=jax.ShapeDtypeStruct((m_pad, H), jnp.float32),
        grid=grid,
        in_specs=[pl.BlockSpec((tm, tk), lambda i, k: (i, k)),
                  pl.BlockSpec((tk, H), lambda i, k: (k, 0)),
                  pl.BlockSpec((H, H), lambda i, k: (0, 0)),
                  pl.BlockSpec((1, H), lambda i, k: (0, 0)),
                  pl.BlockSpec((H, H), lambda i, k: (0, 0)),
                  pl.BlockSpec((1, H), lambda i, k: (0, 0))],
        out_specs=pl.BlockSpec((tm, H), lambda i, k: (i, 0)),
        scratch_shapes=[pltpu.VMEM((tm, H), jnp.float32)],
        compiler_params=pltpu.CompilerParams(
            dimension_semantics=("parallel", "arbitrary"),
            vmem_limit_bytes=_VMEM_LIMIT_BYTES),
    )(adj_p, y_p,
      m1_w.astype(jnp.bfloat16), m1_b.reshape(1, H).astype(jnp.float32),
      m2_w.astype(jnp.bfloat16), m2_b.reshape(1, H).astype(jnp.float32))
    return out[:M]


# ----------------------------------------------------------------------------
# Fused transformer stack (all blocks + final LN + logits + L2-norm), grid=(B/Bt,)
# ----------------------------------------------------------------------------
def _transformer_stack_kernel(x_ref, pos_ref, neg_ref,
                              ln1g_ref, ln1b_ref, wq_ref, bq_ref,
                              wkv_ref, bkv_ref, wo_ref, bo_ref,
                              ln2g_ref, ln2b_ref,
                              w1_ref, b1_ref, w2_ref, b2_ref,
                              lastg_ref, lastb_ref,
                              pos_out_ref, neg_out_ref, zi_ref, zj_ref,
                              *, num_blocks, num_heads, eps):
    bt, L, H = x_ref.shape
    hd = H // num_heads
    M = bt * L
    scale = 1.0 / math.sqrt(hd)
    bf16 = jnp.bfloat16

    def layernorm(v, g, b):
        mu = jnp.mean(v, axis=-1, keepdims=True)
        vc = v - mu
        var = jnp.mean(vc * vc, axis=-1, keepdims=True)
        return vc * jax.lax.rsqrt(var + eps) * g + b

    def l2norm(v):
        nrm = jnp.sqrt(jnp.sum(v * v, axis=-1, keepdims=True))
        return v / jnp.maximum(nrm, 1e-12)

    last_g = lastg_ref[...]
    last_b = lastb_ref[...]

    x = x_ref[...].reshape(M, H)        # (Bt*L, H) f32; stays in VMEM throughout

    # seqs_aug aliases the pre-transformer input (after in-place scale + pos-emb).
    zj_ref[...] = l2norm(layernorm(x, last_g, last_b)).reshape(bt, L, H)

    # Causal mask as an additive bias from iota compares (no (L,L) HBM DMA).
    row = jax.lax.broadcasted_iota(jnp.int32, (L, L), 0)
    col = jax.lax.broadcasted_iota(jnp.int32, (L, L), 1)
    causal_bias = jnp.where(col > row, jnp.float32(-1e30), jnp.float32(0.0))

    def block_body(blk, x):
        # Q uses LN1(x); K/V use the raw residual stream (torch semantics), so
        # only the K|V projections can share one fused (H, 2H) dot.
        q_in = layernorm(x, ln1g_ref[blk], ln1b_ref[blk])
        q = jnp.dot(q_in.astype(bf16), wq_ref[blk],
                    preferred_element_type=jnp.float32) + bq_ref[blk]
        kv = jnp.dot(x.astype(bf16), wkv_ref[blk],
                     preferred_element_type=jnp.float32) + bkv_ref[blk]
        q3 = q.reshape(bt, L, H).astype(bf16)
        k3 = kv[:, :H].reshape(bt, L, H).astype(bf16)
        v3 = kv[:, H:].reshape(bt, L, H).astype(bf16)
        wo = wo_ref[blk]                                          # (H, H) bf16

        mha = jnp.zeros((M, H), jnp.float32)
        for h in range(num_heads):                                # static head unroll
            cs = slice(h * hd, (h + 1) * hd)
            s = jnp.einsum("bqd,bkd->bqk", q3[..., cs], k3[..., cs],
                           preferred_element_type=jnp.float32) * scale
            s = s + causal_bias
            m = jnp.max(s, axis=-1, keepdims=True)
            p = jnp.exp(s - m)
            p = p / jnp.sum(p, axis=-1, keepdims=True)            # f32 softmax
            oh = jnp.einsum("bqk,bkd->bqd", p.astype(bf16), v3[..., cs],
                            preferred_element_type=jnp.float32)   # (bt, L, hd)
            # concat(heads) @ Wo == sum_h head_h @ Wo[h*hd:(h+1)*hd, :]  (weight slice)
            mha = mha + jnp.dot(oh.reshape(M, hd).astype(bf16), wo[cs, :],
                                preferred_element_type=jnp.float32)

        x = q_in + mha + bo_ref[blk]                              # Q + out_proj(MHA)
        x = layernorm(x, ln2g_ref[blk], ln2b_ref[blk])            # forward LN
        h1 = jnp.maximum(
            jnp.dot(x.astype(bf16), w1_ref[blk],
                    preferred_element_type=jnp.float32) + b1_ref[blk], 0.0)
        x = x + jnp.dot(h1.astype(bf16), w2_ref[blk],
                        preferred_element_type=jnp.float32) + b2_ref[blk]
        return x

    x = jax.lax.fori_loop(0, num_blocks, block_body, x)

    feats = layernorm(x, last_g, last_b)                          # last_layernorm
    zi_ref[...] = l2norm(feats).reshape(bt, L, H)
    feats3 = feats.reshape(bt, L, H)
    # lane-dense (Bt, 1, L) stores: whole row at once, no last-dim-1 masked vst
    pos_out_ref[...] = jnp.sum(feats3 * pos_ref[...], axis=-1).reshape(bt, 1, L)
    neg_out_ref[...] = jnp.sum(feats3 * neg_ref[...], axis=-1).reshape(bt, 1, L)


def pallas_transformer_stack(x0, pos_embs, neg_embs, blocks, last_g, last_b,
                             num_heads, eps=1e-8):
    B, L, H = x0.shape
    nb = len(blocks)
    assert H % num_heads == 0
    bt = _pick_bt(B)
    f32, bf16 = jnp.float32, jnp.bfloat16

    def stack_mat(name):
        return jnp.stack([blk[name] for blk in blocks], axis=0).astype(bf16)

    def stack_vec(name):
        return jnp.stack([blk[name] for blk in blocks],
                         axis=0).reshape(nb, 1, -1).astype(f32)

    wkv = jnp.stack([jnp.concatenate([blk["wk"], blk["wv"]], axis=1)
                     for blk in blocks], axis=0).astype(bf16)          # (nb, H, 2H)
    bkv = jnp.stack([jnp.concatenate([blk["bk"], blk["bv"]], axis=0)
                     for blk in blocks], axis=0).reshape(nb, 1, 2 * H).astype(f32)

    weights = [
        stack_vec("ln1_g"), stack_vec("ln1_b"),
        stack_mat("wq"), stack_vec("bq"),
        wkv, bkv,
        stack_mat("wo"), stack_vec("bo"),
        stack_vec("ln2_g"), stack_vec("ln2_b"),
        stack_mat("ff1_w"), stack_vec("ff1_b"),
        stack_mat("ff2_w"), stack_vec("ff2_b"),
        last_g.reshape(1, H).astype(f32), last_b.reshape(1, H).astype(f32),
    ]

    seq_spec = pl.BlockSpec((bt, L, H), lambda b: (b, 0, 0))
    logit_spec = pl.BlockSpec((bt, 1, L), lambda b: (b, 0, 0))

    def wspec(arr):
        nd = arr.ndim
        return pl.BlockSpec(arr.shape, lambda b, _n=nd: (0,) * _n)     # VMEM-resident

    in_specs = [seq_spec, seq_spec, seq_spec] + [wspec(w) for w in weights]
    kern = functools.partial(_transformer_stack_kernel,
                             num_blocks=nb, num_heads=num_heads, eps=eps)

    pos_l, neg_l, z_i, z_j = pl.pallas_call(
        kern,
        out_shape=(jax.ShapeDtypeStruct((B, 1, L), f32),
                   jax.ShapeDtypeStruct((B, 1, L), f32),
                   jax.ShapeDtypeStruct((B, L, H), f32),
                   jax.ShapeDtypeStruct((B, L, H), f32)),
        grid=(B // bt,),
        in_specs=in_specs,
        out_specs=(logit_spec, logit_spec, seq_spec, seq_spec),
        compiler_params=pltpu.CompilerParams(
            dimension_semantics=("parallel",),
            vmem_limit_bytes=_VMEM_LIMIT_BYTES),
    )(x0.astype(f32), pos_embs.astype(f32), neg_embs.astype(f32), *weights)
    return pos_l[:, 0, :], neg_l[:, 0, :], z_i, z_j


# ----------------------------------------------------------------------------
# Contrastive loss kernel (inputs already L2-normalized in the stack kernel)
# ----------------------------------------------------------------------------
def _contrastive_kernel(zi_ref, zj_ref, o_ref, *, temperature):
    zi = zi_ref[...]                    # (128, F)
    zj = zj_ref[...]
    pos = jnp.exp(jnp.sum(zi * zj, axis=-1, keepdims=True) / temperature)
    sim = jax.lax.dot_general(zi, zj, (((1,), (1,)), ((), ())),
                              preferred_element_type=jnp.float32) / temperature
    # Matches the PyTorch reference: denominator keeps the diagonal pair.
    neg_sum = jnp.sum(jnp.exp(sim), axis=-1, keepdims=True)
    loss = -jnp.log(pos / neg_sum)
    o_ref[...] = jnp.mean(loss, keepdims=True)


def pallas_contrastive(z_i, z_j, temperature=0.5):
    return pl.pallas_call(
        functools.partial(_contrastive_kernel, temperature=temperature),
        out_shape=jax.ShapeDtypeStruct((1, 1), jnp.float32),
        in_specs=[_vmem_spec(), _vmem_spec()],
        out_specs=_vmem_spec(),
    )(z_i, z_j)


# ----------------------------------------------------------------------------
# Model (parameters + forward; kernels do the hot path)
# ----------------------------------------------------------------------------
def init_params(key, item_num, cfg):
    H = cfg["hidden_units"]
    N = item_num + 1
    maxlen = cfg["maxlen"]

    def nxt():
        nonlocal key
        key, sub = jax.random.split(key)
        return sub

    def rnd(shape, scale=0.05):
        return (scale * jax.random.normal(nxt(), shape)).astype(jnp.float32)

    item_emb = rnd((N, H), 1.0).at[0].set(0.0)           # padding_idx = 0
    pos_emb = rnd((maxlen + 1, H), 1.0).at[0].set(0.0)   # padding_idx = 0

    gcn_layers = []
    for _ in range(cfg["num_gcn_layers"]):
        gcn_layers.append(dict(
            w_w=rnd((H, H)), w_b=rnd((H,)),
            te_w=rnd((1, H)), te_b=rnd((H,)),
            m1_w=rnd((H, H)), m1_b=rnd((H,)),
            m2_w=rnd((H, H)), m2_b=rnd((H,)),
        ))

    blocks = []
    for _ in range(cfg["num_blocks"]):
        blocks.append(dict(
            ln1_g=jnp.ones((H,), jnp.float32), ln1_b=jnp.zeros((H,), jnp.float32),
            wq=rnd((H, H)), bq=rnd((H,)),
            wk=rnd((H, H)), bk=rnd((H,)),
            wv=rnd((H, H)), bv=rnd((H,)),
            wo=rnd((H, H)), bo=rnd((H,)),
            ln2_g=jnp.ones((H,), jnp.float32), ln2_b=jnp.zeros((H,), jnp.float32),
            ff1_w=rnd((H, H)), ff1_b=rnd((H,)),   # Conv1d(k=1) == per-position linear
            ff2_w=rnd((H, H)), ff2_b=rnd((H,)),
        ))

    adj = (jax.random.uniform(nxt(), (N, N)) / N).astype(jnp.float32)
    timestamps = jax.random.uniform(nxt(), (N,)).astype(jnp.float32)

    return dict(item_emb=item_emb, pos_emb=pos_emb, gcn_layers=gcn_layers,
                blocks=blocks,
                last_g=jnp.ones((H,), jnp.float32),
                last_b=jnp.zeros((H,), jnp.float32),
                adj=adj, timestamps=timestamps)


def get_graph_embeddings(params):
    x = params["item_emb"]                       # (item_num+1, H)
    ts = params["timestamps"]
    adj = params["adj"]
    for layer in params["gcn_layers"]:
        y1 = pallas_linear_temporal(x, layer["w_w"], layer["w_b"],
                                    layer["te_w"], layer["te_b"], ts)
        x = pallas_adj_mlp(adj, y1, layer["m1_w"], layer["m1_b"],
                           layer["m2_w"], layer["m2_b"])
    return x


def sasrec_forward(params, user_ids, log_seqs, pos_seqs, neg_seqs, *,
                   cfg, contrastive=True):
    del user_ids                                  # unused, as in the reference
    B, L = log_seqs.shape
    H = cfg["hidden_units"]

    gcn = get_graph_embeddings(params)
    enhanced = params["item_emb"] + gcn
    seqs = jnp.take(enhanced, log_seqs, axis=0) * jnp.float32(math.sqrt(H))
    poss = (jnp.arange(1, L + 1, dtype=jnp.int32)[None, :]
            * (log_seqs != 0).astype(jnp.int32))
    x0 = seqs + jnp.take(params["pos_emb"], poss, axis=0)   # (B, L, H) == seqs_aug

    pos_embs = jnp.take(params["item_emb"], pos_seqs, axis=0)
    neg_embs = jnp.take(params["item_emb"], neg_seqs, axis=0)

    pos_logits, neg_logits, z_i, z_j = pallas_transformer_stack(
        x0, pos_embs, neg_embs, params["blocks"],
        params["last_g"], params["last_b"], num_heads=cfg["num_heads"])

    if contrastive:
        assert (B * L * H) % 128 == 0, "contrastive_loss requires view(128,-1)"
        cl_loss = pallas_contrastive(z_i.reshape(128, -1),
                                     z_j.reshape(128, -1), temperature=0.5)[0, 0]
    else:
        cl_loss = jnp.float32(0.0)
    return pos_logits, neg_logits, cl_loss


# ----------------------------------------------------------------------------
if __name__ == "__main__":
    cfg = dict(hidden_units=32, maxlen=8, num_heads=2, num_blocks=2,
               num_gcn_layers=2, dropout_rate=0.2)
    item_num = 40
    B, L = 2, cfg["maxlen"]

    root = jax.random.PRNGKey(0)
    pkey, ikey = jax.random.split(root)
    params = init_params(pkey, item_num, cfg)

    k0, k1, k2 = jax.random.split(ikey, 3)
    log_seqs = jax.random.randint(k0, (B, L), 0, item_num + 1, dtype=jnp.int32)
    log_seqs = log_seqs.at[:, :2].set(0)          # exercise padding_idx=0 positions
    pos_seqs = jax.random.randint(k1, (B, L), 1, item_num + 1, dtype=jnp.int32)
    neg_seqs = jax.random.randint(k2, (B, L), 1, item_num + 1, dtype=jnp.int32)
    user_ids = jnp.arange(B, dtype=jnp.int32)

    fwd = jax.jit(functools.partial(sasrec_forward, cfg=cfg, contrastive=True))
    pos_logits, neg_logits, cl_loss = fwd(params, user_ids, log_seqs,
                                          pos_seqs, neg_seqs)
    jax.block_until_ready((pos_logits, neg_logits, cl_loss))

    assert pos_logits.shape == (B, L) and neg_logits.shape == (B, L)
    assert cl_loss.shape == ()
    assert bool(jnp.all(jnp.isfinite(pos_logits)))
    assert bool(jnp.isfinite(cl_loss))
    print("KERNEL_OK")
</pallas_src>

<mosaic_0001>
module attributes {stable_mosaic.version = 11 : i64} {
  func.func @_linear_temporal_kernel(%arg0: i32, %arg1: memref<48x32xbf16, #tpu.memory_space<vmem>>, %arg2: memref<32x32xbf16, #tpu.memory_space<vmem>>, %arg3: memref<1x32xf32, #tpu.memory_space<vmem>>, %arg4: memref<48x1xf32, #tpu.memory_space<vmem>>, %arg5: memref<1x32xf32, #tpu.memory_space<vmem>>, %arg6: memref<48x32xbf16, #tpu.memory_space<vmem>>) attributes {dimension_semantics = [#tpu.dimension_semantics<parallel>], iteration_bounds = array<i64: 1>, scalar_prefetch = 0 : i64, scratch_operands = 0 : i64, tpu.core_type = #tpu.core_type<tc>, window_params = [{transform_indices = @transform_0, window_bounds = array<i64: 48, 32>}, {pipeline_mode = #tpu.pipeline_mode<synchronous>, transform_indices = @transform_1, window_bounds = array<i64: 32, 32>}, {pipeline_mode = #tpu.pipeline_mode<synchronous>, transform_indices = @transform_2, window_bounds = array<i64: 1, 32>}, {transform_indices = @transform_3, window_bounds = array<i64: 48, 1>}, {pipeline_mode = #tpu.pipeline_mode<synchronous>, transform_indices = @transform_4, window_bounds = array<i64: 1, 32>}, {transform_indices = @transform_5, window_bounds = array<i64: 48, 32>}]} {
    %c0 = arith.constant 0 : index
    %c0_0 = arith.constant 0 : index
    %0 = vector.load %arg1[%c0, %c0_0] : memref<48x32xbf16, #tpu.memory_space<vmem>>, vector<48x32xbf16>
    %c0_1 = arith.constant 0 : index
    %c0_2 = arith.constant 0 : index
    %1 = vector.load %arg2[%c0_1, %c0_2] : memref<32x32xbf16, #tpu.memory_space<vmem>>, vector<32x32xbf16>
    %cst = arith.constant dense<0.000000e+00> : vector<48x32xf32>
    %2 = tpu.matmul %0, %1, %cst {dimension_numbers = #tpu.dot_dimension_numbers<[1], [0], [0], [1], [0, 0, 1, 1], [], []>} : vector<48x32xbf16>, vector<32x32xbf16>, vector<48x32xf32> -> vector<48x32xf32>
    %c0_3 = arith.constant 0 : index
    %c0_4 = arith.constant 0 : index
    %3 = vector.load %arg3[%c0_3, %c0_4] : memref<1x32xf32, #tpu.memory_space<vmem>>, vector<1x32xf32>
    %4 = vector.broadcast %3 : vector<1x32xf32> to vector<48x32xf32>
    %5 = arith.addf %2, %4 : vector<48x32xf32>
    %c0_5 = arith.constant 0 : index
    %c0_6 = arith.constant 0 : index
    %6 = vector.load %arg4[%c0_5, %c0_6] : memref<48x1xf32, #tpu.memory_space<vmem>>, vector<48x1xf32>
    %c0_7 = arith.constant 0 : index
    %c0_8 = arith.constant 0 : index
    %7 = vector.load %arg5[%c0_7, %c0_8] : memref<1x32xf32, #tpu.memory_space<vmem>>, vector<1x32xf32>
    %8 = vector.broadcast %6 : vector<48x1xf32> to vector<48x32xf32>
    %9 = vector.broadcast %7 : vector<1x32xf32> to vector<48x32xf32>
    %10 = arith.mulf %8, %9 : vector<48x32xf32>
    %11 = arith.addf %5, %10 : vector<48x32xf32>
    %12 = arith.truncf %11 : vector<48x32xf32> to vector<48x32xbf16>
    %c0_9 = arith.constant 0 : index
    %c0_10 = arith.constant 0 : index
    %13 = vector.load %arg6[%c0_9, %c0_10] : memref<48x32xbf16, #tpu.memory_space<vmem>>, vector<48x32xbf16>
    tpu.vector_store %arg6[%c0_9, %c0_10], %12 {strides = array<i32>} : memref<48x32xbf16, #tpu.memory_space<vmem>>, vector<48x32xbf16>,
    return
  }
  func.func @transform_0(%arg0: i32) -> (i32, i32) {
    %c0_i32 = arith.constant 0 : i32
    %c0_i32_0 = arith.constant 0 : i32
    return %arg0, %c0_i32 : i32, i32
  }
  func.func @transform_1(%arg0: i32) -> (i32, i32) {
    %c0_i32 = arith.constant 0 : i32
    %c0_i32_0 = arith.constant 0 : i32
    %c0_i32_1 = arith.constant 0 : i32
    return %c0_i32, %c0_i32_0 : i32, i32
  }
  func.func @transform_2(%arg0: i32) -> (i32, i32) {
    %c0_i32 = arith.constant 0 : i32
    %c0_i32_0 = arith.constant 0 : i32
    %c0_i32_1 = arith.constant 0 : i32
    return %c0_i32, %c0_i32_0 : i32, i32
  }
  func.func @transform_3(%arg0: i32) -> (i32, i32) {
    %c0_i32 = arith.constant 0 : i32
    %c0_i32_0 = arith.constant 0 : i32
    return %arg0, %c0_i32 : i32, i32
  }
  func.func @transform_4(%arg0: i32) -> (i32, i32) {
    %c0_i32 = arith.constant 0 : i32
    %c0_i32_0 = arith.constant 0 : i32
    %c0_i32_1 = arith.constant 0 : i32
    return %c0_i32, %c0_i32_0 : i32, i32
  }
  func.func @transform_5(%arg0: i32) -> (i32, i32) {
    %c0_i32 = arith.constant 0 : i32
    %c0_i32_0 = arith.constant 0 : i32
    return %arg0, %c0_i32 : i32, i32
  }
}

module attributes {stable_mosaic.version = 11 : i64} {
  func.func @_adj_mlp_kernel(%arg0: i32, %arg1: i32, %arg2: memref<48x128xbf16, #tpu.memory_space<vmem>>, %arg3: memref<128x32xbf16, #tpu.memory_space<vmem>>, %arg4: memref<32x32xbf16, #tpu.memory_space<vmem>>, %arg5: memref<1x32xf32, #tpu.memory_space<vmem>>, %arg6: memref<32x32xbf16, #tpu.memory_space<vmem>>, %arg7: memref<1x32xf32, #tpu.memory_space<vmem>>, %arg8: memref<48x32xf32, #tpu.memory_space<vmem>>, %arg9: memref<48x32xf32, #tpu.memory_space<vmem>>) attributes {dimension_semantics = [#tpu.dimension_semantics<parallel>, #tpu.dimension_semantics<arbitrary>], iteration_bounds = array<i64: 1, 1>, scalar_prefetch = 0 : i64, scratch_operands = 1 : i64, tpu.core_type = #tpu.core_type<tc>, window_params = [{transform_indices = @transform_0, window_bounds = array<i64: 48, 128>}, {transform_indices = @transform_1, window_bounds = array<i64: 128, 32>}, {pipeline_mode = #tpu.pipeline_mode<synchronous>, transform_indices = @transform_2, window_bounds = array<i64: 32, 32>}, {pipeline_mode = #tpu.pipeline_mode<synchronous>, transform_indices = @transform_3, window_bounds = array<i64: 1, 32>}, {pipeline_mode = #tpu.pipeline_mode<synchronous>, transform_indices = @transform_4, window_bounds = array<i64: 32, 32>}, {pipeline_mode = #tpu.pipeline_mode<synchronous>, transform_indices = @transform_5, window_bounds = array<i64: 1, 32>}, {transform_indices = @transform_6, window_bounds = array<i64: 48, 32>}]} {
    %c0_i32 = arith.constant 0 : i32
    %0 = arith.cmpi eq, %arg1, %c0_i32 : i32
    %1 = arith.extui %0 : i1 to i32
    %c0_i32_0 = arith.constant 0 : i32
    %2 = arith.cmpi ne, %1, %c0_i32_0 : i32
    scf.if %2 {
      %cst_10 = arith.constant 0.000000e+00 : f32
      %12 = vector.broadcast %cst_10 : f32 to vector<48x32xf32>
      %c0_11 = arith.constant 0 : index
      %c0_12 = arith.constant 0 : index
      %13 = vector.load %arg9[%c0_11, %c0_12] : memref<48x32xf32, #tpu.memory_space<vmem>>, vector<48x32xf32>
      tpu.vector_store %arg9[%c0_11, %c0_12], %12 {strides = array<i32>} : memref<48x32xf32, #tpu.memory_space<vmem>>, vector<48x32xf32>,
    } else {
    }
    %c0 = arith.constant 0 : index
    %c0_1 = arith.constant 0 : index
    %3 = vector.load %arg9[%c0, %c0_1] : memref<48x32xf32, #tpu.memory_space<vmem>>, vector<48x32xf32>
    %c0_2 = arith.constant 0 : index
    %c0_3 = arith.constant 0 : index
    %4 = vector.load %arg2[%c0_2, %c0_3] : memref<48x128xbf16, #tpu.memory_space<vmem>>, vector<48x128xbf16>
    %c0_4 = arith.constant 0 : index
    %c0_5 = arith.constant 0 : index
    %5 = vector.load %arg3[%c0_4, %c0_5] : memref<128x32xbf16, #tpu.memory_space<vmem>>, vector<128x32xbf16>
    %cst = arith.constant dense<0.000000e+00> : vector<48x32xf32>
    %6 = tpu.matmul %4, %5, %cst {dimension_numbers = #tpu.dot_dimension_numbers<[1], [0], [0], [1], [0, 0, 1, 1], [], []>} : vector<48x128xbf16>, vector<128x32xbf16>, vector<48x32xf32> -> vector<48x32xf32>
    %7 = arith.addf %3, %6 : vector<48x32xf32>
    %c0_6 = arith.constant 0 : index
    %c0_7 = arith.constant 0 : index
    %8 = vector.load %arg9[%c0_6, %c0_7] : memref<48x32xf32, #tpu.memory_space<vmem>>, vector<48x32xf32>
    tpu.vector_store %arg9[%c0_6, %c0_7], %7 {strides = array<i32>} : memref<48x32xf32, #tpu.memory_space<vmem>>, vector<48x32xf32>,
    %c0_i32_8 = arith.constant 0 : i32
    %9 = arith.cmpi eq, %arg1, %c0_i32_8 : i32
    %10 = arith.extui %9 : i1 to i32
    %c0_i32_9 = arith.constant 0 : i32
    %11 = arith.cmpi ne, %10, %c0_i32_9 : i32
    scf.if %11 {
      %c0_10 = arith.constant 0 : index
      %c0_11 = arith.constant 0 : index
      %12 = vector.load %arg9[%c0_10, %c0_11] : memref<48x32xf32, #tpu.memory_space<vmem>>, vector<48x32xf32>
      %13 = arith.truncf %12 : vector<48x32xf32> to vector<48x32xbf16>
      %c0_12 = arith.constant 0 : index
      %c0_13 = arith.constant 0 : index
      %14 = vector.load %arg4[%c0_12, %c0_13] : memref<32x32xbf16, #tpu.memory_space<vmem>>, vector<32x32xbf16>
      %cst_14 = arith.constant dense<0.000000e+00> : vector<48x32xf32>
      %15 = tpu.matmul %13, %14, %cst_14 {dimension_numbers = #tpu.dot_dimension_numbers<[1], [0], [0], [1], [0, 0, 1, 1], [], []>} : vector<48x32xbf16>, vector<32x32xbf16>, vector<48x32xf32> -> vector<48x32xf32>
      %c0_15 = arith.constant 0 : index
      %c0_16 = arith.constant 0 : index
      %16 = vector.load %arg5[%c0_15, %c0_16] : memref<1x32xf32, #tpu.memory_space<vmem>>, vector<1x32xf32>
      %17 = vector.broadcast %16 : vector<1x32xf32> to vector<48x32xf32>
      %18 = arith.addf %15, %17 : vector<48x32xf32>
      %cst_17 = arith.constant 0.000000e+00 : f32
      %19 = vector.broadcast %cst_17 : f32 to vector<48x32xf32>
      %20 = arith.maximumf %18, %19 : vector<48x32xf32>
      %21 = arith.truncf %20 : vector<48x32xf32> to vector<48x32xbf16>
      %c0_18 = arith.constant 0 : index
      %c0_19 = arith.constant 0 : index
      %22 = vector.load %arg6[%c0_18, %c0_19] : memref<32x32xbf16, #tpu.memory_space<vmem>>, vector<32x32xbf16>
      %cst_20 = arith.constant dense<0.000000e+00> : vector<48x32xf32>
      %23 = tpu.matmul %21, %22, %cst_20 {dimension_numbers = #tpu.dot_dimension_numbers<[1], [0], [0], [1], [0, 0, 1, 1], [], []>} : vector<48x32xbf16>, vector<32x32xbf16>, vector<48x32xf32> -> vector<48x32xf32>
      %c0_21 = arith.constant 0 : index
      %c0_22 = arith.constant 0 : index
      %24 = vector.load %arg7[%c0_21, %c0_22] : memref<1x32xf32, #tpu.memory_space<vmem>>, vector<1x32xf32>
      %25 = vector.broadcast %24 : vector<1x32xf32> to vector<48x32xf32>
      %26 = arith.addf %23, %25 : vector<48x32xf32>
      %c0_23 = arith.constant 0 : index
      %c0_24 = arith.constant 0 : index
      %27 = vector.load %arg8[%c0_23, %c0_24] : memref<48x32xf32, #tpu.memory_space<vmem>>, vector<48x32xf32>
      tpu.vector_store %arg8[%c0_23, %c0_24], %26 {strides = array<i32>} : memref<48x32xf32, #tpu.memory_space<vmem>>, vector<48x32xf32>,
    } else {
    }
    return
  }
  func.func @transform_0(%arg0: i32, %arg1: i32) -> (i32, i32) {
    %c0_i32 = arith.constant 0 : i32
    return %arg0, %arg1 : i32, i32
  }
  func.func @transform_1(%arg0: i32, %arg1: i32) -> (i32, i32) {
    %c0_i32 = arith.constant 0 : i32
    %c0_i32_0 = arith.constant 0 : i32
    return %arg1, %c0_i32 : i32, i32
  }
  func.func @transform_2(%arg0: i32, %arg1: i32) -> (i32, i32) {
    %c0_i32 = arith.constant 0 : i32
    %c0_i32_0 = arith.constant 0 : i32
    %c0_i32_1 = arith.constant 0 : i32
    return %c0_i32, %c0_i32_0 : i32, i32
  }
  func.func @transform_3(%arg0: i32, %arg1: i32) -> (i32, i32) {
    %c0_i32 = arith.constant 0 : i32
    %c0_i32_0 = arith.constant 0 : i32
    %c0_i32_1 = arith.constant 0 : i32
    return %c0_i32, %c0_i32_0 : i32, i32
  }
  func.func @transform_4(%arg0: i32, %arg1: i32) -> (i32, i32) {
    %c0_i32 = arith.constant 0 : i32
    %c0_i32_0 = arith.constant 0 : i32
    %c0_i32_1 = arith.constant 0 : i32
    return %c0_i32, %c0_i32_0 : i32, i32
  }
  func.func @transform_5(%arg0: i32, %arg1: i32) -> (i32, i32) {
    %c0_i32 = arith.constant 0 : i32
    %c0_i32_0 = arith.constant 0 : i32
    %c0_i32_1 = arith.constant 0 : i32
    return %c0_i32, %c0_i32_0 : i32, i32
  }
  func.func @transform_6(%arg0: i32, %arg1: i32) -> (i32, i32) {
    %c0_i32 = arith.constant 0 : i32
    %c0_i32_0 = arith.constant 0 : i32
    return %arg0, %c0_i32 : i32, i32
  }
}

module attributes {stable_mosaic.version = 11 : i64} {
  func.func @_contrastive_kernel(%arg0: memref<128x4xf32, #tpu.memory_space<vmem>>, %arg1: memref<128x4xf32, #tpu.memory_space<vmem>>, %arg2: memref<1x1xf32, #tpu.memory_space<vmem>>) attributes {dimension_semantics = [], scalar_prefetch = 0 : i64, scratch_operands = 0 : i64, tpu.core_type = #tpu.core_type<tc>} {
    %c0 = arith.constant 0 : index
    %c0_0 = arith.constant 0 : index
    %0 = vector.load %arg0[%c0, %c0_0] : memref<128x4xf32, #tpu.memory_space<vmem>>, vector<128x4xf32>
    %c0_1 = arith.constant 0 : index
    %c0_2 = arith.constant 0 : index
    %1 = vector.load %arg1[%c0_1, %c0_2] : memref<128x4xf32, #tpu.memory_space<vmem>>, vector<128x4xf32>
    %2 = arith.mulf %0, %1 : vector<128x4xf32>
    %cst = arith.constant dense<0.000000e+00> : vector<128xf32>
    %3 = vector.multi_reduction <add>, %2, %cst [1] : vector<128x4xf32> to vector<128xf32>
    %4 = vector.shape_cast %3 : vector<128xf32> to vector<128x1xf32>
    %cst_3 = arith.constant 5.000000e-01 : f32
    %5 = vector.broadcast %cst_3 : f32 to vector<128x1xf32>
    %6 = arith.divf %4, %5 : vector<128x1xf32>
    %7 = math.exp %6 : vector<128x1xf32>
    %cst_4 = arith.constant dense<0.000000e+00> : vector<128x128xf32>
    %8 = tpu.matmul %0, %1, %cst_4 {dimension_numbers = #tpu.dot_dimension_numbers<[1], [1], [0], [0], [0, 0, 1, 0], [], []>} : vector<128x4xf32>, vector<128x4xf32>, vector<128x128xf32> -> vector<128x128xf32>
    %cst_5 = arith.constant 5.000000e-01 : f32
    %9 = vector.broadcast %cst_5 : f32 to vector<128x128xf32>
    %10 = arith.divf %8, %9 : vector<128x128xf32>
    %11 = math.exp %10 : vector<128x128xf32>
    %cst_6 = arith.constant dense<0.000000e+00> : vector<128xf32>
    %12 = vector.multi_reduction <add>, %11, %cst_6 [1] : vector<128x128xf32> to vector<128xf32>
    %13 = vector.shape_cast %12 : vector<128xf32> to vector<128x1xf32>
    %14 = arith.divf %7, %13 : vector<128x1xf32>
    %15 = math.log %14 : vector<128x1xf32>
    %cst_7 = arith.constant 0.000000e+00 : f32
    %16 = vector.broadcast %cst_7 : f32 to vector<128x1xf32>
    %17 = arith.subf %16, %15 : vector<128x1xf32>
    %18 = vector.shape_cast %17 : vector<128x1xf32> to vector<1x128x1xf32>
    %cst_8 = arith.constant dense<0.000000e+00> : vector<1xf32>
    %19 = vector.multi_reduction <add>, %18, %cst_8 [1, 2] : vector<1x128x1xf32> to vector<1xf32>
    %20 = vector.shape_cast %19 : vector<1xf32> to vector<1x1x1xf32>
    %21 = vector.extract %20[0, 0, 0] : f32 from vector<1x1x1xf32>
    %22 = vector.broadcast %21 : f32 to vector<1x1xf32>
    %cst_9 = arith.constant 1.280000e+02 : f32
    %23 = vector.broadcast %cst_9 : f32 to vector<1x1xf32>
    %24 = arith.divf %22, %23 : vector<1x1xf32>
    %c0_10 = arith.constant 0 : index
    %c0_11 = arith.constant 0 : index
    %25 = vector.load %arg2[%c0_10, %c0_11] : memref<1x1xf32, #tpu.memory_space<vmem>>, vector<1x1xf32>
    tpu.vector_store %arg2[%c0_10, %c0_11], %24 {strides = array<i32>} : memref<1x1xf32, #tpu.memory_space<vmem>>, vector<1x1xf32>,
    return
  }
}

module attributes {stable_mosaic.version = 11 : i64} {
  func.func @_transformer_stack_kernel(%arg0: i32, %arg1: memref<2x8x32xf32, #tpu.memory_space<vmem>>, %arg2: memref<2x8x32xf32, #tpu.memory_space<vmem>>, %arg3: memref<2x8x32xf32, #tpu.memory_space<vmem>>, %arg4: memref<2x1x32xf32, #tpu.memory_space<vmem>>, %arg5: memref<2x1x32xf32, #tpu.memory_space<vmem>>, %arg6: memref<2x32x32xbf16, #tpu.memory_space<vmem>>, %arg7: memref<2x1x32xf32, #tpu.memory_space<vmem>>, %arg8: memref<2x32x64xbf16, #tpu.memory_space<vmem>>, %arg9: memref<2x1x64xf32, #tpu.memory_space<vmem>>, %arg10: memref<2x32x32xbf16, #tpu.memory_space<vmem>>, %arg11: memref<2x1x32xf32, #tpu.memory_space<vmem>>, %arg12: memref<2x1x32xf32, #tpu.memory_space<vmem>>, %arg13: memref<2x1x32xf32, #tpu.memory_space<vmem>>, %arg14: memref<2x32x32xbf16, #tpu.memory_space<vmem>>, %arg15: memref<2x1x32xf32, #tpu.memory_space<vmem>>, %arg16: memref<2x32x32xbf16, #tpu.memory_space<vmem>>, %arg17: memref<2x1x32xf32, #tpu.memory_space<vmem>>, %arg18: memref<1x32xf32, #tpu.memory_space<vmem>>, %arg19: memref<1x32xf32, #tpu.memory_space<vmem>>, %arg20: memref<2x1x8xf32, #tpu.memory_space<vmem>>, %arg21: memref<2x1x8xf32, #tpu.memory_space<vmem>>, %arg22: memref<2x8x32xf32, #tpu.memory_space<vmem>>, %arg23: memref<2x8x32xf32, #tpu.memory_space<vmem>>) attributes {dimension_semantics = [#tpu.dimension_semantics<parallel>], iteration_bounds = array<i64: 1>, scalar_prefetch = 0 : i64, scratch_operands = 0 : i64, tpu.core_type = #tpu.core_type<tc>, window_params = [{transform_indices = @transform_0, window_bounds = array<i64: 2, 8, 32>}, {transform_indices = @transform_1, window_bounds = array<i64: 2, 8, 32>}, {transform_indices = @transform_2, window_bounds = array<i64: 2, 8, 32>}, {pipeline_mode = #tpu.pipeline_mode<synchronous>, transform_indices = @transform_3, window_bounds = array<i64: 2, 1, 32>}, {pipeline_mode = #tpu.pipeline_mode<synchronous>, transform_indices = @transform_4, window_bounds = array<i64: 2, 1, 32>}, {pipeline_mode = #tpu.pipeline_mode<synchronous>, transform_indices = @transform_5, window_bounds = array<i64: 2, 32, 32>}, {pipeline_mode = #tpu.pipeline_mode<synchronous>, transform_indices = @transform_6, window_bounds = array<i64: 2, 1, 32>}, {pipeline_mode = #tpu.pipeline_mode<synchronous>, transform_indices = @transform_7, window_bounds = array<i64: 2, 32, 64>}, {pipeline_mode = #tpu.pipeline_mode<synchronous>, transform_indices = @transform_8, window_bounds = array<i64: 2, 1, 64>}, {pipeline_mode = #tpu.pipeline_mode<synchronous>, transform_indices = @transform_9, window_bounds = array<i64: 2, 32, 32>}, {pipeline_mode = #tpu.pipeline_mode<synchronous>, transform_indices = @transform_10, window_bounds = array<i64: 2, 1, 32>}, {pipeline_mode = #tpu.pipeline_mode<synchronous>, transform_indices = @transform_11, window_bounds = array<i64: 2, 1, 32>}, {pipeline_mode = #tpu.pipeline_mode<synchronous>, transform_indices = @transform_12, window_bounds = array<i64: 2, 1, 32>}, {pipeline_mode = #tpu.pipeline_mode<synchronous>, transform_indices = @transform_13, window_bounds = array<i64: 2, 32, 32>}, {pipeline_mode = #tpu.pipeline_mode<synchronous>, transform_indices = @transform_14, window_bounds = array<i64: 2, 1, 32>}, {pipeline_mode = #tpu.pipeline_mode<synchronous>, transform_indices = @transform_15, window_bounds = array<i64: 2, 32, 32>}, {pipeline_mode = #tpu.pipeline_mode<synchronous>, transform_indices = @transform_16, window_bounds = array<i64: 2, 1, 32>}, {pipeline_mode = #tpu.pipeline_mode<synchronous>, transform_indices = @transform_17, window_bounds = array<i64: 1, 32>}, {pipeline_mode = #tpu.pipeline_mode<synchronous>, transform_indices = @transform_18, window_bounds = array<i64: 1, 32>}, {transform_indices = @transform_19, window_bounds = array<i64: 2, 1, 8>}, {transform_indices = @transform_20, window_bounds = array<i64: 2, 1, 8>}, {transform_indices = @transform_21, window_bounds = array<i64: 2, 8, 32>}, {transform_indices = @transform_22, window_bounds = array<i64: 2, 8, 32>}]} {
    %c0 = arith.constant 0 : index
    %c0_0 = arith.constant 0 : index
    %0 = vector.load %arg18[%c0, %c0_0] : memref<1x32xf32, #tpu.memory_space<vmem>>, vector<1x32xf32>
    %c0_1 = arith.constant 0 : index
    %c0_2 = arith.constant 0 : index
    %1 = vector.load %arg19[%c0_1, %c0_2] : memref<1x32xf32, #tpu.memory_space<vmem>>, vector<1x32xf32>
    %c0_3 = arith.constant 0 : index
    %c0_4 = arith.constant 0 : index
    %c0_5 = arith.constant 0 : index
    %2 = vector.load %arg1[%c0_3, %c0_4, %c0_5] : memref<2x8x32xf32, #tpu.memory_space<vmem>>, vector<2x8x32xf32>
    %3 = vector.shape_cast %2 : vector<2x8x32xf32> to vector<16x32xf32>
    %cst = arith.constant dense<0.000000e+00> : vector<16xf32>
    %4 = vector.multi_reduction <add>, %3, %cst [1] : vector<16x32xf32> to vector<16xf32>
    %5 = vector.shape_cast %4 : vector<16xf32> to vector<16x1xf32>
    %cst_6 = arith.constant 3.200000e+01 : f32
    %6 = vector.broadcast %cst_6 : f32 to vector<16x1xf32>
    %7 = arith.divf %5, %6 : vector<16x1xf32>
    %8 = vector.broadcast %7 : vector<16x1xf32> to vector<16x32xf32>
    %9 = arith.subf %3, %8 : vector<16x32xf32>
    %10 = arith.mulf %9, %9 : vector<16x32xf32>
    %cst_7 = arith.constant dense<0.000000e+00> : vector<16xf32>
    %11 = vector.multi_reduction <add>, %10, %cst_7 [1] : vector<16x32xf32> to vector<16xf32>
    %12 = vector.shape_cast %11 : vector<16xf32> to vector<16x1xf32>
    %cst_8 = arith.constant 3.200000e+01 : f32
    %13 = vector.broadcast %cst_8 : f32 to vector<16x1xf32>
    %14 = arith.divf %12, %13 : vector<16x1xf32>
    %cst_9 = arith.constant 9.99999993E-9 : f32
    %15 = vector.broadcast %cst_9 : f32 to vector<16x1xf32>
    %16 = arith.addf %14, %15 : vector<16x1xf32>
    %17 = math.rsqrt %16 : vector<16x1xf32>
    %18 = vector.broadcast %17 : vector<16x1xf32> to vector<16x32xf32>
    %19 = arith.mulf %9, %18 : vector<16x32xf32>
    %20 = vector.broadcast %0 : vector<1x32xf32> to vector<16x32xf32>
    %21 = arith.mulf %19, %20 : vector<16x32xf32>
    %22 = vector.broadcast %1 : vector<1x32xf32> to vector<16x32xf32>
    %23 = arith.addf %21, %22 : vector<16x32xf32>
    %24 = arith.mulf %23, %23 : vector<16x32xf32>
    %cst_10 = arith.constant dense<0.000000e+00> : vector<16xf32>
    %25 = vector.multi_reduction <add>, %24, %cst_10 [1] : vector<16x32xf32> to vector<16xf32>
    %26 = vector.shape_cast %25 : vector<16xf32> to vector<16x1xf32>
    %27 = math.sqrt %26 : vector<16x1xf32>
    %cst_11 = arith.constant 9.99999996E-13 : f32
    %28 = vector.broadcast %cst_11 : f32 to vector<16x1xf32>
    %29 = arith.maximumf %27, %28 : vector<16x1xf32>
    %30 = vector.broadcast %29 : vector<16x1xf32> to vector<16x32xf32>
    %31 = arith.divf %23, %30 : vector<16x32xf32>
    %32 = vector.shape_cast %31 : vector<16x32xf32> to vector<2x8x32xf32>
    %c0_12 = arith.constant 0 : index
    %c0_13 = arith.constant 0 : index
    %c0_14 = arith.constant 0 : index
    %33 = vector.load %arg23[%c0_12, %c0_13, %c0_14] : memref<2x8x32xf32, #tpu.memory_space<vmem>>, vector<2x8x32xf32>
    tpu.vector_store %arg23[%c0_12, %c0_13, %c0_14], %32 {strides = array<i32>} : memref<2x8x32xf32, #tpu.memory_space<vmem>>, vector<2x8x32xf32>,
    %34 = tpu.iota {dimensions = array<i32: 0>} : vector<8x8xi32>
    %35 = tpu.iota {dimensions = array<i32: 1>} : vector<8x8xi32>
    %36 = arith.cmpi sgt, %35, %34 : vector<8x8xi32>
    %cst_15 = arith.constant -1.000000e+30 : f32
    %cst_16 = arith.constant 0.000000e+00 : f32
    %37 = vector.broadcast %cst_15 : f32 to vector<8x8xf32>
    %38 = vector.broadcast %cst_16 : f32 to vector<8x8xf32>
    %39 = arith.select %36, %37, %38 : vector<8x8xi1>, vector<8x8xf32>
    %c0_i32 = arith.constant 0 : i32
    %c2_i32 = arith.constant 2 : i32
    %40 = arith.addi %c0_i32, %c2_i32 : i32
    %c1_i32 = arith.constant 1 : i32
    %41 = scf.for %arg24 = %c0_i32 to %40 step %c1_i32 iter_args(%arg25 = %3) -> (vector<16x32xf32>)  : i32 {
      %83 = arith.index_cast %arg24 : i32 to index
      %c0_42 = arith.constant 0 : index
      %c0_43 = arith.constant 0 : index
      %84 = vector.load %arg4[%83, %c0_42, %c0_43] : memref<2x1x32xf32, #tpu.memory_space<vmem>>, vector<1x1x32xf32>
      %85 = vector.shape_cast %84 : vector<1x1x32xf32> to vector<1x32xf32>
      %86 = arith.index_cast %arg24 : i32 to index
      %c0_44 = arith.constant 0 : index
      %c0_45 = arith.constant 0 : index
      %87 = vector.load %arg5[%86, %c0_44, %c0_45] : memref<2x1x32xf32, #tpu.memory_space<vmem>>, vector<1x1x32xf32>
      %88 = vector.shape_cast %87 : vector<1x1x32xf32> to vector<1x32xf32>
      %cst_46 = arith.constant dense<0.000000e+00> : vector<16xf32>
      %89 = vector.multi_reduction <add>, %arg25, %cst_46 [1] : vector<16x32xf32> to vector<16xf32>
      %90 = vector.shape_cast %89 : vector<16xf32> to vector<16x1xf32>
      %cst_47 = arith.constant 3.200000e+01 : f32
      %91 = vector.broadcast %cst_47 : f32 to vector<16x1xf32>
      %92 = arith.divf %90, %91 : vector<16x1xf32>
      %93 = vector.broadcast %92 : vector<16x1xf32> to vector<16x32xf32>
      %94 = arith.subf %arg25, %93 : vector<16x32xf32>
      %95 = arith.mulf %94, %94 : vector<16x32xf32>
      %cst_48 = arith.constant dense<0.000000e+00> : vector<16xf32>
      %96 = vector.multi_reduction <add>, %95, %cst_48 [1] : vector<16x32xf32> to vector<16xf32>
      %97 = vector.shape_cast %96 : vector<16xf32> to vector<16x1xf32>
      %cst_49 = arith.constant 3.200000e+01 : f32
      %98 = vector.broadcast %cst_49 : f32 to vector<16x1xf32>
      %99 = arith.divf %97, %98 : vector<16x1xf32>
      %cst_50 = arith.constant 9.99999993E-9 : f32
      %100 = vector.broadcast %cst_50 : f32 to vector<16x1xf32>
      %101 = arith.addf %99, %100 : vector<16x1xf32>
      %102 = math.rsqrt %101 : vector<16x1xf32>
      %103 = vector.broadcast %102 : vector<16x1xf32> to vector<16x32xf32>
      %104 = arith.mulf %94, %103 : vector<16x32xf32>
      %105 = vector.broadcast %85 : vector<1x32xf32> to vector<16x32xf32>
      %106 = arith.mulf %104, %105 : vector<16x32xf32>
      %107 = vector.broadcast %88 : vector<1x32xf32> to vector<16x32xf32>
      %108 = arith.addf %106, %107 : vector<16x32xf32>
      %109 = arith.truncf %108 : vector<16x32xf32> to vector<16x32xbf16>
      %110 = arith.index_cast %arg24 : i32 to index
      %c0_51 = arith.constant 0 : index
      %c0_52 = arith.constant 0 : index
      %111 = vector.load %arg6[%110, %c0_51, %c0_52] : memref<2x32x32xbf16, #tpu.memory_space<vmem>>, vector<1x32x32xbf16>
      %112 = vector.shape_cast %111 : vector<1x32x32xbf16> to vector<32x32xbf16>
      %cst_53 = arith.constant dense<0.000000e+00> : vector<16x32xf32>
      %113 = tpu.matmul %109, %112, %cst_53 {dimension_numbers = #tpu.dot_dimension_numbers<[1], [0], [0], [1], [0, 0, 1, 1], [], []>} : vector<16x32xbf16>, vector<32x32xbf16>, vector<16x32xf32> -> vector<16x32xf32>
      %114 = arith.index_cast %arg24 : i32 to index
      %c0_54 = arith.constant 0 : index
      %c0_55 = arith.constant 0 : index
      %115 = vector.load %arg7[%114, %c0_54, %c0_55] : memref<2x1x32xf32, #tpu.memory_space<vmem>>, vector<1x1x32xf32>
      %116 = vector.shape_cast %115 : vector<1x1x32xf32> to vector<1x32xf32>
      %117 = vector.broadcast %116 : vector<1x32xf32> to vector<16x32xf32>
      %118 = arith.addf %113, %117 : vector<16x32xf32>
      %119 = arith.truncf %arg25 : vector<16x32xf32> to vector<16x32xbf16>
      %120 = arith.index_cast %arg24 : i32 to index
      %c0_56 = arith.constant 0 : index
      %c0_57 = arith.constant 0 : index
      %121 = vector.load %arg8[%120, %c0_56, %c0_57] : memref<2x32x64xbf16, #tpu.memory_space<vmem>>, vector<1x32x64xbf16>
      %122 = vector.shape_cast %121 : vector<1x32x64xbf16> to vector<32x64xbf16>
      %cst_58 = arith.constant dense<0.000000e+00> : vector<16x64xf32>
      %123 = tpu.matmul %119, %122, %cst_58 {dimension_numbers = #tpu.dot_dimension_numbers<[1], [0], [0], [1], [0, 0, 1, 1], [], []>} : vector<16x32xbf16>, vector<32x64xbf16>, vector<16x64xf32> -> vector<16x64xf32>
      %124 = arith.index_cast %arg24 : i32 to index
      %c0_59 = arith.constant 0 : index
      %c0_60 = arith.constant 0 : index
      %125 = vector.load %arg9[%124, %c0_59, %c0_60] : memref<2x1x64xf32, #tpu.memory_space<vmem>>, vector<1x1x64xf32>
      %126 = vector.shape_cast %125 : vector<1x1x64xf32> to vector<1x64xf32>
      %127 = vector.broadcast %126 : vector<1x64xf32> to vector<16x64xf32>
      %128 = arith.addf %123, %127 : vector<16x64xf32>
      %129 = vector.shape_cast %118 : vector<16x32xf32> to vector<2x8x32xf32>
      %130 = arith.truncf %129 : vector<2x8x32xf32> to vector<2x8x32xbf16>
      %131 = vector.extract_strided_slice %128 {offsets = [0, 0], sizes = [16, 32], strides = [1, 1]} : vector<16x64xf32> to vector<16x32xf32>
      %132 = vector.shape_cast %131 : vector<16x32xf32> to vector<2x8x32xf32>
      %133 = arith.truncf %132 : vector<2x8x32xf32> to vector<2x8x32xbf16>
      %134 = vector.extract_strided_slice %128 {offsets = [0, 32], sizes = [16, 32], strides = [1, 1]} : vector<16x64xf32> to vector<16x32xf32>
      %135 = vector.shape_cast %134 : vector<16x32xf32> to vector<2x8x32xf32>
      %136 = arith.truncf %135 : vector<2x8x32xf32> to vector<2x8x32xbf16>
      %137 = arith.index_cast %arg24 : i32 to index
      %c0_61 = arith.constant 0 : index
      %c0_62 = arith.constant 0 : index
      %138 = vector.load %arg10[%137, %c0_61, %c0_62] : memref<2x32x32xbf16, #tpu.memory_space<vmem>>, vector<1x32x32xbf16>
      %139 = vector.shape_cast %138 : vector<1x32x32xbf16> to vector<32x32xbf16>
      %cst_63 = arith.constant 0.000000e+00 : f32
      %140 = vector.broadcast %cst_63 : f32 to vector<16x32xf32>
      %141 = vector.extract_strided_slice %130 {offsets = [0, 0, 0], sizes = [2, 8, 16], strides = [1, 1, 1]} : vector<2x8x32xbf16> to vector<2x8x16xbf16>
      %142 = vector.extract_strided_slice %133 {offsets = [0, 0, 0], sizes = [2, 8, 16], strides = [1, 1, 1]} : vector<2x8x32xbf16> to vector<2x8x16xbf16>
      "tpu.trace_start"() <{level = 10 : i32, message = "bqd,bkd->bqk"}> : () -> ()
      %cst_64 = arith.constant dense<0.000000e+00> : vector<2x8x8xf32>
      %143 = tpu.matmul %141, %142, %cst_64 {dimension_numbers = #tpu.dot_dimension_numbers<[2], [2], [1], [1], [0, 0, 0, 1, 1, 1], [0], [0]>} : vector<2x8x16xbf16>, vector<2x8x16xbf16>, vector<2x8x8xf32> -> vector<2x8x8xf32>
      "tpu.trace_stop"() : () -> ()
      %cst_65 = arith.constant 2.500000e-01 : f32
      %144 = vector.broadcast %cst_65 : f32 to vector<2x8x8xf32>
      %145 = arith.mulf %143, %144 : vector<2x8x8xf32>
      %146 = vector.shape_cast %39 : vector<8x8xf32> to vector<1x8x8xf32>
      %147 = vector.broadcast %146 : vector<1x8x8xf32> to vector<2x8x8xf32>
      %148 = arith.addf %145, %147 : vector<2x8x8xf32>
      %cst_66 = arith.constant dense<0xFF800000> : vector<2x8xf32>
      %149 = vector.multi_reduction <maximumf>, %148, %cst_66 [2] : vector<2x8x8xf32> to vector<2x8xf32>
      %150 = vector.shape_cast %149 : vector<2x8xf32> to vector<2x8x1xf32>
      %151 = vector.broadcast %150 : vector<2x8x1xf32> to vector<2x8x8xf32>
      %152 = arith.subf %148, %151 : vector<2x8x8xf32>
      %153 = math.exp %152 : vector<2x8x8xf32>
      %cst_67 = arith.constant dense<0.000000e+00> : vector<2x8xf32>
      %154 = vector.multi_reduction <add>, %153, %cst_67 [2] : vector<2x8x8xf32> to vector<2x8xf32>
      %155 = vector.shape_cast %154 : vector<2x8xf32> to vector<2x8x1xf32>
      %156 = vector.broadcast %155 : vector<2x8x1xf32> to vector<2x8x8xf32>
      %157 = arith.divf %153, %156 : vector<2x8x8xf32>
      %158 = arith.truncf %157 : vector<2x8x8xf32> to vector<2x8x8xbf16>
      %159 = vector.extract_strided_slice %136 {offsets = [0, 0, 0], sizes = [2, 8, 16], strides = [1, 1, 1]} : vector<2x8x32xbf16> to vector<2x8x16xbf16>
      "tpu.trace_start"() <{level = 10 : i32, message = "bqk,bkd->bqd"}> : () -> ()
      %cst_68 = arith.constant dense<0.000000e+00> : vector<2x8x16xf32>
      %160 = tpu.matmul %158, %159, %cst_68 {dimension_numbers = #tpu.dot_dimension_numbers<[2], [1], [1], [2], [0, 0, 0, 1, 1, 2], [0], [0]>} : vector<2x8x8xbf16>, vector<2x8x16xbf16>, vector<2x8x16xf32> -> vector<2x8x16xf32>
      "tpu.trace_stop"() : () -> ()
      %161 = vector.shape_cast %160 : vector<2x8x16xf32> to vector<16x16xf32>
      %162 = arith.truncf %161 : vector<16x16xf32> to vector<16x16xbf16>
      %163 = vector.extract_strided_slice %139 {offsets = [0, 0], sizes = [16, 32], strides = [1, 1]} : vector<32x32xbf16> to vector<16x32xbf16>
      %cst_69 = arith.constant dense<0.000000e+00> : vector<16x32xf32>
      %164 = tpu.matmul %162, %163, %cst_69 {dimension_numbers = #tpu.dot_dimension_numbers<[1], [0], [0], [1], [0, 0, 1, 1], [], []>} : vector<16x16xbf16>, vector<16x32xbf16>, vector<16x32xf32> -> vector<16x32xf32>
      %165 = arith.addf %140, %164 : vector<16x32xf32>
      %166 = vector.extract_strided_slice %130 {offsets = [0, 0, 16], sizes = [2, 8, 16], strides = [1, 1, 1]} : vector<2x8x32xbf16> to vector<2x8x16xbf16>
      %167 = vector.extract_strided_slice %133 {offsets = [0, 0, 16], sizes = [2, 8, 16], strides = [1, 1, 1]} : vector<2x8x32xbf16> to vector<2x8x16xbf16>
      "tpu.trace_start"() <{level = 10 : i32, message = "bqd,bkd->bqk"}> : () -> ()
      %cst_70 = arith.constant dense<0.000000e+00> : vector<2x8x8xf32>
      %168 = tpu.matmul %166, %167, %cst_70 {dimension_numbers = #tpu.dot_dimension_numbers<[2], [2], [1], [1], [0, 0, 0, 1, 1, 1], [0], [0]>} : vector<2x8x16xbf16>, vector<2x8x16xbf16>, vector<2x8x8xf32> -> vector<2x8x8xf32>
      "tpu.trace_stop"() : () -> ()
      %cst_71 = arith.constant 2.500000e-01 : f32
      %169 = vector.broadcast %cst_71 : f32 to vector<2x8x8xf32>
      %170 = arith.mulf %168, %169 : vector<2x8x8xf32>
      %171 = vector.shape_cast %39 : vector<8x8xf32> to vector<1x8x8xf32>
      %172 = vector.broadcast %171 : vector<1x8x8xf32> to vector<2x8x8xf32>
      %173 = arith.addf %170, %172 : vector<2x8x8xf32>
      %cst_72 = arith.constant dense<0xFF800000> : vector<2x8xf32>
      %174 = vector.multi_reduction <maximumf>, %173, %cst_72 [2] : vector<2x8x8xf32> to vector<2x8xf32>
      %175 = vector.shape_cast %174 : vector<2x8xf32> to vector<2x8x1xf32>
      %176 = vector.broadcast %175 : vector<2x8x1xf32> to vector<2x8x8xf32>
      %177 = arith.subf %173, %176 : vector<2x8x8xf32>
      %178 = math.exp %177 : vector<2x8x8xf32>
      %cst_73 = arith.constant dense<0.000000e+00> : vector<2x8xf32>
      %179 = vector.multi_reduction <add>, %178, %cst_73 [2] : vector<2x8x8xf32> to vector<2x8xf32>
      %180 = vector.shape_cast %179 : vector<2x8xf32> to vector<2x8x1xf32>
      %181 = vector.broadcast %180 : vector<2x8x1xf32> to vector<2x8x8xf32>
      %182 = arith.divf %178, %181 : vector<2x8x8xf32>
      %183 = arith.truncf %182 : vector<2x8x8xf32> to vector<2x8x8xbf16>
      %184 = vector.extract_strided_slice %136 {offsets = [0, 0, 16], sizes = [2, 8, 16], strides = [1, 1, 1]} : vector<2x8x32xbf16> to vector<2x8x16xbf16>
      "tpu.trace_start"() <{level = 10 : i32, message = "bqk,bkd->bqd"}> : () -> ()
      %cst_74 = arith.constant dense<0.000000e+00> : vector<2x8x16xf32>
      %185 = tpu.matmul %183, %184, %cst_74 {dimension_numbers = #tpu.dot_dimension_numbers<[2], [1], [1], [2], [0, 0, 0, 1, 1, 2], [0], [0]>} : vector<2x8x8xbf16>, vector<2x8x16xbf16>, vector<2x8x16xf32> -> vector<2x8x16xf32>
      "tpu.trace_stop"() : () -> ()
      %186 = vector.shape_cast %185 : vector<2x8x16xf32> to vector<16x16xf32>
      %187 = arith.truncf %186 : vector<16x16xf32> to vector<16x16xbf16>
      %188 = vector.extract_strided_slice %139 {offsets = [16, 0], sizes = [16, 32], strides = [1, 1]} : vector<32x32xbf16> to vector<16x32xbf16>
      %cst_75 = arith.constant dense<0.000000e+00> : vector<16x32xf32>
      %189 = tpu.matmul %187, %188, %cst_75 {dimension_numbers = #tpu.dot_dimension_numbers<[1], [0], [0], [1], [0, 0, 1, 1], [], []>} : vector<16x16xbf16>, vector<16x32xbf16>, vector<16x32xf32> -> vector<16x32xf32>
      %190 = arith.addf %165, %189 : vector<16x32xf32>
      %191 = arith.addf %108, %190 : vector<16x32xf32>
      %192 = arith.index_cast %arg24 : i32 to index
      %c0_76 = arith.constant 0 : index
      %c0_77 = arith.constant 0 : index
      %193 = vector.load %arg11[%192, %c0_76, %c0_77] : memref<2x1x32xf32, #tpu.memory_space<vmem>>, vector<1x1x32xf32>
      %194 = vector.shape_cast %193 : vector<1x1x32xf32> to vector<1x32xf32>
      %195 = vector.broadcast %194 : vector<1x32xf32> to vector<16x32xf32>
      %196 = arith.addf %191, %195 : vector<16x32xf32>
      %197 = arith.index_cast %arg24 : i32 to index
      %c0_78 = arith.constant 0 : index
      %c0_79 = arith.constant 0 : index
      %198 = vector.load %arg12[%197, %c0_78, %c0_79] : memref<2x1x32xf32, #tpu.memory_space<vmem>>, vector<1x1x32xf32>
      %199 = vector.shape_cast %198 : vector<1x1x32xf32> to vector<1x32xf32>
      %200 = arith.index_cast %arg24 : i32 to index
      %c0_80 = arith.constant 0 : index
      %c0_81 = arith.constant 0 : index
      %201 = vector.load %arg13[%200, %c0_80, %c0_81] : memref<2x1x32xf32, #tpu.memory_space<vmem>>, vector<1x1x32xf32>
      %202 = vector.shape_cast %201 : vector<1x1x32xf32> to vector<1x32xf32>
      %cst_82 = arith.constant dense<0.000000e+00> : vector<16xf32>
      %203 = vector.multi_reduction <add>, %196, %cst_82 [1] : vector<16x32xf32> to vector<16xf32>
      %204 = vector.shape_cast %203 : vector<16xf32> to vector<16x1xf32>
      %cst_83 = arith.constant 3.200000e+01 : f32
      %205 = vector.broadcast %cst_83 : f32 to vector<16x1xf32>
      %206 = arith.divf %204, %205 : vector<16x1xf32>
      %207 = vector.broadcast %206 : vector<16x1xf32> to vector<16x32xf32>
      %208 = arith.subf %196, %207 : vector<16x32xf32>
      %209 = arith.mulf %208, %208 : vector<16x32xf32>
      %cst_84 = arith.constant dense<0.000000e+00> : vector<16xf32>
      %210 = vector.multi_reduction <add>, %209, %cst_84 [1] : vector<16x32xf32> to vector<16xf32>
      %211 = vector.shape_cast %210 : vector<16xf32> to vector<16x1xf32>
      %cst_85 = arith.constant 3.200000e+01 : f32
      %212 = vector.broadcast %cst_85 : f32 to vector<16x1xf32>
      %213 = arith.divf %211, %212 : vector<16x1xf32>
      %cst_86 = arith.constant 9.99999993E-9 : f32
      %214 = vector.broadcast %cst_86 : f32 to vector<16x1xf32>
      %215 = arith.addf %213, %214 : vector<16x1xf32>
      %216 = math.rsqrt %215 : vector<16x1xf32>
      %217 = vector.broadcast %216 : vector<16x1xf32> to vector<16x32xf32>
      %218 = arith.mulf %208, %217 : vector<16x32xf32>
      %219 = vector.broadcast %199 : vector<1x32xf32> to vector<16x32xf32>
      %220 = arith.mulf %218, %219 : vector<16x32xf32>
      %221 = vector.broadcast %202 : vector<1x32xf32> to vector<16x32xf32>
      %222 = arith.addf %220, %221 : vector<16x32xf32>
      %223 = arith.truncf %222 : vector<16x32xf32> to vector<16x32xbf16>
      %224 = arith.index_cast %arg24 : i32 to index
      %c0_87 = arith.constant 0 : index
      %c0_88 = arith.constant 0 : index
      %225 = vector.load %arg14[%224, %c0_87, %c0_88] : memref<2x32x32xbf16, #tpu.memory_space<vmem>>, vector<1x32x32xbf16>
      %226 = vector.shape_cast %225 : vector<1x32x32xbf16> to vector<32x32xbf16>
      %cst_89 = arith.constant dense<0.000000e+00> : vector<16x32xf32>
      %227 = tpu.matmul %223, %226, %cst_89 {dimension_numbers = #tpu.dot_dimension_numbers<[1], [0], [0], [1], [0, 0, 1, 1], [], []>} : vector<16x32xbf16>, vector<32x32xbf16>, vector<16x32xf32> -> vector<16x32xf32>
      %228 = arith.index_cast %arg24 : i32 to index
      %c0_90 = arith.constant 0 : index
      %c0_91 = arith.constant 0 : index
      %229 = vector.load %arg15[%228, %c0_90, %c0_91] : memref<2x1x32xf32, #tpu.memory_space<vmem>>, vector<1x1x32xf32>
      %230 = vector.shape_cast %229 : vector<1x1x32xf32> to vector<1x32xf32>
      %231 = vector.broadcast %230 : vector<1x32xf32> to vector<16x32xf32>
      %232 = arith.addf %227, %231 : vector<16x32xf32>
      %cst_92 = arith.constant 0.000000e+00 : f32
      %233 = vector.broadcast %cst_92 : f32 to vector<16x32xf32>
      %234 = arith.maximumf %232, %233 : vector<16x32xf32>
      %235 = arith.truncf %234 : vector<16x32xf32> to vector<16x32xbf16>
      %236 = arith.index_cast %arg24 : i32 to index
      %c0_93 = arith.constant 0 : index
      %c0_94 = arith.constant 0 : index
      %237 = vector.load %arg16[%236, %c0_93, %c0_94] : memref<2x32x32xbf16, #tpu.memory_space<vmem>>, vector<1x32x32xbf16>
      %238 = vector.shape_cast %237 : vector<1x32x32xbf16> to vector<32x32xbf16>
      %cst_95 = arith.constant dense<0.000000e+00> : vector<16x32xf32>
      %239 = tpu.matmul %235, %238, %cst_95 {dimension_numbers = #tpu.dot_dimension_numbers<[1], [0], [0], [1], [0, 0, 1, 1], [], []>} : vector<16x32xbf16>, vector<32x32xbf16>, vector<16x32xf32> -> vector<16x32xf32>
      %240 = arith.addf %222, %239 : vector<16x32xf32>
      %241 = arith.index_cast %arg24 : i32 to index
      %c0_96 = arith.constant 0 : index
      %c0_97 = arith.constant 0 : index
      %242 = vector.load %arg17[%241, %c0_96, %c0_97] : memref<2x1x32xf32, #tpu.memory_space<vmem>>, vector<1x1x32xf32>
      %243 = vector.shape_cast %242 : vector<1x1x32xf32> to vector<1x32xf32>
      %244 = vector.broadcast %243 : vector<1x32xf32> to vector<16x32xf32>
      %245 = arith.addf %240, %244 : vector<16x32xf32>
      scf.yield %245 : vector<16x32xf32>
    }
    %c2_i32_17 = arith.constant 2 : i32
    %cst_18 = arith.constant dense<0.000000e+00> : vector<16xf32>
    %42 = vector.multi_reduction <add>, %41, %cst_18 [1] : vector<16x32xf32> to vector<16xf32>
    %43 = vector.shape_cast %42 : vector<16xf32> to vector<16x1xf32>
    %cst_19 = arith.constant 3.200000e+01 : f32
    %44 = vector.broadcast %cst_19 : f32 to vector<16x1xf32>
    %45 = arith.divf %43, %44 : vector<16x1xf32>
    %46 = vector.broadcast %45 : vector<16x1xf32> to vector<16x32xf32>
    %47 = arith.subf %41, %46 : vector<16x32xf32>
    %48 = arith.mulf %47, %47 : vector<16x32xf32>
    %cst_20 = arith.constant dense<0.000000e+00> : vector<16xf32>
    %49 = vector.multi_reduction <add>, %48, %cst_20 [1] : vector<16x32xf32> to vector<16xf32>
    %50 = vector.shape_cast %49 : vector<16xf32> to vector<16x1xf32>
    %cst_21 = arith.constant 3.200000e+01 : f32
    %51 = vector.broadcast %cst_21 : f32 to vector<16x1xf32>
    %52 = arith.divf %50, %51 : vector<16x1xf32>
    %cst_22 = arith.constant 9.99999993E-9 : f32
    %53 = vector.broadcast %cst_22 : f32 to vector<16x1xf32>
    %54 = arith.addf %52, %53 : vector<16x1xf32>
    %55 = math.rsqrt %54 : vector<16x1xf32>
    %56 = vector.broadcast %55 : vector<16x1xf32> to vector<16x32xf32>
    %57 = arith.mulf %47, %56 : vector<16x32xf32>
    %58 = vector.broadcast %0 : vector<1x32xf32> to vector<16x32xf32>
    %59 = arith.mulf %57, %58 : vector<16x32xf32>
    %60 = vector.broadcast %1 : vector<1x32xf32> to vector<16x32xf32>
    %61 = arith.addf %59, %60 : vector<16x32xf32>
    %62 = arith.mulf %61, %61 : vector<16x32xf32>
    %cst_23 = arith.constant dense<0.000000e+00> : vector<16xf32>
    %63 = vector.multi_reduction <add>, %62, %cst_23 [1] : vector<16x32xf32> to vector<16xf32>
    %64 = vector.shape_cast %63 : vector<16xf32> to vector<16x1xf32>
    %65 = math.sqrt %64 : vector<16x1xf32>
    %cst_24 = arith.constant 9.99999996E-13 : f32
    %66 = vector.broadcast %cst_24 : f32 to vector<16x1xf32>
    %67 = arith.maximumf %65, %66 : vector<16x1xf32>
    %68 = vector.broadcast %67 : vector<16x1xf32> to vector<16x32xf32>
    %69 = arith.divf %61, %68 : vector<16x32xf32>
    %70 = vector.shape_cast %69 : vector<16x32xf32> to vector<2x8x32xf32>
    %c0_25 = arith.constant 0 : index
    %c0_26 = arith.constant 0 : index
    %c0_27 = arith.constant 0 : index
    %71 = vector.load %arg22[%c0_25, %c0_26, %c0_27] : memref<2x8x32xf32, #tpu.memory_space<vmem>>, vector<2x8x32xf32>
    tpu.vector_store %arg22[%c0_25, %c0_26, %c0_27], %70 {strides = array<i32>} : memref<2x8x32xf32, #tpu.memory_space<vmem>>, vector<2x8x32xf32>,
    %72 = vector.shape_cast %61 : vector<16x32xf32> to vector<2x8x32xf32>
    %c0_28 = arith.constant 0 : index
    %c0_29 = arith.constant 0 : index
    %c0_30 = arith.constant 0 : index
    %73 = vector.load %arg2[%c0_28, %c0_29, %c0_30] : memref<2x8x32xf32, #tpu.memory_space<vmem>>, vector<2x8x32xf32>
    %74 = arith.mulf %72, %73 : vector<2x8x32xf32>
    %cst_31 = arith.constant dense<0.000000e+00> : vector<2x8xf32>
    %75 = vector.multi_reduction <add>, %74, %cst_31 [2] : vector<2x8x32xf32> to vector<2x8xf32>
    %76 = vector.shape_cast %75 : vector<2x8xf32> to vector<2x1x8xf32>
    %c0_32 = arith.constant 0 : index
    %c0_33 = arith.constant 0 : index
    %c0_34 = arith.constant 0 : index
    %77 = vector.load %arg20[%c0_32, %c0_33, %c0_34] : memref<2x1x8xf32, #tpu.memory_space<vmem>>, vector<2x1x8xf32>
    tpu.vector_store %arg20[%c0_32, %c0_33, %c0_34], %76 {strides = array<i32>} : memref<2x1x8xf32, #tpu.memory_space<vmem>>, vector<2x1x8xf32>,
    %c0_35 = arith.constant 0 : index
    %c0_36 = arith.constant 0 : index
    %c0_37 = arith.constant 0 : index
    %78 = vector.load %arg3[%c0_35, %c0_36, %c0_37] : memref<2x8x32xf32, #tpu.memory_space<vmem>>, vector<2x8x32xf32>
    %79 = arith.mulf %72, %78 : vector<2x8x32xf32>
    %cst_38 = arith.constant dense<0.000000e+00> : vector<2x8xf32>
    %80 = vector.multi_reduction <add>, %79, %cst_38 [2] : vector<2x8x32xf32> to vector<2x8xf32>
    %81 = vector.shape_cast %80 : vector<2x8xf32> to vector<2x1x8xf32>
    %c0_39 = arith.constant 0 : index
    %c0_40 = arith.constant 0 : index
    %c0_41 = arith.constant 0 : index
    %82 = vector.load %arg21[%c0_39, %c0_40, %c0_41] : memref<2x1x8xf32, #tpu.memory_space<vmem>>, vector<2x1x8xf32>
    tpu.vector_store %arg21[%c0_39, %c0_40, %c0_41], %81 {strides = array<i32>} : memref<2x1x8xf32, #tpu.memory_space<vmem>>, vector<2x1x8xf32>,
    return
  }
  func.func @transform_0(%arg0: i32) -> (i32, i32, i32) {
    %c0_i32 = arith.constant 0 : i32
    %c0_i32_0 = arith.constant 0 : i32
    %c0_i32_1 = arith.constant 0 : i32
    return %arg0, %c0_i32, %c0_i32_0 : i32, i32, i32
  }
  func.func @transform_1(%arg0: i32) -> (i32, i32, i32) {
    %c0_i32 = arith.constant 0 : i32
    %c0_i32_0 = arith.constant 0 : i32
    %c0_i32_1 = arith.constant 0 : i32
    return %arg0, %c0_i32, %c0_i32_0 : i32, i32, i32
  }
  func.func @transform_2(%arg0: i32) -> (i32, i32, i32) {
    %c0_i32 = arith.constant 0 : i32
    %c0_i32_0 = arith.constant 0 : i32
    %c0_i32_1 = arith.constant 0 : i32
    return %arg0, %c0_i32, %c0_i32_0 : i32, i32, i32
  }
  func.func @transform_3(%arg0: i32) -> (i32, i32, i32) {
    %c0_i32 = arith.constant 0 : i32
    %c0_i32_0 = arith.constant 0 : i32
    %c0_i32_1 = arith.constant 0 : i32
    %c0_i32_2 = arith.constant 0 : i32
    return %c0_i32, %c0_i32_0, %c0_i32_1 : i32, i32, i32
  }
  func.func @transform_4(%arg0: i32) -> (i32, i32, i32) {
    %c0_i32 = arith.constant 0 : i32
    %c0_i32_0 = arith.constant 0 : i32
    %c0_i32_1 = arith.constant 0 : i32
    %c0_i32_2 = arith.constant 0 : i32
    return %c0_i32, %c0_i32_0, %c0_i32_1 : i32, i32, i32
  }
  func.func @transform_5(%arg0: i32) -> (i32, i32, i32) {
    %c0_i32 = arith.constant 0 : i32
    %c0_i32_0 = arith.constant 0 : i32
    %c0_i32_1 = arith.constant 0 : i32
    %c0_i32_2 = arith.constant 0 : i32
    return %c0_i32, %c0_i32_0, %c0_i32_1 : i32, i32, i32
  }
  func.func @transform_6(%arg0: i32) -> (i32, i32, i32) {
    %c0_i32 = arith.constant 0 : i32
    %c0_i32_0 = arith.constant 0 : i32
    %c0_i32_1 = arith.constant 0 : i32
    %c0_i32_2 = arith.constant 0 : i32
    return %c0_i32, %c0_i32_0, %c0_i32_1 : i32, i32, i32
  }
  func.func @transform_7(%arg0: i32) -> (i32, i32, i32) {
    %c0_i32 = arith.constant 0 : i32
    %c0_i32_0 = arith.constant 0 : i32
    %c0_i32_1 = arith.constant 0 : i32
    %c0_i32_2 = arith.constant 0 : i32
    return %c0_i32, %c0_i32_0, %c0_i32_1 : i32, i32, i32
  }
  func.func @transform_8(%arg0: i32) -> (i32, i32, i32) {
    %c0_i32 = arith.constant 0 : i32
    %c0_i32_0 = arith.constant 0 : i32
    %c0_i32_1 = arith.constant 0 : i32
    %c0_i32_2 = arith.constant 0 : i32
    return %c0_i32, %c0_i32_0, %c0_i32_1 : i32, i32, i32
  }
  func.func @transform_9(%arg0: i32) -> (i32, i32, i32) {
    %c0_i32 = arith.constant 0 : i32
    %c0_i32_0 = arith.constant 0 : i32
    %c0_i32_1 = arith.constant 0 : i32
    %c0_i32_2 = arith.constant 0 : i32
    return %c0_i32, %c0_i32_0, %c0_i32_1 : i32, i32, i32
  }
  func.func @transform_10(%arg0: i32) -> (i32, i32, i32) {
    %c0_i32 = arith.constant 0 : i32
    %c0_i32_0 = arith.constant 0 : i32
    %c0_i32_1 = arith.constant 0 : i32
    %c0_i32_2 = arith.constant 0 : i32
    return %c0_i32, %c0_i32_0, %c0_i32_1 : i32, i32, i32
  }
  func.func @transform_11(%arg0: i32) -> (i32, i32, i32) {
    %c0_i32 = arith.constant 0 : i32
    %c0_i32_0 = arith.constant 0 : i32
    %c0_i32_1 = arith.constant 0 : i32
    %c0_i32_2 = arith.constant 0 : i32
    return %c0_i32, %c0_i32_0, %c0_i32_1 : i32, i32, i32
  }
  func.func @transform_12(%arg0: i32) -> (i32, i32, i32) {
    %c0_i32 = arith.constant 0 : i32
    %c0_i32_0 = arith.constant 0 : i32
    %c0_i32_1 = arith.constant 0 : i32
    %c0_i32_2 = arith.constant 0 : i32
    return %c0_i32, %c0_i32_0, %c0_i32_1 : i32, i32, i32
  }
  func.func @transform_13(%arg0: i32) -> (i32, i32, i32) {
    %c0_i32 = arith.constant 0 : i32
    %c0_i32_0 = arith.constant 0 : i32
    %c0_i32_1 = arith.constant 0 : i32
    %c0_i32_2 = arith.constant 0 : i32
    return %c0_i32, %c0_i32_0, %c0_i32_1 : i32, i32, i32
  }
  func.func @transform_14(%arg0: i32) -> (i32, i32, i32) {
    %c0_i32 = arith.constant 0 : i32
    %c0_i32_0 = arith.constant 0 : i32
    %c0_i32_1 = arith.constant 0 : i32
    %c0_i32_2 = arith.constant 0 : i32
    return %c0_i32, %c0_i32_0, %c0_i32_1 : i32, i32, i32
  }
  func.func @transform_15(%arg0: i32) -> (i32, i32, i32) {
    %c0_i32 = arith.constant 0 : i32
    %c0_i32_0 = arith.constant 0 : i32
    %c0_i32_1 = arith.constant 0 : i32
    %c0_i32_2 = arith.constant 0 : i32
    return %c0_i32, %c0_i32_0, %c0_i32_1 : i32, i32, i32
  }
  func.func @transform_16(%arg0: i32) -> (i32, i32, i32) {
    %c0_i32 = arith.constant 0 : i32
    %c0_i32_0 = arith.constant 0 : i32
    %c0_i32_1 = arith.constant 0 : i32
    %c0_i32_2 = arith.constant 0 : i32
    return %c0_i32, %c0_i32_0, %c0_i32_1 : i32, i32, i32
  }
  func.func @transform_17(%arg0: i32) -> (i32, i32) {
    %c0_i32 = arith.constant 0 : i32
    %c0_i32_0 = arith.constant 0 : i32
    %c0_i32_1 = arith.constant 0 : i32
    return %c0_i32, %c0_i32_0 : i32, i32
  }
  func.func @transform_18(%arg0: i32) -> (i32, i32) {
    %c0_i32 = arith.constant 0 : i32
    %c0_i32_0 = arith.constant 0 : i32
    %c0_i32_1 = arith.constant 0 : i32
    return %c0_i32, %c0_i32_0 : i32, i32
  }
  func.func @transform_19(%arg0: i32) -> (i32, i32, i32) {
    %c0_i32 = arith.constant 0 : i32
    %c0_i32_0 = arith.constant 0 : i32
    %c0_i32_1 = arith.constant 0 : i32
    return %arg0, %c0_i32, %c0_i32_0 : i32, i32, i32
  }
  func.func @transform_20(%arg0: i32) -> (i32, i32, i32) {
    %c0_i32 = arith.constant 0 : i32
    %c0_i32_0 = arith.constant 0 : i32
    %c0_i32_1 = arith.constant 0 : i32
    return %arg0, %c0_i32, %c0_i32_0 : i32, i32, i32
  }
  func.func @transform_21(%arg0: i32) -> (i32, i32, i32) {
    %c0_i32 = arith.constant 0 : i32
    %c0_i32_0 = arith.constant 0 : i32
    %c0_i32_1 = arith.constant 0 : i32
    return %arg0, %c0_i32, %c0_i32_0 : i32, i32, i32
  }
  func.func @transform_22(%arg0: i32) -> (i32, i32, i32) {
    %c0_i32 = arith.constant 0 : i32
    %c0_i32_0 = arith.constant 0 : i32
    %c0_i32_1 = arith.constant 0 : i32
    return %arg0, %c0_i32, %c0_i32_0 : i32, i32, i32
  }
}

</mosaic_0001>

<llo_original>
// kernel: sasrec_forward.6
$region0: #{sasrec_forward.6}
  #allocation0 [shape = 'u32[]', space=smem, size = 0x4, offset = 0x4, fixed_abs, tag = 'smem constant byte address 0x4 - core index']
  #allocation1 [shape = 'u32[144,128]{1,0:T(1,128)}', space=vmem, size = 0x12000, scoped, tag = 'internal scratch']
  %s0 = inlined_call_operand.vmem [shape: bf16[48,32], index: 0, kind: input, shape index: {}]
  %s1 = inlined_call_operand.vmem [shape: bf16[32,32], index: 1, kind: input, shape index: {}]
  %s2 = inlined_call_operand.vmem [shape: f32[1,32], index: 2, kind: input, shape index: {}]
  %s3 = inlined_call_operand.vmem [shape: f32[48,1], index: 3, kind: input, shape index: {}]
  %s4 = inlined_call_operand.vmem [shape: f32[1,32], index: 4, kind: input, shape index: {}]
  %s5 = inlined_call_operand.vmem [shape: bf16[48,32], index: 5, kind: output, shape index: {}]
  %s6 = sld [smem:[#allocation0]]
  $region30: #{sasrec_forward.6} parent=0
    _
  %s8 = ssub.s32 1, %s6
  %s9 = scalar_select 0, %s8, %s6
  // Predicated region
  $region2: #{sasrec_forward.6} parent=0 // pred_check
    _
  $region3: #{sasrec_forward.6} parent=0 // pred_check_branch
    %11 = sbr.rel (0) target = $region5
  $region4: #{sasrec_forward.6} parent=0 // pred_region
    _
  $region5: #{sasrec_forward.6} parent=0 // pred_fallthru
    _
  // Predicated region
  $region6: #{sasrec_forward.6} parent=0 // pred_check
    _
  $region7: #{sasrec_forward.6} parent=0 // pred_check_branch
    %13 = sbr.rel (0) target = $region9
  $region8: #{sasrec_forward.6} parent=0 // pred_region
    _
  $region9: #{sasrec_forward.6} parent=0 // pred_fallthru
    _
  // Predicated region
  $region10: #{sasrec_forward.6} parent=0 // pred_check
    _
  $region11: #{sasrec_forward.6} parent=0 // pred_check_branch
    %15 = sbr.rel (0) target = $region13
  $region12: #{sasrec_forward.6} parent=0 // pred_region
    _
  $region13: #{sasrec_forward.6} parent=0 // pred_fallthru
    _
  // Predicated region
  $region14: #{sasrec_forward.6} parent=0 // pred_check
    _
  $region15: #{sasrec_forward.6} parent=0 // pred_check_branch
    %17 = sbr.rel (0) target = $region17
  $region16: #{sasrec_forward.6} parent=0 // pred_region
    _
  $region17: #{sasrec_forward.6} parent=0 // pred_fallthru
    _
  // Predicated region
  $region18: #{sasrec_forward.6} parent=0 // pred_check
    _
  $region19: #{sasrec_forward.6} parent=0 // pred_check_branch
    %19 = sbr.rel (0) target = $region21
  $region20: #{sasrec_forward.6} parent=0 // pred_region
    _
  $region21: #{sasrec_forward.6} parent=0 // pred_fallthru
    _
  %v21 = vld [vmem:[%s0] sm:$0xf]
  %v22 = vld [vmem:[%s0 + $0x4] sm:$0xf]
  %v23 = vld [vmem:[%s0 + $0x8] sm:$0xf]
  %v24 = vld [vmem:[%s0 + $0xc] sm:$0xf]
  %v25 = vld [vmem:[%s0 + $0x10] sm:$0xf]
  %v26 = vld [vmem:[%s0 + $0x14] sm:$0xf]
  %v27 = vld [vmem:[%s1] sm:$0xf]
  %v28 = vld [vmem:[%s1 + $0x4] sm:$0xf]
  %v29 = vld [vmem:[%s1 + $0x8] sm:$0xf]
  %v30 = vld [vmem:[%s1 + $0xc] sm:$0xf]
  %v31 = vld [vmem:[%s2] sm:$0x1]
  %v33 = vlaneseq
  %v34 = vshrl.u32 %v33, 7
  %v35 = vsub.s32 0, %v34
  %v36 = vrot.slane %v31, %v35
  %v44 = vunpack.c.l.b16 %v21
  %v45 = vunpack.c.l.b16 %v22
  %v46 = vunpack.c.l.b16 %v23
  %v47 = vunpack.c.l.b16 %v24
  %v48 = vunpack.c.l.b16 %v25
  %v49 = vunpack.c.l.b16 %v26
  %v50 = vpack.c.b16 %v45, %v44
  %v51 = vpack.c.b16 %v47, %v46
  %v52 = vpack.c.b16 %v49, %v48
  %v57 = vunpack.c.l.b16 %v27
  %v58 = vunpack.c.l.b16 %v28
  %v59 = vunpack.c.l.b16 %v29
  %v60 = vunpack.c.l.b16 %v30
  %v61 = vpack.c.b16 %v58, %v57
  %v62 = vpack.c.b16 %v60, %v59
  %vm65 = vcmask 261120
  %v67 = vsel %vm65, %v50, 0
  %v70 = vsel %vm65, %v51, 0
  %v73 = vsel %vm65, %v52, 0
  %75 = vmatprep.subr.bf16.mxu0 0
  %76 = vmatpush1.bf16.msra.mxu0 %v61
  %77 = vmatprep.subr.bf16.mxu0 0
  %78 = vmatpush1.bf16.msra.mxu0 %v62
  %79 = vmatprep.subr.bf16.mxu0 0
  %80 = vmatpush1.bf16.msra.mxu0 0
  %81 = vmatprep.subr.bf16.mxu0 0
  %82 = vmatpush1.bf16.msra.mxu0 0
  %83 = vmatprep.subr.bf16.mxu0 0
  %84 = vmatpush1.bf16.msra.mxu0 0
  %85 = vmatprep.subr.bf16.mxu0 0
  %86 = vmatpush1.bf16.msra.mxu0 0
  %87 = vmatprep.subr.bf16.mxu0 0
  %88 = vmatpush1.bf16.msra.mxu0 0
  %89 = vmatprep.subr.bf16.mxu0 0
  %90 = vmatpush1.bf16.msra.mxu0 0
  %91 = vmatprep.subr.bf16.mxu0 0
  %92 = vmatpush1.bf16.msra.mxu0 0
  %93 = vmatprep.subr.bf16.mxu0 0
  %94 = vmatpush1.bf16.msra.mxu0 0
  %95 = vmatprep.subr.bf16.mxu0 0
  %96 = vmatpush1.bf16.msra.mxu0 0
  %97 = vmatprep.subr.bf16.mxu0 0
  %98 = vmatpush1.bf16.msra.mxu0 0
  %99 = vmatprep.subr.bf16.mxu0 0
  %100 = vmatpush1.bf16.msra.mxu0 0
  %101 = vmatprep.subr.bf16.mxu0 0
  %102 = vmatpush1.bf16.msra.mxu0 0
  %103 = vmatprep.subr.bf16.mxu0 0
  %104 = vmatpush1.bf16.msra.mxu0 0
  %105 = vmatprep.subr.bf16.mxu0 0
  %106 = vmatpush1.bf16.msra.mxu0 0
  %107 = vmatprep.mubr.bf16.mxu0 0
  %108 = vmatmul.mubr.bf16.gmra.mrb[0].mxu0 %v67
  %v109 = vpop.f32.mrb[0].mxu0
  %v110 = vadd.f32 %v36, %v109
  %v111 = vpop.f32.mrb[0].mxu0
  %v112 = vpop.f32.mrb[0].mxu0
  %v113 = vadd.f32 %v36, %v112
  %v114 = vpop.f32.mrb[0].mxu0
  %115 = vmatprep.mubr.bf16.mxu0 0
  %116 = vmatmul.mubr.bf16.gmra.mrb[0].mxu0 %v70
  %v117 = vpop.f32.mrb[0].mxu0
  %v118 = vadd.f32 %v36, %v117
  %v119 = vpop.f32.mrb[0].mxu0
  %v120 = vpop.f32.mrb[0].mxu0
  %v121 = vadd.f32 %v36, %v120
  %v122 = vpop.f32.mrb[0].mxu0
  %123 = vmatprep.mubr.bf16.mxu0 0
  %124 = vmatmul.mubr.bf16.gmra.mrb[0].mxu0 %v73
  %v125 = vpop.f32.mrb[0].mxu0
  %v126 = vadd.f32 %v36, %v125
  %v127 = vpop.f32.mrb[0].mxu0
  %v128 = vpop.f32.mrb[0].mxu0
  %v129 = vadd.f32 %v36, %v128
  %v130 = vpop.f32.mrb[0].mxu0
  %131 = vdwg.mxu0
  %v132 = vld [vmem:[%s3] sm:$0xff]
  %v133 = vld [vmem:[%s3 + $0x8] sm:$0xff]
  %v134 = vld [vmem:[%s3 + $0x10] sm:$0xff]
  %v135 = vld [vmem:[%s3 + $0x18] sm:$0xff]
  %v136 = vld [vmem:[%s3 + $0x20] sm:$0xff]
  %v137 = vld [vmem:[%s3 + $0x28] sm:$0xff]
  %v138 = vld [vmem:[%s4] sm:$0x1]
  %140 = vset.pattern.permute.xlu0 0
  %141 = vperm.xlu0 %140, %v132
  %v142 = vpop.permute.xlu0 %141
  %145 = vset.pattern.permute.xlu0 0
  %146 = vperm.xlu0 %145, %v133
  %v147 = vpop.permute.xlu0 %146
  %150 = vset.pattern.permute.xlu0 0
  %151 = vperm.xlu0 %150, %v134
  %v152 = vpop.permute.xlu0 %151
  %155 = vset.pattern.permute.xlu0 0
  %156 = vperm.xlu0 %155, %v135
  %v157 = vpop.permute.xlu0 %156
  %160 = vset.pattern.permute.xlu0 0
  %161 = vperm.xlu0 %160, %v136
  %v162 = vpop.permute.xlu0 %161
  %165 = vset.pattern.permute.xlu0 0
  %166 = vperm.xlu0 %165, %v137
  %v167 = vpop.permute.xlu0 %166
  %v170 = vlaneseq
  %v171 = vshrl.u32 %v170, 7
  %v172 = vsub.s32 0, %v171
  %v173 = vrot.slane %v138, %v172
  %v175 = vmul.f32 %v142, %v173
  %v176 = vmul.f32 %v147, %v173
  %v177 = vmul.f32 %v152, %v173
  %v178 = vmul.f32 %v157, %v173
  %v179 = vmul.f32 %v162, %v173
  %v180 = vmul.f32 %v167, %v173
  %v181 = vadd.f32 %v110, %v175
  %v182 = vadd.f32 %v113, %v176
  %v183 = vadd.f32 %v118, %v177
  %v184 = vadd.f32 %v121, %v178
  %v185 = vadd.f32 %v126, %v179
  %v186 = vadd.f32 %v129, %v180
  %v187 = vpack.c.bf16 %v182, %v181
  %v188 = vpack.c.bf16 %v184, %v183
  %v189 = vpack.c.bf16 %v186, %v185
  %v193 = vunpack.c.l.b16 %v187
  %v194 = vunpack.c.h.b16 %v187
  %v195 = vunpack.c.l.b16 %v188
  %v196 = vunpack.c.h.b16 %v188
  %v197 = vunpack.c.l.b16 %v189
  %v198 = vunpack.c.h.b16 %v189
  %v199 = vpack.c.b16 %v193, %v193
  %v200 = vpack.c.b16 %v194, %v194
  %v201 = vpack.c.b16 %v195, %v195
  %v202 = vpack.c.b16 %v196, %v196
  %v203 = vpack.c.b16 %v197, %v197
  %v204 = vpack.c.b16 %v198, %v198
  %vm211 = vcmask 257024
  %212 = vst.msk [vmem:[%s5] sm:$0xf] %vm211, %v199
  %213 = vst.msk [vmem:[%s5 + $0x4] sm:$0xf] %vm211, %v200
  %214 = vst.msk [vmem:[%s5 + $0x8] sm:$0xf] %vm211, %v201
  %215 = vst.msk [vmem:[%s5 + $0xc] sm:$0xf] %vm211, %v202
  %216 = vst.msk [vmem:[%s5 + $0x10] sm:$0xf] %vm211, %v203
  %217 = vst.msk [vmem:[%s5 + $0x14] sm:$0xf] %vm211, %v204
  // Predicated region
  $region22: #{sasrec_forward.6} parent=0 // pred_check
    _
  $region23: #{sasrec_forward.6} parent=0 // pred_check_branch
    %219 = sbr.rel (0) target = $region25
  $region24: #{sasrec_forward.6} parent=0 // pred_region
    _
  $region25: #{sasrec_forward.6} parent=0 // pred_fallthru
    _
  // Predicated region
  $region26: #{sasrec_forward.6} parent=0 // pred_check
    _
  $region27: #{sasrec_forward.6} parent=0 // pred_check_branch
    %221 = sbr.rel (0) target = $region29
  $region28: #{sasrec_forward.6} parent=0 // pred_region
    _
  $region29: #{sasrec_forward.6} parent=0 // pred_fallthru
    _

// kernel: sasrec_forward.7
$region0: #{sasrec_forward.7}
  #allocation0 [shape = 'u32[]', space=smem, size = 0x4, offset = 0x4, fixed_abs, tag = 'smem constant byte address 0x4 - core index']
  #allocation1 [shape = 'u32[144,128]{1,0:T(1,128)}', space=vmem, size = 0x12000, scoped, tag = 'internal scratch']
  #allocation2 [shape = 'f32[48,32]{1,0:T(8,128)}', space=vmem, size = 0x6000, scoped, tag = 'scratch operand']
  %s0 = inlined_call_operand.vmem [shape: bf16[48,128], index: 0, kind: input, shape index: {}]
  %s1 = inlined_call_operand.vmem [shape: bf16[128,32], index: 1, kind: input, shape index: {}]
  %s2 = inlined_call_operand.vmem [shape: bf16[32,32], index: 2, kind: input, shape index: {}]
  %s3 = inlined_call_operand.vmem [shape: f32[1,32], index: 3, kind: input, shape index: {}]
  %s4 = inlined_call_operand.vmem [shape: bf16[32,32], index: 4, kind: input, shape index: {}]
  %s5 = inlined_call_operand.vmem [shape: f32[1,32], index: 5, kind: input, shape index: {}]
  %s6 = inlined_call_operand.vmem [shape: f32[48,32], index: 6, kind: output, shape index: {}]
  %s7 = sld [smem:[#allocation0]]
  $region42: #{sasrec_forward.7} parent=0
    _
  %s9 = ssub.s32 1, %s7
  %s10 = scalar_select 0, %s9, %s7
  // Predicated region
  $region2: #{sasrec_forward.7} parent=0 // pred_check
    _
  $region3: #{sasrec_forward.7} parent=0 // pred_check_branch
    %12 = sbr.rel (0) target = $region5
  $region4: #{sasrec_forward.7} parent=0 // pred_region
    _
  $region5: #{sasrec_forward.7} parent=0 // pred_fallthru
    _
  // Predicated region
  $region6: #{sasrec_forward.7} parent=0 // pred_check
    _
  $region7: #{sasrec_forward.7} parent=0 // pred_check_branch
    %14 = sbr.rel (0) target = $region9
  $region8: #{sasrec_forward.7} parent=0 // pred_region
    _
  $region9: #{sasrec_forward.7} parent=0 // pred_fallthru
    _
  // Predicated region
  $region10: #{sasrec_forward.7} parent=0 // pred_check
    _
  $region11: #{sasrec_forward.7} parent=0 // pred_check_branch
    %16 = sbr.rel (0) target = $region13
  $region12: #{sasrec_forward.7} parent=0 // pred_region
    _
  $region13: #{sasrec_forward.7} parent=0 // pred_fallthru
    _
  // Predicated region
  $region14: #{sasrec_forward.7} parent=0 // pred_check
    _
  $region15: #{sasrec_forward.7} parent=0 // pred_check_branch
    %18 = sbr.rel (0) target = $region17
  $region16: #{sasrec_forward.7} parent=0 // pred_region
    _
  $region17: #{sasrec_forward.7} parent=0 // pred_fallthru
    _
  // Predicated region
  $region18: #{sasrec_forward.7} parent=0 // pred_check
    _
  $region19: #{sasrec_forward.7} parent=0 // pred_check_branch
    %20 = sbr.rel (0) target = $region21
  $region20: #{sasrec_forward.7} parent=0 // pred_region
    _
  $region21: #{sasrec_forward.7} parent=0 // pred_fallthru
    _
  // Predicated region
  $region22: #{sasrec_forward.7} parent=0 // pred_check
    _
  $region23: #{sasrec_forward.7} parent=0 // pred_check_branch
    %22 = sbr.rel (0) target = $region25
  $region24: #{sasrec_forward.7} parent=0 // pred_region
    _
  $region25: #{sasrec_forward.7} parent=0 // pred_fallthru
    _
  %p24 = scmp.eq.s32.totalorder 0, 0
  // Predicated region
  $region26: #{sasrec_forward.7} parent=0 // pred_check
    %p25 = pneg %p24
  $region27: #{sasrec_forward.7} parent=0 // pred_check_branch
    %27 = sbr.rel (%p25) target = $region29
  $region28: #{sasrec_forward.7} parent=0 // pred_region
    %vm28 = vcmask 261120
    %29 = vst.msk [vmem:[#allocation2] sm:$0xff] %vm28, 0.0
    %30 = vst.msk [vmem:[#allocation2 + $0x8] sm:$0xff] %vm28, 0.0
    %31 = vst.msk [vmem:[#allocation2 + $0x10] sm:$0xff] %vm28, 0.0
    %32 = vst.msk [vmem:[#allocation2 + $0x18] sm:$0xff] %vm28, 0.0
    %33 = vst.msk [vmem:[#allocation2 + $0x20] sm:$0xff] %vm28, 0.0
    %34 = vst.msk [vmem:[#allocation2 + $0x28] sm:$0xff] %vm28, 0.0
  $region29: #{sasrec_forward.7} parent=0 // pred_fallthru
    _
  %v35 = vld [vmem:[#allocation2] sm:$0xff]
  %v36 = vld [vmem:[#allocation2 + $0x8] sm:$0xff]
  %v37 = vld [vmem:[#allocation2 + $0x10] sm:$0xff]
  %v38 = vld [vmem:[#allocation2 + $0x18] sm:$0xff]
  %v39 = vld [vmem:[#allocation2 + $0x20] sm:$0xff]
  %v40 = vld [vmem:[#allocation2 + $0x28] sm:$0xff]
  %v41 = vld [vmem:[%s0] sm:$0xf]
  %v42 = vld [vmem:[%s0 + $0x4] sm:$0xf]
  %v43 = vld [vmem:[%s0 + $0x8] sm:$0xf]
  %v44 = vld [vmem:[%s0 + $0xc] sm:$0xf]
  %v45 = vld [vmem:[%s0 + $0x10] sm:$0xf]
  %v46 = vld [vmem:[%s0 + $0x14] sm:$0xf]
  %v47 = vld [vmem:[%s1] sm:$0xf]
  %v48 = vld [vmem:[%s1 + $0x4] sm:$0xf]
  %v49 = vld [vmem:[%s1 + $0x8] sm:$0xf]
  %v50 = vld [vmem:[%s1 + $0xc] sm:$0xf]
  %v51 = vld [vmem:[%s1 + $0x10] sm:$0xf]
  %v52 = vld [vmem:[%s1 + $0x14] sm:$0xf]
  %v53 = vld [vmem:[%s1 + $0x18] sm:$0xf]
  %v54 = vld [vmem:[%s1 + $0x1c] sm:$0xf]
  %v55 = vld [vmem:[%s1 + $0x20] sm:$0xf]
  %v56 = vld [vmem:[%s1 + $0x24] sm:$0xf]
  %v57 = vld [vmem:[%s1 + $0x28] sm:$0xf]
  %v58 = vld [vmem:[%s1 + $0x2c] sm:$0xf]
  %v59 = vld [vmem:[%s1 + $0x30] sm:$0xf]
  %v60 = vld [vmem:[%s1 + $0x34] sm:$0xf]
  %v61 = vld [vmem:[%s1 + $0x38] sm:$0xf]
  %v62 = vld [vmem:[%s1 + $0x3c] sm:$0xf]
  %v69 = vunpack.c.l.b16 %v41
  %v70 = vunpack.c.l.b16 %v42
  %v71 = vunpack.c.l.b16 %v43
  %v72 = vunpack.c.l.b16 %v44
  %v73 = vunpack.c.l.b16 %v45
  %v74 = vunpack.c.l.b16 %v46
  %v75 = vpack.c.b16 %v70, %v69
  %v76 = vpack.c.b16 %v72, %v71
  %v77 = vpack.c.b16 %v74, %v73
  %v97 = vunpack.c.l.b16 %v47
  %v98 = vunpack.c.l.b16 %v48
  %v99 = vunpack.c.l.b16 %v49
  %v100 = vunpack.c.l.b16 %v50
  %v101 = vunpack.c.l.b16 %v51
  %v102 = vunpack.c.l.b16 %v52
  %v103 = vunpack.c.l.b16 %v53
  %v104 = vunpack.c.l.b16 %v54
  %v105 = vunpack.c.l.b16 %v55
  %v106 = vunpack.c.l.b16 %v56
  %v107 = vunpack.c.l.b16 %v57
  %v108 = vunpack.c.l.b16 %v58
  %v109 = vunpack.c.l.b16 %v59
  %v110 = vunpack.c.l.b16 %v60
  %v111 = vunpack.c.l.b16 %v61
  %v112 = vunpack.c.l.b16 %v62
  %v113 = vpack.c.b16 %v98, %v97
  %v114 = vpack.c.b16 %v100, %v99
  %v115 = vpack.c.b16 %v102, %v101
  %v116 = vpack.c.b16 %v104, %v103
  %v117 = vpack.c.b16 %v106, %v105
  %v118 = vpack.c.b16 %v108, %v107
  %v119 = vpack.c.b16 %v110, %v109
  %v120 = vpack.c.b16 %v112, %v111
  %129 = vmatprep.subr.bf16.mxu0 0
  %130 = vmatpush1.bf16.msra.mxu0 %v113
  %131 = vmatprep.subr.bf16.mxu0 0
  %132 = vmatpush1.bf16.msra.mxu0 %v114
  %133 = vmatprep.subr.bf16.mxu0 0
  %134 = vmatpush1.bf16.msra.mxu0 %v115
  %135 = vmatprep.subr.bf16.mxu0 0
  %136 = vmatpush1.bf16.msra.mxu0 %v116
  %137 = vmatprep.subr.bf16.mxu0 0
  %138 = vmatpush1.bf16.msra.mxu0 %v117
  %139 = vmatprep.subr.bf16.mxu0 0
  %140 = vmatpush1.bf16.msra.mxu0 %v118
  %141 = vmatprep.subr.bf16.mxu0 0
  %142 = vmatpush1.bf16.msra.mxu0 %v119
  %143 = vmatprep.subr.bf16.mxu0 0
  %144 = vmatpush1.bf16.msra.mxu0 %v120
  %145 = vmatprep.subr.bf16.mxu0 0
  %146 = vmatpush1.bf16.msra.mxu0 0
  %147 = vmatprep.subr.bf16.mxu0 0
  %148 = vmatpush1.bf16.msra.mxu0 0
  %149 = vmatprep.subr.bf16.mxu0 0
  %150 = vmatpush1.bf16.msra.mxu0 0
  %151 = vmatprep.subr.bf16.mxu0 0
  %152 = vmatpush1.bf16.msra.mxu0 0
  %153 = vmatprep.subr.bf16.mxu0 0
  %154 = vmatpush1.bf16.msra.mxu0 0
  %155 = vmatprep.subr.bf16.mxu0 0
  %156 = vmatpush1.bf16.msra.mxu0 0
  %157 = vmatprep.subr.bf16.mxu0 0
  %158 = vmatpush1.bf16.msra.mxu0 0
  %159 = vmatprep.subr.bf16.mxu0 0
  %160 = vmatpush1.bf16.msra.mxu0 0
  %161 = vmatprep.mubr.bf16.mxu0 0
  %162 = vmatmul.mubr.bf16.gmra.mrb[0].mxu0 %v75
  %v163 = vpop.f32.mrb[0].mxu0
  %v164 = vadd.f32 0.0, %v163
  %v165 = vpop.f32.mrb[0].mxu0
  %v166 = vpop.f32.mrb[0].mxu0
  %v167 = vadd.f32 0.0, %v166
  %v168 = vpop.f32.mrb[0].mxu0
  %169 = vmatprep.mubr.bf16.mxu0 0
  %170 = vmatmul.mubr.bf16.gmra.mrb[0].mxu0 %v76
  %v171 = vpop.f32.mrb[0].mxu0
  %v172 = vadd.f32 0.0, %v171
  %v173 = vpop.f32.mrb[0].mxu0
  %v174 = vpop.f32.mrb[0].mxu0
  %v175 = vadd.f32 0.0, %v174
  %v176 = vpop.f32.mrb[0].mxu0
  %177 = vmatprep.mubr.bf16.mxu0 0
  %178 = vmatmul.mubr.bf16.gmra.mrb[0].mxu0 %v77
  %v179 = vpop.f32.mrb[0].mxu0
  %v180 = vadd.f32 0.0, %v179
  %v181 = vpop.f32.mrb[0].mxu0
  %v182 = vpop.f32.mrb[0].mxu0
  %v183 = vadd.f32 0.0, %v182
  %v184 = vpop.f32.mrb[0].mxu0
  %185 = vdwg.mxu0
  %v186 = vadd.f32 %v35, %v164
  %v187 = vadd.f32 %v36, %v167
  %v188 = vadd.f32 %v37, %v172
  %v189 = vadd.f32 %v38, %v175
  %v190 = vadd.f32 %v39, %v180
  %v191 = vadd.f32 %v40, %v183
  %vm192 = vcmask 261120
  %193 = vst.msk [vmem:[#allocation2] sm:$0xff] %vm192, %v186
  %194 = vst.msk [vmem:[#allocation2 + $0x8] sm:$0xff] %vm192, %v187
  %195 = vst.msk [vmem:[#allocation2 + $0x10] sm:$0xff] %vm192, %v188
  %196 = vst.msk [vmem:[#allocation2 + $0x18] sm:$0xff] %vm192, %v189
  %197 = vst.msk [vmem:[#allocation2 + $0x20] sm:$0xff] %vm192, %v190
  %198 = vst.msk [vmem:[#allocation2 + $0x28] sm:$0xff] %vm192, %v191
  // Predicated region
  $region30: #{sasrec_forward.7} parent=0 // pred_check
    %p199 = pneg %p24
  $region31: #{sasrec_forward.7} parent=0 // pred_check_branch
    %201 = sbr.rel (%p199) target = $region33
  $region32: #{sasrec_forward.7} parent=0 // pred_region
    %v202 = vld [vmem:[#allocation2] sm:$0xff]
    %v203 = vld [vmem:[#allocation2 + $0x8] sm:$0xff]
    %v204 = vld [vmem:[#allocation2 + $0x10] sm:$0xff]
    %v205 = vld [vmem:[#allocation2 + $0x18] sm:$0xff]
    %v206 = vld [vmem:[#allocation2 + $0x20] sm:$0xff]
    %v207 = vld [vmem:[#allocation2 + $0x28] sm:$0xff]
    %v208 = vpack.c.bf16 %v203, %v202
    %v209 = vpack.c.bf16 %v205, %v204
    %v210 = vpack.c.bf16 %v207, %v206
    %v211 = vld [vmem:[%s2] sm:$0xf]
    %v212 = vld [vmem:[%s2 + $0x4] sm:$0xf]
    %v213 = vld [vmem:[%s2 + $0x8] sm:$0xf]
    %v214 = vld [vmem:[%s2 + $0xc] sm:$0xf]
    %v215 = vld [vmem:[%s3] sm:$0x1]
    %v217 = vlaneseq
    %v218 = vshrl.u32 %v217, 7
    %v219 = vsub.s32 0, %v218
    %v220 = vrot.slane %v215, %v219
    %v226 = vunpack.c.l.b16 %v211
    %v227 = vunpack.c.l.b16 %v212
    %v228 = vunpack.c.l.b16 %v213
    %v229 = vunpack.c.l.b16 %v214
    %v230 = vpack.c.b16 %v227, %v226
    %v231 = vpack.c.b16 %v229, %v228
    %v235 = vsel %vm192, %v208, 0
    %v238 = vsel %vm192, %v209, 0
    %v241 = vsel %vm192, %v210, 0
    %243 = vmatprep.subr.bf16.mxu0 0
    %244 = vmatpush1.bf16.msra.mxu0 %v230
    %245 = vmatprep.subr.bf16.mxu0 0
    %246 = vmatpush1.bf16.msra.mxu0 %v231
    %247 = vmatprep.subr.bf16.mxu0 0
    %248 = vmatpush1.bf16.msra.mxu0 0
    %249 = vmatprep.subr.bf16.mxu0 0
    %250 = vmatpush1.bf16.msra.mxu0 0
    %251 = vmatprep.subr.bf16.mxu0 0
    %252 = vmatpush1.bf16.msra.mxu0 0
    %253 = vmatprep.subr.bf16.mxu0 0
    %254 = vmatpush1.bf16.msra.mxu0 0
    %255 = vmatprep.subr.bf16.mxu0 0
    %256 = vmatpush1.bf16.msra.mxu0 0
    %257 = vmatprep.subr.bf16.mxu0 0
    %258 = vmatpush1.bf16.msra.mxu0 0
    %259 = vmatprep.subr.bf16.mxu0 0
    %260 = vmatpush1.bf16.msra.mxu0 0
    %261 = vmatprep.subr.bf16.mxu0 0
    %262 = vmatpush1.bf16.msra.mxu0 0
    %263 = vmatprep.subr.bf16.mxu0 0
    %264 = vmatpush1.bf16.msra.mxu0 0
    %265 = vmatprep.subr.bf16.mxu0 0
    %266 = vmatpush1.bf16.msra.mxu0 0
    %267 = vmatprep.subr.bf16.mxu0 0
    %268 = vmatpush1.bf16.msra.mxu0 0
    %269 = vmatprep.subr.bf16.mxu0 0
    %270 = vmatpush1.bf16.msra.mxu0 0
    %271 = vmatprep.subr.bf16.mxu0 0
    %272 = vmatpush1.bf16.msra.mxu0 0
    %273 = vmatprep.subr.bf16.mxu0 0
    %274 = vmatpush1.bf16.msra.mxu0 0
    %275 = vmatprep.mubr.bf16.mxu0 0
    %276 = vmatmul.mubr.bf16.gmra.mrb[0].mxu0 %v235
    %v277 = vpop.f32.mrb[0].mxu0
    %v278 = vadd.f32 %v220, %v277
    %v279 = vpop.f32.mrb[0].mxu0
    %v280 = vpop.f32.mrb[0].mxu0
    %v281 = vadd.f32 %v220, %v280
    %v282 = vpop.f32.mrb[0].mxu0
    %283 = vmatprep.mubr.bf16.mxu0 0
    %284 = vmatmul.mubr.bf16.gmra.mrb[0].mxu0 %v238
    %v285 = vpop.f32.mrb[0].mxu0
    %v286 = vadd.f32 %v220, %v285
    %v287 = vpop.f32.mrb[0].mxu0
    %v288 = vpop.f32.mrb[0].mxu0
    %v289 = vadd.f32 %v220, %v288
    %v290 = vpop.f32.mrb[0].mxu0
    %291 = vmatprep.mubr.bf16.mxu0 0
    %292 = vmatmul.mubr.bf16.gmra.mrb[0].mxu0 %v241
    %v293 = vpop.f32.mrb[0].mxu0
    %v294 = vadd.f32 %v220, %v293
    %v295 = vpop.f32.mrb[0].mxu0
    %v296 = vpop.f32.mrb[0].mxu0
    %v297 = vadd.f32 %v220, %v296
    %v298 = vpop.f32.mrb[0].mxu0
    %299 = vdwg.mxu0
    %v300 = vmax.f32 %v278, 0.0
    %v301 = vmax.f32 %v281, 0.0
    %v302 = vmax.f32 %v286, 0.0
    %v303 = vmax.f32 %v289, 0.0
    %v304 = vmax.f32 %v294, 0.0
    %v305 = vmax.f32 %v297, 0.0
    %v306 = vpack.c.bf16 %v301, %v300
    %v307 = vpack.c.bf16 %v303, %v302
    %v308 = vpack.c.bf16 %v305, %v304
    %v309 = vld [vmem:[%s4] sm:$0xf]
    %v310 = vld [vmem:[%s4 + $0x4] sm:$0xf]
    %v311 = vld [vmem:[%s4 + $0x8] sm:$0xf]
    %v312 = vld [vmem:[%s4 + $0xc] sm:$0xf]
    %v313 = vld [vmem:[%s5] sm:$0x1]
    %v315 = vlaneseq
    %v316 = vshrl.u32 %v315, 7
    %v317 = vsub.s32 0, %v316
    %v318 = vrot.slane %v313, %v317
    %v324 = vunpack.c.l.b16 %v309
    %v325 = vunpack.c.l.b16 %v310
    %v326 = vunpack.c.l.b16 %v311
    %v327 = vunpack.c.l.b16 %v312
    %v328 = vpack.c.b16 %v325, %v324
    %v329 = vpack.c.b16 %v327, %v326
    %v333 = vsel %vm192, %v306, 0
    %v336 = vsel %vm192, %v307, 0
    %v339 = vsel %vm192, %v308, 0
    %341 = vmatprep.subr.bf16.mxu0 0
    %342 = vmatpush1.bf16.msra.mxu0 %v328
    %343 = vmatprep.subr.bf16.mxu0 0
    %344 = vmatpush1.bf16.msra.mxu0 %v329
    %345 = vmatprep.subr.bf16.mxu0 0
    %346 = vmatpush1.bf16.msra.mxu0 0
    %347 = vmatprep.subr.bf16.mxu0 0
    %348 = vmatpush1.bf16.msra.mxu0 0
    %349 = vmatprep.subr.bf16.mxu0 0
    %350 = vmatpush1.bf16.msra.mxu0 0
    %351 = vmatprep.subr.bf16.mxu0 0
    %352 = vmatpush1.bf16.msra.mxu0 0
    %353 = vmatprep.subr.bf16.mxu0 0
    %354 = vmatpush1.bf16.msra.mxu0 0
    %355 = vmatprep.subr.bf16.mxu0 0
    %356 = vmatpush1.bf16.msra.mxu0 0
    %357 = vmatprep.subr.bf16.mxu0 0
    %358 = vmatpush1.bf16.msra.mxu0 0
    %359 = vmatprep.subr.bf16.mxu0 0
    %360 = vmatpush1.bf16.msra.mxu0 0
    %361 = vmatprep.subr.bf16.mxu0 0
    %362 = vmatpush1.bf16.msra.mxu0 0
    %363 = vmatprep.subr.bf16.mxu0 0
    %364 = vmatpush1.bf16.msra.mxu0 0
    %365 = vmatprep.subr.bf16.mxu0 0
    %366 = vmatpush1.bf16.msra.mxu0 0
    %367 = vmatprep.subr.bf16.mxu0 0
    %368 = vmatpush1.bf16.msra.mxu0 0
    %369 = vmatprep.subr.bf16.mxu0 0
    %370 = vmatpush1.bf16.msra.mxu0 0
    %371 = vmatprep.subr.bf16.mxu0 0
    %372 = vmatpush1.bf16.msra.mxu0 0
    %373 = vmatprep.mubr.bf16.mxu0 0
    %374 = vmatmul.mubr.bf16.gmra.mrb[0].mxu0 %v333
    %v375 = vpop.f32.mrb[0].mxu0
    %v376 = vadd.f32 %v318, %v375
    %v377 = vpop.f32.mrb[0].mxu0
    %v378 = vpop.f32.mrb[0].mxu0
    %v379 = vadd.f32 %v318, %v378
    %v380 = vpop.f32.mrb[0].mxu0
    %381 = vmatprep.mubr.bf16.mxu0 0
    %382 = vmatmul.mubr.bf16.gmra.mrb[0].mxu0 %v336
    %v383 = vpop.f32.mrb[0].mxu0
    %v384 = vadd.f32 %v318, %v383
    %v385 = vpop.f32.mrb[0].mxu0
    %v386 = vpop.f32.mrb[0].mxu0
    %v387 = vadd.f32 %v318, %v386
    %v388 = vpop.f32.mrb[0].mxu0
    %389 = vmatprep.mubr.bf16.mxu0 0
    %390 = vmatmul.mubr.bf16.gmra.mrb[0].mxu0 %v339
    %v391 = vpop.f32.mrb[0].mxu0
    %v392 = vadd.f32 %v318, %v391
    %v393 = vpop.f32.mrb[0].mxu0
    %v394 = vpop.f32.mrb[0].mxu0
    %v395 = vadd.f32 %v318, %v394
    %v396 = vpop.f32.mrb[0].mxu0
    %397 = vdwg.mxu0
    %398 = vst.msk [vmem:[%s6] sm:$0xff] %vm192, %v376
    %399 = vst.msk [vmem:[%s6 + $0x8] sm:$0xff] %vm192, %v379
    %400 = vst.msk [vmem:[%s6 + $0x10] sm:$0xff] %vm192, %v384
    %401 = vst.msk [vmem:[%s6 + $0x18] sm:$0xff] %vm192, %v387
    %402 = vst.msk [vmem:[%s6 + $0x20] sm:$0xff] %vm192, %v392
    %403 = vst.msk [vmem:[%s6 + $0x28] sm:$0xff] %vm192, %v395
  $region33: #{sasrec_forward.7} parent=0 // pred_fallthru
    _
  // Predicated region
  $region34: #{sasrec_forward.7} parent=0 // pred_check
    _
  $region35: #{sasrec_forward.7} parent=0 // pred_check_branch
    %405 = sbr.rel (0) target = $region37
  $region36: #{sasrec_forward.7} parent=0 // pred_region
    _
  $region37: #{sasrec_forward.7} parent=0 // pred_fallthru
    _
  // Predicated region
  $region38: #{sasrec_forward.7} parent=0 // pred_check
    _
  $region39: #{sasrec_forward.7} parent=0 // pred_check_branch
    %407 = sbr.rel (0) target = $region41
  $region40: #{sasrec_forward.7} parent=0 // pred_region
    _
  $region41: #{sasrec_forward.7} parent=0 // pred_fallthru
    _

// kernel: sasrec_forward.11
$region0: #{sasrec_forward.11}
  #allocation0 [shape = 'u32[]', space=smem, size = 0x4, offset = 0x4, fixed_abs, tag = 'smem constant byte address 0x4 - core index']
  #allocation1 [shape = 'u32[144,128]{1,0:T(1,128)}', space=vmem, size = 0x12000, scoped, tag = 'internal scratch']
  %s0 = inlined_call_operand.vmem [shape: f32[128,4], index: 0, kind: input, shape index: {}]
  %s1 = inlined_call_operand.vmem [shape: f32[128,4], index: 1, kind: input, shape index: {}]
  %s2 = inlined_call_operand.hbm [shape: f32[1,1], index: 2, kind: output, shape index: {}]
  %s3 = sld [smem:[#allocation0]]
  $region18: #{sasrec_forward.11} parent=0
    _
  %s5 = ssub.s32 1, %s3
  %s6 = scalar_select 0, %s5, %s3
  $region1: #{sasrec_forward.11} parent=0
    #allocation2 [shape = 'u8[512]{0}', space=vmem, size = 0x400, scoped, tag = 'output window, operand 0, single buffered']
    #allocation3 [shape = 's32[1]{0}', space=sflag, size = 0x4, scoped, tag = 'scoped memory for sasrec_forward.11']
    %7 = vsyncpa [#allocation3], 0
    // Predicated region
    $region2: #{sasrec_forward.11} parent=1 // pred_check
      _
    $region3: #{sasrec_forward.11} parent=1 // pred_check_branch
      %9 = sbr.rel (0) target = $region5
    $region4: #{sasrec_forward.11} parent=1 // pred_region
      _
    $region5: #{sasrec_forward.11} parent=1 // pred_fallthru
      _
    // Predicated region
    $region6: #{sasrec_forward.11} parent=1 // pred_check
      _
    $region7: #{sasrec_forward.11} parent=1 // pred_check_branch
      %11 = sbr.rel (0) target = $region9
    $region8: #{sasrec_forward.11} parent=1 // pred_region
      _
    $region9: #{sasrec_forward.11} parent=1 // pred_fallthru
      _
    %v12 = vld [vmem:[%s0] sm:$0xff]
    %v13 = vld [vmem:[%s0 + $0x8] sm:$0xff]
    %v14 = vld [vmem:[%s0 + $0x10] sm:$0xff]
    %v15 = vld [vmem:[%s0 + $0x18] sm:$0xff]
    %v16 = vld [vmem:[%s0 + $0x20] sm:$0xff]
    %v17 = vld [vmem:[%s0 + $0x28] sm:$0xff]
    %v18 = vld [vmem:[%s0 + $0x30] sm:$0xff]
    %v19 = vld [vmem:[%s0 + $0x38] sm:$0xff]
    %v20 = vld [vmem:[%s0 + $0x40] sm:$0xff]
    %v21 = vld [vmem:[%s0 + $0x48] sm:$0xff]
    %v22 = vld [vmem:[%s0 + $0x50] sm:$0xff]
    %v23 = vld [vmem:[%s0 + $0x58] sm:$0xff]
    %v24 = vld [vmem:[%s0 + $0x60] sm:$0xff]
    %v25 = vld [vmem:[%s0 + $0x68] sm:$0xff]
    %v26 = vld [vmem:[%s0 + $0x70] sm:$0xff]
    %v27 = vld [vmem:[%s0 + $0x78] sm:$0xff]
    %v28 = vld [vmem:[%s1] sm:$0xff]
    %v29 = vld [vmem:[%s1 + $0x8] sm:$0xff]
    %v30 = vld [vmem:[%s1 + $0x10] sm:$0xff]
    %v31 = vld [vmem:[%s1 + $0x18] sm:$0xff]
    %v32 = vld [vmem:[%s1 + $0x20] sm:$0xff]
    %v33 = vld [vmem:[%s1 + $0x28] sm:$0xff]
    %v34 = vld [vmem:[%s1 + $0x30] sm:$0xff]
    %v35 = vld [vmem:[%s1 + $0x38] sm:$0xff]
    %v36 = vld [vmem:[%s1 + $0x40] sm:$0xff]
    %v37 = vld [vmem:[%s1 + $0x48] sm:$0xff]
    %v38 = vld [vmem:[%s1 + $0x50] sm:$0xff]
    %v39 = vld [vmem:[%s1 + $0x58] sm:$0xff]
    %v40 = vld [vmem:[%s1 + $0x60] sm:$0xff]
    %v41 = vld [vmem:[%s1 + $0x68] sm:$0xff]
    %v42 = vld [vmem:[%s1 + $0x70] sm:$0xff]
    %v43 = vld [vmem:[%s1 + $0x78] sm:$0xff]
    %v44 = vmul.f32 %v12, %v28
    %v45 = vmul.f32 %v13, %v29
    %v46 = vmul.f32 %v14, %v30
    %v47 = vmul.f32 %v15, %v31
    %v48 = vmul.f32 %v16, %v32
    %v49 = vmul.f32 %v17, %v33
    %v50 = vmul.f32 %v18, %v34
    %v51 = vmul.f32 %v19, %v35
    %v52 = vmul.f32 %v20, %v36
    %v53 = vmul.f32 %v21, %v37
    %v54 = vmul.f32 %v22, %v38
    %v55 = vmul.f32 %v23, %v39
    %v56 = vmul.f32 %v24, %v40
    %v57 = vmul.f32 %v25, %v41
    %v58 = vmul.f32 %v26, %v42
    %v59 = vmul.f32 %v27, %v43
    %vm60 = vcmask 31744
    %v61 = vsel %vm60, %v44, 0.0
    %62 = vadd.xlane.f32.xlu0 %v61
    %v63 = vpop.xlane.xlu0 %62
    %v64 = vsel %vm60, %v45, 0.0
    %65 = vadd.xlane.f32.xlu0 %v64
    %v66 = vpop.xlane.xlu0 %65
    %v67 = vsel %vm60, %v46, 0.0
    %68 = vadd.xlane.f32.xlu0 %v67
    %v69 = vpop.xlane.xlu0 %68
    %v70 = vsel %vm60, %v47, 0.0
    %71 = vadd.xlane.f32.xlu0 %v70
    %v72 = vpop.xlane.xlu0 %71
    %v73 = vsel %vm60, %v48, 0.0
    %74 = vadd.xlane.f32.xlu0 %v73
    %v75 = vpop.xlane.xlu0 %74
    %v76 = vsel %vm60, %v49, 0.0
    %77 = vadd.xlane.f32.xlu0 %v76
    %v78 = vpop.xlane.xlu0 %77
    %v79 = vsel %vm60, %v50, 0.0
    %80 = vadd.xlane.f32.xlu0 %v79
    %v81 = vpop.xlane.xlu0 %80
    %v82 = vsel %vm60, %v51, 0.0
    %83 = vadd.xlane.f32.xlu0 %v82
    %v84 = vpop.xlane.xlu0 %83
    %v85 = vsel %vm60, %v52, 0.0
    %86 = vadd.xlane.f32.xlu0 %v85
    %v87 = vpop.xlane.xlu0 %86
    %v88 = vsel %vm60, %v53, 0.0
    %89 = vadd.xlane.f32.xlu0 %v88
    %v90 = vpop.xlane.xlu0 %89
    %v91 = vsel %vm60, %v54, 0.0
    %92 = vadd.xlane.f32.xlu0 %v91
    %v93 = vpop.xlane.xlu0 %92
    %v94 = vsel %vm60, %v55, 0.0
    %95 = vadd.xlane.f32.xlu0 %v94
    %v96 = vpop.xlane.xlu0 %95
    %v97 = vsel %vm60, %v56, 0.0
    %98 = vadd.xlane.f32.xlu0 %v97
    %v99 = vpop.xlane.xlu0 %98
    %v100 = vsel %vm60, %v57, 0.0
    %101 = vadd.xlane.f32.xlu0 %v100
    %v102 = vpop.xlane.xlu0 %101
    %v103 = vsel %vm60, %v58, 0.0
    %104 = vadd.xlane.f32.xlu0 %v103
    %v105 = vpop.xlane.xlu0 %104
    %v106 = vsel %vm60, %v59, 0.0
    %107 = vadd.xlane.f32.xlu0 %v106
    %v108 = vpop.xlane.xlu0 %107
    %v109 = vrcp.pop 0.5
    %v110 = vmul.f32 %v63, %v109
    %v111 = vmul.f32 %v66, %v109
    %v112 = vmul.f32 %v69, %v109
    %v113 = vmul.f32 %v72, %v109
    %v114 = vmul.f32 %v75, %v109
    %v115 = vmul.f32 %v78, %v109
    %v116 = vmul.f32 %v81, %v109
    %v117 = vmul.f32 %v84, %v109
    %v118 = vmul.f32 %v87, %v109
    %v119 = vmul.f32 %v90, %v109
    %v120 = vmul.f32 %v93, %v109
    %v121 = vmul.f32 %v96, %v109
    %v122 = vmul.f32 %v99, %v109
    %v123 = vmul.f32 %v102, %v109
    %v124 = vmul.f32 %v105, %v109
    %v125 = vmul.f32 %v108, %v109
    %v126 = vmul.f32 %v110, 1.442695
    %v127 = vpow.pop %v126
    %v128 = vmul.f32 %v111, 1.442695
    %v129 = vpow.pop %v128
    %v130 = vmul.f32 %v112, 1.442695
    %v131 = vpow.pop %v130
    %v132 = vmul.f32 %v113, 1.442695
    %v133 = vpow.pop %v132
    %v134 = vmul.f32 %v114, 1.442695
    %v135 = vpow.pop %v134
    %v136 = vmul.f32 %v115, 1.442695
    %v137 = vpow.pop %v136
    %v138 = vmul.f32 %v116, 1.442695
    %v139 = vpow.pop %v138
    %v140 = vmul.f32 %v117, 1.442695
    %v141 = vpow.pop %v140
    %v142 = vmul.f32 %v118, 1.442695
    %v143 = vpow.pop %v142
    %v144 = vmul.f32 %v119, 1.442695
    %v145 = vpow.pop %v144
    %v146 = vmul.f32 %v120, 1.442695
    %v147 = vpow.pop %v146
    %v148 = vmul.f32 %v121, 1.442695
    %v149 = vpow.pop %v148
    %v150 = vmul.f32 %v122, 1.442695
    %v151 = vpow.pop %v150
    %v152 = vmul.f32 %v123, 1.442695
    %v153 = vpow.pop %v152
    %v154 = vmul.f32 %v124, 1.442695
    %v155 = vpow.pop %v154
    %v156 = vmul.f32 %v125, 1.442695
    %v157 = vpow.pop %v156
    %v159 = vsel %vm60, %v12, 0
    %v162 = vsel %vm60, %v13, 0
    %v165 = vsel %vm60, %v14, 0
    %v168 = vsel %vm60, %v15, 0
    %v171 = vsel %vm60, %v16, 0
    %v174 = vsel %vm60, %v17, 0
    %v177 = vsel %vm60, %v18, 0
    %v180 = vsel %vm60, %v19, 0
    %v183 = vsel %vm60, %v20, 0
    %v186 = vsel %vm60, %v21, 0
    %v189 = vsel %vm60, %v22, 0
    %v192 = vsel %vm60, %v23, 0
    %v195 = vsel %vm60, %v24, 0
    %v198 = vsel %vm60, %v25, 0
    %v201 = vsel %vm60, %v26, 0
    %v204 = vsel %vm60, %v27, 0
    %v207 = vsel %vm60, %v28, 0
    %v210 = vsel %vm60, %v29, 0
    %v213 = vsel %vm60, %v30, 0
    %v216 = vsel %vm60, %v31, 0
    %v219 = vsel %vm60, %v32, 0
    %v222 = vsel %vm60, %v33, 0
    %v225 = vsel %vm60, %v34, 0
    %v228 = vsel %vm60, %v35, 0
    %v231 = vsel %vm60, %v36, 0
    %v234 = vsel %vm60, %v37, 0
    %v237 = vsel %vm60, %v38, 0
    %v240 = vsel %vm60, %v39, 0
    %v243 = vsel %vm60, %v40, 0
    %v246 = vsel %vm60, %v41, 0
    %v249 = vsel %vm60, %v42, 0
    %v252 = vsel %vm60, %v43, 0
    %254 = vmatprep.subr.mxu0 0.0
    %255 = vmatpush1.xpose.msra.mxu0 %v207
    %256 = vmatprep.subr.mxu0 0.0
    %257 = vmatpush1.xpose.msra.mxu0 %v210
    %258 = vmatprep.subr.mxu0 0.0
    %259 = vmatpush1.xpose.msra.mxu0 %v213
    %260 = vmatprep.subr.mxu0 0.0
    %261 = vmatpush1.xpose.msra.mxu0 %v216
    %262 = vmatprep.subr.mxu0 0.0
    %263 = vmatpush1.xpose.msra.mxu0 %v219
    %264 = vmatprep.subr.mxu0 0.0
    %265 = vmatpush1.xpose.msra.mxu0 %v222
    %266 = vmatprep.subr.mxu0 0.0
    %267 = vmatpush1.xpose.msra.mxu0 %v225
    %268 = vmatprep.subr.mxu0 0.0
    %269 = vmatpush1.xpose.msra.mxu0 %v228
    %270 = vmatprep.subr.mxu0 0.0
    %271 = vmatpush1.xpose.msra.mxu0 %v231
    %272 = vmatprep.subr.mxu0 0.0
    %273 = vmatpush1.xpose.msra.mxu0 %v234
    %274 = vmatprep.subr.mxu0 0.0
    %275 = vmatpush1.xpose.msra.mxu0 %v237
    %276 = vmatprep.subr.mxu0 0.0
    %277 = vmatpush1.xpose.msra.mxu0 %v240
    %278 = vmatprep.subr.mxu0 0.0
    %279 = vmatpush1.xpose.msra.mxu0 %v243
    %280 = vmatprep.subr.mxu0 0.0
    %281 = vmatpush1.xpose.msra.mxu0 %v246
    %282 = vmatprep.subr.mxu0 0.0
    %283 = vmatpush1.xpose.msra.mxu0 %v249
    %284 = vmatprep.subr.mxu0 0.0
    %285 = vmatpush1.xpose.msra.mxu0 %v252
    %286 = vmatprep.subr.mxu0 0.0
    %287 = vmatpush1.xpose.msra.mxu0 0.0
    %288 = vmatprep.subr.mxu0 0.0
    %289 = vmatpush1.xpose.msra.mxu0 0.0
    %290 = vmatprep.subr.mxu0 0.0
    %291 = vmatpush1.xpose.msra.mxu0 0.0
    %292 = vmatprep.subr.mxu0 0.0
    %293 = vmatpush1.xpose.msra.mxu0 0.0
    %294 = vmatprep.subr.mxu0 0.0
    %295 = vmatpush1.xpose.msra.mxu0 0.0
    %296 = vmatprep.subr.mxu0 0.0
    %297 = vmatpush1.xpose.msra.mxu0 0.0
    %298 = vmatprep.subr.mxu0 0.0
    %299 = vmatpush1.xpose.msra.mxu0 0.0
    %300 = vmatprep.subr.mxu0 0.0
    %301 = vmatpush1.xpose.msra.mxu0 0.0
    %302 = vmatprep.subr.mxu0 0.0
    %303 = vmatpush1.xpose.msra.mxu0 0.0
    %304 = vmatprep.subr.mxu0 0.0
    %305 = vmatpush1.xpose.msra.mxu0 0.0
    %306 = vmatprep.subr.mxu0 0.0
    %307 = vmatpush1.xpose.msra.mxu0 0.0
    %308 = vmatprep.subr.mxu0 0.0
    %309 = vmatpush1.xpose.msra.mxu0 0.0
    %310 = vmatprep.subr.mxu0 0.0
    %311 = vmatpush1.xpose.msra.mxu0 0.0
    %312 = vmatprep.subr.mxu0 0.0
    %313 = vmatpush1.xpose.msra.mxu0 0.0
    %314 = vmatprep.subr.mxu0 0.0
    %315 = vmatpush1.xpose.msra.mxu0 0.0
    %316 = vmatprep.subr.mxu0 0.0
    %317 = vmatpush1.xpose.msra.mxu0 0.0
    %318 = vmatprep.mubr.f32.mxu0 0.0
    %319 = vmatmul.mubr.f32.gmra.mrb[0].mxu0 %v159
    %v320 = vpop.f32.mrb[0].mxu0
    %v321 = vadd.f32 0.0, %v320
    %v322 = vpop.f32.mrb[0].mxu0
    %323 = vmatprep.mubr.f32.mxu0 0.0
    %324 = vmatmul.mubr.f32.gmra.mrb[0].mxu0 %v162
    %v325 = vpop.f32.mrb[0].mxu0
    %v326 = vadd.f32 0.0, %v325
    %v327 = vpop.f32.mrb[0].mxu0
    %328 = vmatprep.mubr.f32.mxu0 0.0
    %329 = vmatmul.mubr.f32.gmra.mrb[0].mxu0 %v165
    %v330 = vpop.f32.mrb[0].mxu0
    %v331 = vadd.f32 0.0, %v330
    %v332 = vpop.f32.mrb[0].mxu0
    %333 = vmatprep.mubr.f32.mxu0 0.0
    %334 = vmatmul.mubr.f32.gmra.mrb[0].mxu0 %v168
    %v335 = vpop.f32.mrb[0].mxu0
    %v336 = vadd.f32 0.0, %v335
    %v337 = vpop.f32.mrb[0].mxu0
    %338 = vmatprep.mubr.f32.mxu0 0.0
    %339 = vmatmul.mubr.f32.gmra.mrb[0].mxu0 %v171
    %v340 = vpop.f32.mrb[0].mxu0
    %v341 = vadd.f32 0.0, %v340
    %v342 = vpop.f32.mrb[0].mxu0
    %343 = vmatprep.mubr.f32.mxu0 0.0
    %344 = vmatmul.mubr.f32.gmra.mrb[0].mxu0 %v174
    %v345 = vpop.f32.mrb[0].mxu0
    %v346 = vadd.f32 0.0, %v345
    %v347 = vpop.f32.mrb[0].mxu0
    %348 = vmatprep.mubr.f32.mxu0 0.0
    %349 = vmatmul.mubr.f32.gmra.mrb[0].mxu0 %v177
    %v350 = vpop.f32.mrb[0].mxu0
    %v351 = vadd.f32 0.0, %v350
    %v352 = vpop.f32.mrb[0].mxu0
    %353 = vmatprep.mubr.f32.mxu0 0.0
    %354 = vmatmul.mubr.f32.gmra.mrb[0].mxu0 %v180
    %v355 = vpop.f32.mrb[0].mxu0
    %v356 = vadd.f32 0.0, %v355
    %v357 = vpop.f32.mrb[0].mxu0
    %358 = vmatprep.mubr.f32.mxu0 0.0
    %359 = vmatmul.mubr.f32.gmra.mrb[0].mxu0 %v183
    %v360 = vpop.f32.mrb[0].mxu0
    %v361 = vadd.f32 0.0, %v360
    %v362 = vpop.f32.mrb[0].mxu0
    %363 = vmatprep.mubr.f32.mxu0 0.0
    %364 = vmatmul.mubr.f32.gmra.mrb[0].mxu0 %v186
    %v365 = vpop.f32.mrb[0].mxu0
    %v366 = vadd.f32 0.0, %v365
    %v367 = vpop.f32.mrb[0].mxu0
    %368 = vmatprep.mubr.f32.mxu0 0.0
    %369 = vmatmul.mubr.f32.gmra.mrb[0].mxu0 %v189
    %v370 = vpop.f32.mrb[0].mxu0
    %v371 = vadd.f32 0.0, %v370
    %v372 = vpop.f32.mrb[0].mxu0
    %373 = vmatprep.mubr.f32.mxu0 0.0
    %374 = vmatmul.mubr.f32.gmra.mrb[0].mxu0 %v192
    %v375 = vpop.f32.mrb[0].mxu0
    %v376 = vadd.f32 0.0, %v375
    %v377 = vpop.f32.mrb[0].mxu0
    %378 = vmatprep.mubr.f32.mxu0 0.0
    %379 = vmatmul.mubr.f32.gmra.mrb[0].mxu0 %v195
    %v380 = vpop.f32.mrb[0].mxu0
    %v381 = vadd.f32 0.0, %v380
    %v382 = vpop.f32.mrb[0].mxu0
    %383 = vmatprep.mubr.f32.mxu0 0.0
    %384 = vmatmul.mubr.f32.gmra.mrb[0].mxu0 %v198
    %v385 = vpop.f32.mrb[0].mxu0
    %v386 = vadd.f32 0.0, %v385
    %v387 = vpop.f32.mrb[0].mxu0
    %388 = vmatprep.mubr.f32.mxu0 0.0
    %389 = vmatmul.mubr.f32.gmra.mrb[0].mxu0 %v201
    %v390 = vpop.f32.mrb[0].mxu0
    %v391 = vadd.f32 0.0, %v390
    %v392 = vpop.f32.mrb[0].mxu0
    %393 = vmatprep.mubr.f32.mxu0 0.0
    %394 = vmatmul.mubr.f32.gmra.mrb[0].mxu0 %v204
    %v395 = vpop.f32.mrb[0].mxu0
    %v396 = vadd.f32 0.0, %v395
    %v397 = vpop.f32.mrb[0].mxu0
    %398 = vdwg.mxu0
    %v399 = vmul.f32 %v321, %v109
    %v400 = vmul.f32 %v326, %v109
    %v401 = vmul.f32 %v331, %v109
    %v402 = vmul.f32 %v336, %v109
    %v403 = vmul.f32 %v341, %v109
    %v404 = vmul.f32 %v346, %v109
    %v405 = vmul.f32 %v351, %v109
    %v406 = vmul.f32 %v356, %v109
    %v407 = vmul.f32 %v361, %v109
    %v408 = vmul.f32 %v366, %v109
    %v409 = vmul.f32 %v371, %v109
    %v410 = vmul.f32 %v376, %v109
    %v411 = vmul.f32 %v381, %v109
    %v412 = vmul.f32 %v386, %v109
    %v413 = vmul.f32 %v391, %v109
    %v414 = vmul.f32 %v396, %v109
    %v415 = vmul.f32 %v399, 1.442695
    %v416 = vpow.pop %v415
    %v417 = vmul.f32 %v400, 1.442695
    %v418 = vpow.pop %v417
    %v419 = vmul.f32 %v401, 1.442695
    %v420 = vpow.pop %v419
    %v421 = vmul.f32 %v402, 1.442695
    %v422 = vpow.pop %v421
    %v423 = vmul.f32 %v403, 1.442695
    %v424 = vpow.pop %v423
    %v425 = vmul.f32 %v404, 1.442695
    %v426 = vpow.pop %v425
    %v427 = vmul.f32 %v405, 1.442695
    %v428 = vpow.pop %v427
    %v429 = vmul.f32 %v406, 1.442695
    %v430 = vpow.pop %v429
    %v431 = vmul.f32 %v407, 1.442695
    %v432 = vpow.pop %v431
    %v433 = vmul.f32 %v408, 1.442695
    %v434 = vpow.pop %v433
    %v435 = vmul.f32 %v409, 1.442695
    %v436 = vpow.pop %v435
    %v437 = vmul.f32 %v410, 1.442695
    %v438 = vpow.pop %v437
    %v439 = vmul.f32 %v411, 1.442695
    %v440 = vpow.pop %v439
    %v441 = vmul.f32 %v412, 1.442695
    %v442 = vpow.pop %v441
    %v443 = vmul.f32 %v413, 1.442695
    %v444 = vpow.pop %v443
    %v445 = vmul.f32 %v414, 1.442695
    %v446 = vpow.pop %v445
    %447 = vadd.xlane.f32.xlu0 %v416
    %v448 = vpop.xlane.xlu0 %447
    %449 = vadd.xlane.f32.xlu0 %v418
    %v450 = vpop.xlane.xlu0 %449
    %451 = vadd.xlane.f32.xlu0 %v420
    %v452 = vpop.xlane.xlu0 %451
    %453 = vadd.xlane.f32.xlu0 %v422
    %v454 = vpop.xlane.xlu0 %453
    %455 = vadd.xlane.f32.xlu0 %v424
    %v456 = vpop.xlane.xlu0 %455
    %457 = vadd.xlane.f32.xlu0 %v426
    %v458 = vpop.xlane.xlu0 %457
    %459 = vadd.xlane.f32.xlu0 %v428
    %v460 = vpop.xlane.xlu0 %459
    %461 = vadd.xlane.f32.xlu0 %v430
    %v462 = vpop.xlane.xlu0 %461
    %463 = vadd.xlane.f32.xlu0 %v432
    %v464 = vpop.xlane.xlu0 %463
    %465 = vadd.xlane.f32.xlu0 %v434
    %v466 = vpop.xlane.xlu0 %465
    %467 = vadd.xlane.f32.xlu0 %v436
    %v468 = vpop.xlane.xlu0 %467
    %469 = vadd.xlane.f32.xlu0 %v438
    %v470 = vpop.xlane.xlu0 %469
    %471 = vadd.xlane.f32.xlu0 %v440
    %v472 = vpop.xlane.xlu0 %471
    %473 = vadd.xlane.f32.xlu0 %v442
    %v474 = vpop.xlane.xlu0 %473
    %475 = vadd.xlane.f32.xlu0 %v444
    %v476 = vpop.xlane.xlu0 %475
    %477 = vadd.xlane.f32.xlu0 %v446
    %v478 = vpop.xlane.xlu0 %477
    %v479 = vrcp.pop %v448
    %v480 = vmul.f32 %v127, %v479
    %v481 = vrcp.pop %v450
    %v482 = vmul.f32 %v129, %v481
    %v483 = vrcp.pop %v452
    %v484 = vmul.f32 %v131, %v483
    %v485 = vrcp.pop %v454
    %v486 = vmul.f32 %v133, %v485
    %v487 = vrcp.pop %v456
    %v488 = vmul.f32 %v135, %v487
    %v489 = vrcp.pop %v458
    %v490 = vmul.f32 %v137, %v489
    %v491 = vrcp.pop %v460
    %v492 = vmul.f32 %v139, %v491
    %v493 = vrcp.pop %v462
    %v494 = vmul.f32 %v141, %v493
    %v495 = vrcp.pop %v464
    %v496 = vmul.f32 %v143, %v495
    %v497 = vrcp.pop %v466
    %v498 = vmul.f32 %v145, %v497
    %v499 = vrcp.pop %v468
    %v500 = vmul.f32 %v147, %v499
    %v501 = vrcp.pop %v470
    %v502 = vmul.f32 %v149, %v501
    %v503 = vrcp.pop %v472
    %v504 = vmul.f32 %v151, %v503
    %v505 = vrcp.pop %v474
    %v506 = vmul.f32 %v153, %v505
    %v507 = vrcp.pop %v476
    %v508 = vmul.f32 %v155, %v507
    %v509 = vrcp.pop %v478
    %v510 = vmul.f32 %v157, %v509
    %v511 = vlog2.pop %v480
    %v512 = vmul.f32 %v511, 0.6931472
    %v513 = vlog2.pop %v482
    %v514 = vmul.f32 %v513, 0.6931472
    %v515 = vlog2.pop %v484
    %v516 = vmul.f32 %v515, 0.6931472
    %v517 = vlog2.pop %v486
    %v518 = vmul.f32 %v517, 0.6931472
    %v519 = vlog2.pop %v488
    %v520 = vmul.f32 %v519, 0.6931472
    %v521 = vlog2.pop %v490
    %v522 = vmul.f32 %v521, 0.6931472
    %v523 = vlog2.pop %v492
    %v524 = vmul.f32 %v523, 0.6931472
    %v525 = vlog2.pop %v494
    %v526 = vmul.f32 %v525, 0.6931472
    %v527 = vlog2.pop %v496
    %v528 = vmul.f32 %v527, 0.6931472
    %v529 = vlog2.pop %v498
    %v530 = vmul.f32 %v529, 0.6931472
    %v531 = vlog2.pop %v500
    %v532 = vmul.f32 %v531, 0.6931472
    %v533 = vlog2.pop %v502
    %v534 = vmul.f32 %v533, 0.6931472
    %v535 = vlog2.pop %v504
    %v536 = vmul.f32 %v535, 0.6931472
    %v537 = vlog2.pop %v506
    %v538 = vmul.f32 %v537, 0.6931472
    %v539 = vlog2.pop %v508
    %v540 = vmul.f32 %v539, 0.6931472
    %v541 = vlog2.pop %v510
    %v542 = vmul.f32 %v541, 0.6931472
    %v543 = vsub.f32 0.0, %v512
    %v544 = vsub.f32 0.0, %v514
    %v545 = vsub.f32 0.0, %v516
    %v546 = vsub.f32 0.0, %v518
    %v547 = vsub.f32 0.0, %v520
    %v548 = vsub.f32 0.0, %v522
    %v549 = vsub.f32 0.0, %v524
    %v550 = vsub.f32 0.0, %v526
    %v551 = vsub.f32 0.0, %v528
    %v552 = vsub.f32 0.0, %v530
    %v553 = vsub.f32 0.0, %v532
    %v554 = vsub.f32 0.0, %v534
    %v555 = vsub.f32 0.0, %v536
    %v556 = vsub.f32 0.0, %v538
    %v557 = vsub.f32 0.0, %v540
    %v558 = vsub.f32 0.0, %v542
    %vm559 = vcmask 7168
    %v560 = vsel %vm559, %v543, 0.0
    %v561 = vsel %vm559, %v544, 0.0
    %v562 = vadd.f32 %v560, %v561
    %v563 = vsel %vm559, %v545, 0.0
    %v564 = vadd.f32 %v562, %v563
    %v565 = vsel %vm559, %v546, 0.0
    %v566 = vadd.f32 %v564, %v565
    %v567 = vsel %vm559, %v547, 0.0
    %v568 = vadd.f32 %v566, %v567
    %v569 = vsel %vm559, %v548, 0.0
    %v570 = vadd.f32 %v568, %v569
    %v571 = vsel %vm559, %v549, 0.0
    %v572 = vadd.f32 %v570, %v571
    %v573 = vsel %vm559, %v550, 0.0
    %v574 = vadd.f32 %v572, %v573
    %v575 = vsel %vm559, %v551, 0.0
    %v576 = vadd.f32 %v574, %v575
    %v577 = vsel %vm559, %v552, 0.0
    %v578 = vadd.f32 %v576, %v577
    %v579 = vsel %vm559, %v553, 0.0
    %v580 = vadd.f32 %v578, %v579
    %v581 = vsel %vm559, %v554, 0.0
    %v582 = vadd.f32 %v580, %v581
    %v583 = vsel %vm559, %v555, 0.0
    %v584 = vadd.f32 %v582, %v583
    %v585 = vsel %vm559, %v556, 0.0
    %v586 = vadd.f32 %v584, %v585
    %v587 = vsel %vm559, %v557, 0.0
    %v588 = vadd.f32 %v586, %v587
    %v589 = vsel %vm559, %v558, 0.0
    %v590 = vadd.f32 %v588, %v589
    %591 = vadd.xlane.f32.xlu0 %v590
    %v592 = vpop.xlane.xlu0 %591
    %v593 = vrot.slane %v592, 4
    %v594 = vadd.f32 %v592, %v593
    %v595 = vrot.slane %v594, 2
    %v596 = vadd.f32 %v594, %v595
    %v597 = vrot.slane %v596, 1
    %v598 = vadd.f32 %v596, %v597
    %s599 = vtos %v598
    %v600 = vstv %s599
    %v601 = vrcp.pop 128.0
    %v602 = vmul.f32 %v600, %v601
    %vm603 = vcmask 0
    %604 = vst.msk [vmem:[#allocation2] sm:$0x1] %vm603, %v602
    // Predicated region
    $region10: #{sasrec_forward.11} parent=1 // pred_check
      _
    $region11: #{sasrec_forward.11} parent=1 // pred_check_branch
      %606 = sbr.rel (0) target = $region13
    $region12: #{sasrec_forward.11} parent=1 // pred_region
      %s608 = ssub.s32 16, 16
      %609 = vsyncadd [#allocation3], %s608
      %s611 = sshll.u32 [#allocation2], 4
      %s612 = int_to_ptr.vmem [resolvable:$true] %s611
      %614 = dma.vmem_to_hbm [thread:$0]  %s612, 16, %s2, [#allocation3]
    $region13: #{sasrec_forward.11} parent=1 // pred_fallthru
      _
    // Predicated region
    $region14: #{sasrec_forward.11} parent=1 // pred_check
      _
    $region15: #{sasrec_forward.11} parent=1 // pred_check_branch
      %616 = sbr.rel (0) target = $region17
    $region16: #{sasrec_forward.11} parent=1 // pred_region
      %617 = dma.done [#allocation3], 16
    $region17: #{sasrec_forward.11} parent=1 // pred_fallthru
      _
    %618 = vsyncpa [#allocation3], 1

// kernel: sasrec_forward.10
$region0: #{sasrec_forward.10}
  #allocation0 [shape = 'u32[]', space=smem, size = 0x4, offset = 0x4, fixed_abs, tag = 'smem constant byte address 0x4 - core index']
  #allocation1 [shape = 'u32[144,128]{1,0:T(1,128)}', space=vmem, size = 0x12000, scoped, tag = 'internal scratch']
  %s0 = inlined_call_operand.vmem [shape: f32[2,8,32], index: 0, kind: input, shape index: {}]
  %s1 = inlined_call_operand.vmem [shape: f32[2,8,32], index: 1, kind: input, shape index: {}]
  %s2 = inlined_call_operand.vmem [shape: f32[2,8,32], index: 2, kind: input, shape index: {}]
  %s3 = inlined_call_operand.vmem [shape: f32[2,1,32], index: 3, kind: input, shape index: {}]
  %s4 = inlined_call_operand.vmem [shape: f32[2,1,32], index: 4, kind: input, shape index: {}]
  %s5 = inlined_call_operand.vmem [shape: bf16[2,32,32], index: 5, kind: input, shape index: {}]
  %s6 = inlined_call_operand.vmem [shape: f32[2,1,32], index: 6, kind: input, shape index: {}]
  %s7 = inlined_call_operand.vmem [shape: bf16[2,32,64], index: 7, kind: input, shape index: {}]
  %s8 = inlined_call_operand.vmem [shape: f32[2,1,64], index: 8, kind: input, shape index: {}]
  %s9 = inlined_call_operand.vmem [shape: bf16[2,32,32], index: 9, kind: input, shape index: {}]
  %s10 = inlined_call_operand.vmem [shape: f32[2,1,32], index: 10, kind: input, shape index: {}]
  %s11 = inlined_call_operand.vmem [shape: f32[2,1,32], index: 11, kind: input, shape index: {}]
  %s12 = inlined_call_operand.vmem [shape: f32[2,1,32], index: 12, kind: input, shape index: {}]
  %s13 = inlined_call_operand.vmem [shape: bf16[2,32,32], index: 13, kind: input, shape index: {}]
  %s14 = inlined_call_operand.vmem [shape: f32[2,1,32], index: 14, kind: input, shape index: {}]
  %s15 = inlined_call_operand.vmem [shape: bf16[2,32,32], index: 15, kind: input, shape index: {}]
  %s16 = inlined_call_operand.vmem [shape: f32[2,1,32], index: 16, kind: input, shape index: {}]
  %s17 = inlined_call_operand.vmem [shape: f32[1,32], index: 17, kind: input, shape index: {}]
  %s18 = inlined_call_operand.vmem [shape: f32[1,32], index: 18, kind: input, shape index: {}]
  %s19 = inlined_call_operand.hbm [shape: f32[2,1,8], index: 19, kind: output, shape index: {0}]
  %s20 = inlined_call_operand.hbm [shape: f32[2,1,8], index: 20, kind: output, shape index: {1}]
  %s21 = inlined_call_operand.vmem [shape: f32[2,8,32], index: 21, kind: output, shape index: {2}]
  %s22 = inlined_call_operand.vmem [shape: f32[2,8,32], index: 22, kind: output, shape index: {3}]
  %23 = xla_tuple %s19, %s20, %s21, %s22
  %s24 = sld [smem:[#allocation0]]
  $region117: #{sasrec_forward.10} parent=0
    _
  %s26 = ssub.s32 1, %s24
  %s27 = scalar_select 0, %s26, %s24
  $region1: #{sasrec_forward.10} parent=0
    #allocation2 [shape = 'u8[1024]{0}', space=vmem, size = 0x400, scoped, tag = 'output window, operand 0, single buffered']
    #allocation3 [shape = 's32[1]{0}', space=sflag, size = 0x4, scoped, tag = 'scoped memory for sasrec_forward.10']
    #allocation4 [shape = 'u8[1024]{0}', space=vmem, size = 0x400, scoped, tag = 'output window, operand 1, single buffered']
    #allocation5 [shape = 's32[1]{0}', space=sflag, size = 0x4, scoped, tag = 'scoped memory for sasrec_forward.10']
    %28 = vsyncpa [#allocation3], 0
    %29 = vsyncpa [#allocation5], 0
    // Predicated region
    $region2: #{sasrec_forward.10} parent=1 // pred_check
      _
    $region3: #{sasrec_forward.10} parent=1 // pred_check_branch
      %31 = sbr.rel (0) target = $region5
    $region4: #{sasrec_forward.10} parent=1 // pred_region
      _
    $region5: #{sasrec_forward.10} parent=1 // pred_fallthru
      _
    // Predicated region
    $region6: #{sasrec_forward.10} parent=1 // pred_check
      _
    $region7: #{sasrec_forward.10} parent=1 // pred_check_branch
      %33 = sbr.rel (0) target = $region9
    $region8: #{sasrec_forward.10} parent=1 // pred_region
      _
    $region9: #{sasrec_forward.10} parent=1 // pred_fallthru
      _
    // Predicated region
    $region10: #{sasrec_forward.10} parent=1 // pred_check
      _
    $region11: #{sasrec_forward.10} parent=1 // pred_check_branch
      %35 = sbr.rel (0) target = $region13
    $region12: #{sasrec_forward.10} parent=1 // pred_region
      _
    $region13: #{sasrec_forward.10} parent=1 // pred_fallthru
      _
    // Predicated region
    $region14: #{sasrec_forward.10} parent=1 // pred_check
      _
    $region15: #{sasrec_forward.10} parent=1 // pred_check_branch
      %37 = sbr.rel (0) target = $region17
    $region16: #{sasrec_forward.10} parent=1 // pred_region
      _
    $region17: #{sasrec_forward.10} parent=1 // pred_fallthru
      _
    // Predicated region
    $region18: #{sasrec_forward.10} parent=1 // pred_check
      _
    $region19: #{sasrec_forward.10} parent=1 // pred_check_branch
      %39 = sbr.rel (0) target = $region21
    $region20: #{sasrec_forward.10} parent=1 // pred_region
      _
    $region21: #{sasrec_forward.10} parent=1 // pred_fallthru
      _
    // Predicated region
    $region22: #{sasrec_forward.10} parent=1 // pred_check
      _
    $region23: #{sasrec_forward.10} parent=1 // pred_check_branch
      %41 = sbr.rel (0) target = $region25
    $region24: #{sasrec_forward.10} parent=1 // pred_region
      _
    $region25: #{sasrec_forward.10} parent=1 // pred_fallthru
      _
    // Predicated region
    $region26: #{sasrec_forward.10} parent=1 // pred_check
      _
    $region27: #{sasrec_forward.10} parent=1 // pred_check_branch
      %43 = sbr.rel (0) target = $region29
    $region28: #{sasrec_forward.10} parent=1 // pred_region
      _
    $region29: #{sasrec_forward.10} parent=1 // pred_fallthru
      _
    // Predicated region
    $region30: #{sasrec_forward.10} parent=1 // pred_check
      _
    $region31: #{sasrec_forward.10} parent=1 // pred_check_branch
      %45 = sbr.rel (0) target = $region33
    $region32: #{sasrec_forward.10} parent=1 // pred_region
      _
    $region33: #{sasrec_forward.10} parent=1 // pred_fallthru
      _
    // Predicated region
    $region34: #{sasrec_forward.10} parent=1 // pred_check
      _
    $region35: #{sasrec_forward.10} parent=1 // pred_check_branch
      %47 = sbr.rel (0) target = $region37
    $region36: #{sasrec_forward.10} parent=1 // pred_region
      _
    $region37: #{sasrec_forward.10} parent=1 // pred_fallthru
      _
    // Predicated region
    $region38: #{sasrec_forward.10} parent=1 // pred_check
      _
    $region39: #{sasrec_forward.10} parent=1 // pred_check_branch
      %49 = sbr.rel (0) target = $region41
    $region40: #{sasrec_forward.10} parent=1 // pred_region
      _
    $region41: #{sasrec_forward.10} parent=1 // pred_fallthru
      _
    // Predicated region
    $region42: #{sasrec_forward.10} parent=1 // pred_check
      _
    $region43: #{sasrec_forward.10} parent=1 // pred_check_branch
      %51 = sbr.rel (0) target = $region45
    $region44: #{sasrec_forward.10} parent=1 // pred_region
      _
    $region45: #{sasrec_forward.10} parent=1 // pred_fallthru
      _
    // Predicated region
    $region46: #{sasrec_forward.10} parent=1 // pred_check
      _
    $region47: #{sasrec_forward.10} parent=1 // pred_check_branch
      %53 = sbr.rel (0) target = $region49
    $region48: #{sasrec_forward.10} parent=1 // pred_region
      _
    $region49: #{sasrec_forward.10} parent=1 // pred_fallthru
      _
    // Predicated region
    $region50: #{sasrec_forward.10} parent=1 // pred_check
      _
    $region51: #{sasrec_forward.10} parent=1 // pred_check_branch
      %55 = sbr.rel (0) target = $region53
    $region52: #{sasrec_forward.10} parent=1 // pred_region
      _
    $region53: #{sasrec_forward.10} parent=1 // pred_fallthru
      _
    // Predicated region
    $region54: #{sasrec_forward.10} parent=1 // pred_check
      _
    $region55: #{sasrec_forward.10} parent=1 // pred_check_branch
      %57 = sbr.rel (0) target = $region57
    $region56: #{sasrec_forward.10} parent=1 // pred_region
      _
    $region57: #{sasrec_forward.10} parent=1 // pred_fallthru
      _
    // Predicated region
    $region58: #{sasrec_forward.10} parent=1 // pred_check
      _
    $region59: #{sasrec_forward.10} parent=1 // pred_check_branch
      %59 = sbr.rel (0) target = $region61
    $region60: #{sasrec_forward.10} parent=1 // pred_region
      _
    $region61: #{sasrec_forward.10} parent=1 // pred_fallthru
      _
    // Predicated region
    $region62: #{sasrec_forward.10} parent=1 // pred_check
      _
    $region63: #{sasrec_forward.10} parent=1 // pred_check_branch
      %61 = sbr.rel (0) target = $region65
    $region64: #{sasrec_forward.10} parent=1 // pred_region
      _
    $region65: #{sasrec_forward.10} parent=1 // pred_fallthru
      _
    // Predicated region
    $region66: #{sasrec_forward.10} parent=1 // pred_check
      _
    $region67: #{sasrec_forward.10} parent=1 // pred_check_branch
      %63 = sbr.rel (0) target = $region69
    $region68: #{sasrec_forward.10} parent=1 // pred_region
      _
    $region69: #{sasrec_forward.10} parent=1 // pred_fallthru
      _
    // Predicated region
    $region70: #{sasrec_forward.10} parent=1 // pred_check
      _
    $region71: #{sasrec_forward.10} parent=1 // pred_check_branch
      %65 = sbr.rel (0) target = $region73
    $region72: #{sasrec_forward.10} parent=1 // pred_region
      _
    $region73: #{sasrec_forward.10} parent=1 // pred_fallthru
      _
    // Predicated region
    $region74: #{sasrec_forward.10} parent=1 // pred_check
      _
    $region75: #{sasrec_forward.10} parent=1 // pred_check_branch
      %67 = sbr.rel (0) target = $region77
    $region76: #{sasrec_forward.10} parent=1 // pred_region
      _
    $region77: #{sasrec_forward.10} parent=1 // pred_fallthru
      _
    %v69 = vld [vmem:[%s17] sm:$0x1]
    %v70 = vld [vmem:[%s18] sm:$0x1]
    %v71 = vld [vmem:[%s0] sm:$0xff]
    %v72 = vld [vmem:[%s0 + $0x8] sm:$0xff]
    %vm73 = vcmask 261120
    %v74 = vsel %vm73, %v71, 0.0
    %75 = vadd.xlane.f32.xlu0 %v74
    %v76 = vpop.xlane.xlu0 %75
    %v77 = vsel %vm73, %v72, 0.0
    %78 = vadd.xlane.f32.xlu0 %v77
    %v79 = vpop.xlane.xlu0 %78
    %v80 = vrcp.pop 32.0
    %v81 = vmul.f32 %v76, %v80
    %v82 = vmul.f32 %v79, %v80
    %v83 = vsub.f32 %v71, %v81
    %v84 = vsub.f32 %v72, %v82
    %v85 = vmul.f32 %v83, %v83
    %v86 = vmul.f32 %v84, %v84
    %v87 = vsel %vm73, %v85, 0.0
    %88 = vadd.xlane.f32.xlu0 %v87
    %v89 = vpop.xlane.xlu0 %88
    %v90 = vsel %vm73, %v86, 0.0
    %91 = vadd.xlane.f32.xlu0 %v90
    %v92 = vpop.xlane.xlu0 %91
    %v93 = vmul.f32 %v89, %v80
    %v94 = vmul.f32 %v92, %v80
    %v95 = vadd.f32 %v93, 1e-08
    %v96 = vadd.f32 %v94, 1e-08
    %v97 = vrsqrt.pop %v95
    %v98 = vrsqrt.pop %v96
    %v99 = vmul.f32 %v83, %v97
    %v100 = vmul.f32 %v84, %v98
    %v102 = vlaneseq
    %v103 = vshrl.u32 %v102, 7
    %v104 = vsub.s32 0, %v103
    %v105 = vrot.slane %v69, %v104
    %v107 = vmul.f32 %v99, %v105
    %v108 = vmul.f32 %v100, %v105
    %v110 = vlaneseq
    %v111 = vshrl.u32 %v110, 7
    %v112 = vsub.s32 0, %v111
    %v113 = vrot.slane %v70, %v112
    %v115 = vadd.f32 %v107, %v113
    %v116 = vadd.f32 %v108, %v113
    %v117 = vmul.f32 %v115, %v115
    %v118 = vmul.f32 %v116, %v116
    %v119 = vsel %vm73, %v117, 0.0
    %120 = vadd.xlane.f32.xlu0 %v119
    %v121 = vpop.xlane.xlu0 %120
    %v122 = vsel %vm73, %v118, 0.0
    %123 = vadd.xlane.f32.xlu0 %v122
    %v124 = vpop.xlane.xlu0 %123
    %v125 = vrsqrt.pop %v121
    %v126 = vmul.f32 %v121, %v125
    %vm127 = vcmp.eq.f32.partialorder %v121, inf
    %v128 = vsel %vm127, %v121, %v126
    %vm129 = vcmp.eq.f32.partialorder %v121, 0.0
    %v130 = vand.u32 %v121, 2147483648
    %v131 = vsel %vm129, %v130, %v128
    %v132 = vrsqrt.pop %v124
    %v133 = vmul.f32 %v124, %v132
    %vm134 = vcmp.eq.f32.partialorder %v124, inf
    %v135 = vsel %vm134, %v124, %v133
    %vm136 = vcmp.eq.f32.partialorder %v124, 0.0
    %v137 = vand.u32 %v124, 2147483648
    %v138 = vsel %vm136, %v137, %v135
    %v139 = vmax.f32 %v131, 1e-12
    %v140 = vmax.f32 %v138, 1e-12
    %v141 = vrcp.pop %v139
    %v142 = vmul.f32 %v115, %v141
    %v143 = vrcp.pop %v140
    %v144 = vmul.f32 %v116, %v143
    %145 = vst.msk [vmem:[%s22] sm:$0xff] %vm73, %v142
    %146 = vst.msk [vmem:[%s22 + $0x8] sm:$0xff] %vm73, %v144
    %v147 = vlaneseq
    %v148 = vshrl.u32 %v147, 7
    %v149 = vlaneseq
    %v150 = vand.u32 %v149, 127
    %vm151 = vcmp.gt.s32.totalorder %v150, %v148
    %v152 = vsel %vm151, -1e+30, 0.0
    loop: start=0, step=1, limit=2
    $region78: #{sasrec_forward.10} parent=1 // loop_pre_header
      _
    $region79: #{sasrec_forward.10} parent=1 // loop_header
      %s154 = sphi 0, %s158
      %p155 = scmp.ge.s32.totalorder %s154, 2
      %v159 = vphi %v71, %v1113
      %v160 = vphi %v72, %v1114
    $region80: #{sasrec_forward.10} parent=1 // loop_header_branch
      %157 = sbr.rel (%p155) target = $region84
    $region81: #{sasrec_forward.10} parent=1 // loop_body
      %s161 = scalar_lea.vmem %s3, %s154
      %v162 = vld [vmem:[%s161] sm:$0x1]
      %s163 = scalar_lea.vmem %s4, %s154
      %v164 = vld [vmem:[%s163] sm:$0x1]
      %v165 = vsel %vm73, %v159, 0.0
      %166 = vadd.xlane.f32.xlu0 %v165
      %v167 = vpop.xlane.xlu0 %166
      %v168 = vsel %vm73, %v160, 0.0
      %169 = vadd.xlane.f32.xlu0 %v168
      %v170 = vpop.xlane.xlu0 %169
      %v171 = vmul.f32 %v167, %v80
      %v172 = vmul.f32 %v170, %v80
      %v173 = vsub.f32 %v159, %v171
      %v174 = vsub.f32 %v160, %v172
      %v175 = vmul.f32 %v173, %v173
      %v176 = vmul.f32 %v174, %v174
      %v177 = vsel %vm73, %v175, 0.0
      %178 = vadd.xlane.f32.xlu0 %v177
      %v179 = vpop.xlane.xlu0 %178
      %v180 = vsel %vm73, %v176, 0.0
      %181 = vadd.xlane.f32.xlu0 %v180
      %v182 = vpop.xlane.xlu0 %181
      %v183 = vmul.f32 %v179, %v80
      %v184 = vmul.f32 %v182, %v80
      %v185 = vadd.f32 %v183, 1e-08
      %v186 = vadd.f32 %v184, 1e-08
      %v187 = vrsqrt.pop %v185
      %v188 = vrsqrt.pop %v186
      %v189 = vmul.f32 %v173, %v187
      %v190 = vmul.f32 %v174, %v188
      %v192 = vlaneseq
      %v193 = vshrl.u32 %v192, 7
      %v194 = vsub.s32 0, %v193
      %v195 = vrot.slane %v162, %v194
      %v197 = vmul.f32 %v189, %v195
      %v198 = vmul.f32 %v190, %v195
      %v200 = vlaneseq
      %v201 = vshrl.u32 %v200, 7
      %v202 = vsub.s32 0, %v201
      %v203 = vrot.slane %v164, %v202
      %v205 = vadd.f32 %v197, %v203
      %v206 = vadd.f32 %v198, %v203
      %v207 = vpack.c.bf16 %v206, %v205
      %s208 = smul.u32 %s154, 4
      %s209 = smul.addr %s208, 4
      %s210 = scalar_lea.vmem %s5, %s209
      %v211 = vld [vmem:[%s210] sm:$0xf]
      %v212 = vld [vmem:[%s210 + $0x4] sm:$0xf]
      %v213 = vld [vmem:[%s210 + $0x8] sm:$0xf]
      %v214 = vld [vmem:[%s210 + $0xc] sm:$0xf]
      %s215 = scalar_lea.vmem %s6, %s154
      %v216 = vld [vmem:[%s215] sm:$0x1]
      %v218 = vlaneseq
      %v219 = vshrl.u32 %v218, 7
      %v220 = vsub.s32 0, %v219
      %v221 = vrot.slane %v216, %v220
      %v227 = vunpack.c.l.b16 %v211
      %v228 = vunpack.c.l.b16 %v212
      %v229 = vunpack.c.l.b16 %v213
      %v230 = vunpack.c.l.b16 %v214
      %v231 = vpack.c.b16 %v228, %v227
      %v232 = vpack.c.b16 %v230, %v229
      %v236 = vsel %vm73, %v207, 0
      %238 = vmatprep.subr.bf16.mxu0 0
      %239 = vmatpush1.bf16.msra.mxu0 %v231
      %240 = vmatprep.subr.bf16.mxu0 0
      %241 = vmatpush1.bf16.msra.mxu0 %v232
      %242 = vmatprep.subr.bf16.mxu0 0
      %243 = vmatpush1.bf16.msra.mxu0 0
      %244 = vmatprep.subr.bf16.mxu0 0
      %245 = vmatpush1.bf16.msra.mxu0 0
      %246 = vmatprep.subr.bf16.mxu0 0
      %247 = vmatpush1.bf16.msra.mxu0 0
      %248 = vmatprep.subr.bf16.mxu0 0
      %249 = vmatpush1.bf16.msra.mxu0 0
      %250 = vmatprep.subr.bf16.mxu0 0
      %251 = vmatpush1.bf16.msra.mxu0 0
      %252 = vmatprep.subr.bf16.mxu0 0
      %253 = vmatpush1.bf16.msra.mxu0 0
      %254 = vmatprep.subr.bf16.mxu0 0
      %255 = vmatpush1.bf16.msra.mxu0 0
      %256 = vmatprep.subr.bf16.mxu0 0
      %257 = vmatpush1.bf16.msra.mxu0 0
      %258 = vmatprep.subr.bf16.mxu0 0
      %259 = vmatpush1.bf16.msra.mxu0 0
      %260 = vmatprep.subr.bf16.mxu0 0
      %261 = vmatpush1.bf16.msra.mxu0 0
      %262 = vmatprep.subr.bf16.mxu0 0
      %263 = vmatpush1.bf16.msra.mxu0 0
      %264 = vmatprep.subr.bf16.mxu0 0
      %265 = vmatpush1.bf16.msra.mxu0 0
      %266 = vmatprep.subr.bf16.mxu0 0
      %267 = vmatpush1.bf16.msra.mxu0 0
      %268 = vmatprep.subr.bf16.mxu0 0
      %269 = vmatpush1.bf16.msra.mxu0 0
      %270 = vmatprep.mubr.bf16.mxu0 0
      %271 = vmatmul.mubr.bf16.gmra.mrb[0].mxu0 %v236
      %v272 = vpop.f32.mrb[0].mxu0
      %v273 = vadd.f32 %v221, %v272
      %v274 = vpop.f32.mrb[0].mxu0
      %v275 = vpop.f32.mrb[0].mxu0
      %v276 = vadd.f32 %v221, %v275
      %v277 = vpop.f32.mrb[0].mxu0
      %278 = vdwg.mxu0
      %v279 = vpack.c.bf16 %v160, %v159
      %s280 = smul.addr %s208, 4
      %s281 = scalar_lea.vmem %s7, %s280
      %v282 = vld [vmem:[%s281] sm:$0xf]
      %v283 = vld [vmem:[%s281 + $0x4] sm:$0xf]
      %v284 = vld [vmem:[%s281 + $0x8] sm:$0xf]
      %v285 = vld [vmem:[%s281 + $0xc] sm:$0xf]
      %s286 = scalar_lea.vmem %s8, %s154
      %v287 = vld [vmem:[%s286] sm:$0x1]
      %v289 = vlaneseq
      %v290 = vshrl.u32 %v289, 7
      %v291 = vsub.s32 0, %v290
      %v292 = vrot.slane %v287, %v291
      %v298 = vunpack.c.l.b16 %v282
      %v299 = vunpack.c.l.b16 %v283
      %v300 = vunpack.c.l.b16 %v284
      %v301 = vunpack.c.l.b16 %v285
      %v302 = vpack.c.b16 %v299, %v298
      %v303 = vpack.c.b16 %v301, %v300
      %v307 = vsel %vm73, %v279, 0
      %309 = vmatprep.subr.bf16.mxu0 0
      %310 = vmatpush1.bf16.msra.mxu0 %v302
      %311 = vmatprep.subr.bf16.mxu0 0
      %312 = vmatpush1.bf16.msra.mxu0 %v303
      %313 = vmatprep.subr.bf16.mxu0 0
      %314 = vmatpush1.bf16.msra.mxu0 0
      %315 = vmatprep.subr.bf16.mxu0 0
      %316 = vmatpush1.bf16.msra.mxu0 0
      %317 = vmatprep.subr.bf16.mxu0 0
      %318 = vmatpush1.bf16.msra.mxu0 0
      %319 = vmatprep.subr.bf16.mxu0 0
      %320 = vmatpush1.bf16.msra.mxu0 0
      %321 = vmatprep.subr.bf16.mxu0 0
      %322 = vmatpush1.bf16.msra.mxu0 0
      %323 = vmatprep.subr.bf16.mxu0 0
      %324 = vmatpush1.bf16.msra.mxu0 0
      %325 = vmatprep.subr.bf16.mxu0 0
      %326 = vmatpush1.bf16.msra.mxu0 0
      %327 = vmatprep.subr.bf16.mxu0 0
      %328 = vmatpush1.bf16.msra.mxu0 0
      %329 = vmatprep.subr.bf16.mxu0 0
      %330 = vmatpush1.bf16.msra.mxu0 0
      %331 = vmatprep.subr.bf16.mxu0 0
      %332 = vmatpush1.bf16.msra.mxu0 0
      %333 = vmatprep.subr.bf16.mxu0 0
      %334 = vmatpush1.bf16.msra.mxu0 0
      %335 = vmatprep.subr.bf16.mxu0 0
      %336 = vmatpush1.bf16.msra.mxu0 0
      %337 = vmatprep.subr.bf16.mxu0 0
      %338 = vmatpush1.bf16.msra.mxu0 0
      %339 = vmatprep.subr.bf16.mxu0 0
      %340 = vmatpush1.bf16.msra.mxu0 0
      %341 = vmatprep.mubr.bf16.mxu0 0
      %342 = vmatmul.mubr.bf16.gmra.mrb[0].mxu0 %v307
      %v343 = vpop.f32.mrb[0].mxu0
      %v344 = vadd.f32 %v292, %v343
      %v345 = vpop.f32.mrb[0].mxu0
      %v346 = vpop.f32.mrb[0].mxu0
      %v347 = vadd.f32 %v292, %v346
      %v348 = vpop.f32.mrb[0].mxu0
      %349 = vdwg.mxu0
      %v350 = vpack.c.bf16 %v273, %v273
      %v351 = vpack.c.bf16 %v276, %v276
      %v352 = vpack.c.bf16 %v344, %v344
      %v353 = vpack.c.bf16 %v347, %v347
      %s354 = smul.addr %s208, 4
      %s355 = scalar_lea.vmem %s9, %s354
      %v356 = vld [vmem:[%s355] sm:$0xf]
      %v357 = vld [vmem:[%s355 + $0x4] sm:$0xf]
      %v358 = vld [vmem:[%s355 + $0x8] sm:$0xf]
      %v359 = vld [vmem:[%s355 + $0xc] sm:$0xf]
      %vm360 = vcmask 130048
      %v362 = vsel %vm360, %v350, 0
      %v365 = vsel %vm360, %v352, 0
      %367 = vmatprep.subr.bf16.mxu0 0
      %368 = vmatpush1.bf16.xpose.msra.mxu0 %v365
      %369 = vmatprep.subr.bf16.mxu0 0
      %370 = vmatpush1.bf16.xpose.msra.mxu0 0
      %371 = vmatprep.subr.bf16.mxu0 0
      %372 = vmatpush1.bf16.xpose.msra.mxu0 0
      %373 = vmatprep.subr.bf16.mxu0 0
      %374 = vmatpush1.bf16.xpose.msra.mxu0 0
      %375 = vmatprep.subr.bf16.mxu0 0
      %376 = vmatpush1.bf16.xpose.msra.mxu0 0
      %377 = vmatprep.subr.bf16.mxu0 0
      %378 = vmatpush1.bf16.xpose.msra.mxu0 0
      %379 = vmatprep.subr.bf16.mxu0 0
      %380 = vmatpush1.bf16.xpose.msra.mxu0 0
      %381 = vmatprep.subr.bf16.mxu0 0
      %382 = vmatpush1.bf16.xpose.msra.mxu0 0
      %383 = vmatprep.subr.bf16.mxu0 0
      %384 = vmatpush1.bf16.xpose.msra.mxu0 0
      %385 = vmatprep.subr.bf16.mxu0 0
      %386 = vmatpush1.bf16.xpose.msra.mxu0 0
      %387 = vmatprep.subr.bf16.mxu0 0
      %388 = vmatpush1.bf16.xpose.msra.mxu0 0
      %389 = vmatprep.subr.bf16.mxu0 0
      %390 = vmatpush1.bf16.xpose.msra.mxu0 0
      %391 = vmatprep.subr.bf16.mxu0 0
      %392 = vmatpush1.bf16.xpose.msra.mxu0 0
      %393 = vmatprep.subr.bf16.mxu0 0
      %394 = vmatpush1.bf16.xpose.msra.mxu0 0
      %395 = vmatprep.subr.bf16.mxu0 0
      %396 = vmatpush1.bf16.xpose.msra.mxu0 0
      %397 = vmatprep.subr.bf16.mxu0 0
      %398 = vmatpush1.bf16.xpose.msra.mxu0 0
      %399 = vmatprep.mubr.bf16.mxu0 0
      %400 = vmatmul.mubr.bf16.gmra.mrb[0].mxu0 %v362
      %v401 = vpop.f32.mrb[0].mxu0
      %v402 = vadd.f32 0.0, %v401
      %v403 = vpop.f32.mrb[0].mxu0
      %v404 = vpop.f32.mrb[0].mxu0
      %v405 = vpop.f32.mrb[0].mxu0
      %406 = vdwg.mxu0
      %v408 = vsel %vm360, %v351, 0
      %v411 = vsel %vm360, %v353, 0
      %413 = vmatprep.subr.bf16.mxu0 0
      %414 = vmatpush1.bf16.xpose.msra.mxu0 %v411
      %415 = vmatprep.subr.bf16.mxu0 0
      %416 = vmatpush1.bf16.xpose.msra.mxu0 0
      %417 = vmatprep.subr.bf16.mxu0 0
      %418 = vmatpush1.bf16.xpose.msra.mxu0 0
      %419 = vmatprep.subr.bf16.mxu0 0
      %420 = vmatpush1.bf16.xpose.msra.mxu0 0
      %421 = vmatprep.subr.bf16.mxu0 0
      %422 = vmatpush1.bf16.xpose.msra.mxu0 0
      %423 = vmatprep.subr.bf16.mxu0 0
      %424 = vmatpush1.bf16.xpose.msra.mxu0 0
      %425 = vmatprep.subr.bf16.mxu0 0
      %426 = vmatpush1.bf16.xpose.msra.mxu0 0
      %427 = vmatprep.subr.bf16.mxu0 0
      %428 = vmatpush1.bf16.xpose.msra.mxu0 0
      %429 = vmatprep.subr.bf16.mxu0 0
      %430 = vmatpush1.bf16.xpose.msra.mxu0 0
      %431 = vmatprep.subr.bf16.mxu0 0
      %432 = vmatpush1.bf16.xpose.msra.mxu0 0
      %433 = vmatprep.subr.bf16.mxu0 0
      %434 = vmatpush1.bf16.xpose.msra.mxu0 0
      %435 = vmatprep.subr.bf16.mxu0 0
      %436 = vmatpush1.bf16.xpose.msra.mxu0 0
      %437 = vmatprep.subr.bf16.mxu0 0
      %438 = vmatpush1.bf16.xpose.msra.mxu0 0
      %439 = vmatprep.subr.bf16.mxu0 0
      %440 = vmatpush1.bf16.xpose.msra.mxu0 0
      %441 = vmatprep.subr.bf16.mxu0 0
      %442 = vmatpush1.bf16.xpose.msra.mxu0 0
      %443 = vmatprep.subr.bf16.mxu0 0
      %444 = vmatpush1.bf16.xpose.msra.mxu0 0
      %445 = vmatprep.mubr.bf16.mxu0 0
      %446 = vmatmul.mubr.bf16.gmra.mrb[0].mxu0 %v408
      %v447 = vpop.f32.mrb[0].mxu0
      %v448 = vadd.f32 0.0, %v447
      %v449 = vpop.f32.mrb[0].mxu0
      %v450 = vpop.f32.mrb[0].mxu0
      %v451 = vpop.f32.mrb[0].mxu0
      %452 = vdwg.mxu0
      %v453 = vmul.f32 %v402, 0.25
      %v454 = vmul.f32 %v448, 0.25
      %v455 = vadd.f32 %v453, %v152
      %v456 = vadd.f32 %v454, %v152
      %vm457 = vcmask 64512
      %v458 = vsel %vm457, %v455, -inf
      %459 = vmax.xlane.f32.xlu0 %v458
      %v460 = vpop.xlane.xlu0 %459
      %v461 = vsel %vm457, %v456, -inf
      %462 = vmax.xlane.f32.xlu0 %v461
      %v463 = vpop.xlane.xlu0 %462
      %v464 = vsub.f32 %v455, %v460
      %v465 = vsub.f32 %v456, %v463
      %v466 = vmul.f32 %v464, 1.442695
      %v467 = vpow.pop %v466
      %v468 = vmul.f32 %v465, 1.442695
      %v469 = vpow.pop %v468
      %v470 = vsel %vm457, %v467, 0.0
      %471 = vadd.xlane.f32.xlu0 %v470
      %v472 = vpop.xlane.xlu0 %471
      %v473 = vsel %vm457, %v469, 0.0
      %474 = vadd.xlane.f32.xlu0 %v473
      %v475 = vpop.xlane.xlu0 %474
      %v476 = vrcp.pop %v472
      %v477 = vmul.f32 %v467, %v476
      %v478 = vrcp.pop %v475
      %v479 = vmul.f32 %v469, %v478
      %v480 = vpack.c.bf16 %v477, %v477
      %v481 = vpack.c.bf16 %v479, %v479
      %483 = vrot.lane.b32.xlu0 %v352, 96
      %v484 = vpop.permute.xlu0 %483
      %v486 = vsel %vm457, %v480, 0
      %vm488 = vcmask 1043456
      %v490 = vsel %vm488, %v484, 0
      %492 = vmatprep.subr.bf16.mxu0 0
      %493 = vmatpush1.bf16.msra.mxu0 %v490
      %494 = vmatprep.subr.bf16.mxu0 0
      %495 = vmatpush1.bf16.msra.mxu0 0
      %496 = vmatprep.subr.bf16.mxu0 0
      %497 = vmatpush1.bf16.msra.mxu0 0
      %498 = vmatprep.subr.bf16.mxu0 0
      %499 = vmatpush1.bf16.msra.mxu0 0
      %500 = vmatprep.subr.bf16.mxu0 0
      %501 = vmatpush1.bf16.msra.mxu0 0
      %502 = vmatprep.subr.bf16.mxu0 0
      %503 = vmatpush1.bf16.msra.mxu0 0
      %504 = vmatprep.subr.bf16.mxu0 0
      %505 = vmatpush1.bf16.msra.mxu0 0
      %506 = vmatprep.subr.bf16.mxu0 0
      %507 = vmatpush1.bf16.msra.mxu0 0
      %508 = vmatprep.subr.bf16.mxu0 0
      %509 = vmatpush1.bf16.msra.mxu0 0
      %510 = vmatprep.subr.bf16.mxu0 0
      %511 = vmatpush1.bf16.msra.mxu0 0
      %512 = vmatprep.subr.bf16.mxu0 0
      %513 = vmatpush1.bf16.msra.mxu0 0
      %514 = vmatprep.subr.bf16.mxu0 0
      %515 = vmatpush1.bf16.msra.mxu0 0
      %516 = vmatprep.subr.bf16.mxu0 0
      %517 = vmatpush1.bf16.msra.mxu0 0
      %518 = vmatprep.subr.bf16.mxu0 0
      %519 = vmatpush1.bf16.msra.mxu0 0
      %520 = vmatprep.subr.bf16.mxu0 0
      %521 = vmatpush1.bf16.msra.mxu0 0
      %522 = vmatprep.subr.bf16.mxu0 0
      %523 = vmatpush1.bf16.msra.mxu0 0
      %524 = vmatprep.mubr.bf16.mxu0 0
      %525 = vmatmul.mubr.bf16.gmra.mrb[0].mxu0 %v486
      %v526 = vpop.f32.mrb[0].mxu0
      %v527 = vadd.f32 0.0, %v526
      %v528 = vpop.f32.mrb[0].mxu0
      %v529 = vpop.f32.mrb[0].mxu0
      %v530 = vpop.f32.mrb[0].mxu0
      %531 = vdwg.mxu0
      %533 = vrot.lane.b32.xlu0 %v353, 96
      %v534 = vpop.permute.xlu0 %533
      %v536 = vsel %vm457, %v481, 0
      %v539 = vsel %vm488, %v534, 0
      %541 = vmatprep.subr.bf16.mxu0 0
      %542 = vmatpush1.bf16.msra.mxu0 %v539
      %543 = vmatprep.subr.bf16.mxu0 0
      %544 = vmatpush1.bf16.msra.mxu0 0
      %545 = vmatprep.subr.bf16.mxu0 0
      %546 = vmatpush1.bf16.msra.mxu0 0
      %547 = vmatprep.subr.bf16.mxu0 0
      %548 = vmatpush1.bf16.msra.mxu0 0
      %549 = vmatprep.subr.bf16.mxu0 0
      %550 = vmatpush1.bf16.msra.mxu0 0
      %551 = vmatprep.subr.bf16.mxu0 0
      %552 = vmatpush1.bf16.msra.mxu0 0
      %553 = vmatprep.subr.bf16.mxu0 0
      %554 = vmatpush1.bf16.msra.mxu0 0
      %555 = vmatprep.subr.bf16.mxu0 0
      %556 = vmatpush1.bf16.msra.mxu0 0
      %557 = vmatprep.subr.bf16.mxu0 0
      %558 = vmatpush1.bf16.msra.mxu0 0
      %559 = vmatprep.subr.bf16.mxu0 0
      %560 = vmatpush1.bf16.msra.mxu0 0
      %561 = vmatprep.subr.bf16.mxu0 0
      %562 = vmatpush1.bf16.msra.mxu0 0
      %563 = vmatprep.subr.bf16.mxu0 0
      %564 = vmatpush1.bf16.msra.mxu0 0
      %565 = vmatprep.subr.bf16.mxu0 0
      %566 = vmatpush1.bf16.msra.mxu0 0
      %567 = vmatprep.subr.bf16.mxu0 0
      %568 = vmatpush1.bf16.msra.mxu0 0
      %569 = vmatprep.subr.bf16.mxu0 0
      %570 = vmatpush1.bf16.msra.mxu0 0
      %571 = vmatprep.subr.bf16.mxu0 0
      %572 = vmatpush1.bf16.msra.mxu0 0
      %573 = vmatprep.mubr.bf16.mxu0 0
      %574 = vmatmul.mubr.bf16.gmra.mrb[0].mxu0 %v536
      %v575 = vpop.f32.mrb[0].mxu0
      %v576 = vadd.f32 0.0, %v575
      %v577 = vpop.f32.mrb[0].mxu0
      %v578 = vpop.f32.mrb[0].mxu0
      %v579 = vpop.f32.mrb[0].mxu0
      %580 = vdwg.mxu0
      %v581 = vpack.c.bf16 %v576, %v527
      %583 = vrot.lane.b32.xlu0 %v350, 112
      %v584 = vpop.permute.xlu0 %583
      %585 = vrot.lane.b32.xlu0 %v352, 112
      %v586 = vpop.permute.xlu0 %585
      %v588 = vsel %vm360, %v584, 0
      %v591 = vsel %vm360, %v586, 0
      %593 = vmatprep.subr.bf16.mxu0 0
      %594 = vmatpush1.bf16.xpose.msra.mxu0 %v591
      %595 = vmatprep.subr.bf16.mxu0 0
      %596 = vmatpush1.bf16.xpose.msra.mxu0 0
      %597 = vmatprep.subr.bf16.mxu0 0
      %598 = vmatpush1.bf16.xpose.msra.mxu0 0
      %599 = vmatprep.subr.bf16.mxu0 0
      %600 = vmatpush1.bf16.xpose.msra.mxu0 0
      %601 = vmatprep.subr.bf16.mxu0 0
      %602 = vmatpush1.bf16.xpose.msra.mxu0 0
      %603 = vmatprep.subr.bf16.mxu0 0
      %604 = vmatpush1.bf16.xpose.msra.mxu0 0
      %605 = vmatprep.subr.bf16.mxu0 0
      %606 = vmatpush1.bf16.xpose.msra.mxu0 0
      %607 = vmatprep.subr.bf16.mxu0 0
      %608 = vmatpush1.bf16.xpose.msra.mxu0 0
      %609 = vmatprep.subr.bf16.mxu0 0
      %610 = vmatpush1.bf16.xpose.msra.mxu0 0
      %611 = vmatprep.subr.bf16.mxu0 0
      %612 = vmatpush1.bf16.xpose.msra.mxu0 0
      %613 = vmatprep.subr.bf16.mxu0 0
      %614 = vmatpush1.bf16.xpose.msra.mxu0 0
      %615 = vmatprep.subr.bf16.mxu0 0
      %616 = vmatpush1.bf16.xpose.msra.mxu0 0
      %617 = vmatprep.subr.bf16.mxu0 0
      %618 = vmatpush1.bf16.xpose.msra.mxu0 0
      %619 = vmatprep.subr.bf16.mxu0 0
      %620 = vmatpush1.bf16.xpose.msra.mxu0 0
      %621 = vmatprep.subr.bf16.mxu0 0
      %622 = vmatpush1.bf16.xpose.msra.mxu0 0
      %623 = vmatprep.subr.bf16.mxu0 0
      %624 = vmatpush1.bf16.xpose.msra.mxu0 0
      %625 = vmatprep.mubr.bf16.mxu0 0
      %626 = vmatmul.mubr.bf16.gmra.mrb[0].mxu0 %v588
      %v627 = vpop.f32.mrb[0].mxu0
      %v628 = vadd.f32 0.0, %v627
      %v629 = vpop.f32.mrb[0].mxu0
      %v630 = vpop.f32.mrb[0].mxu0
      %v631 = vpop.f32.mrb[0].mxu0
      %632 = vdwg.mxu0
      %634 = vrot.lane.b32.xlu0 %v351, 112
      %v635 = vpop.permute.xlu0 %634
      %636 = vrot.lane.b32.xlu0 %v353, 112
      %v637 = vpop.permute.xlu0 %636
      %v639 = vsel %vm360, %v635, 0
      %v642 = vsel %vm360, %v637, 0
      %644 = vmatprep.subr.bf16.mxu0 0
      %645 = vmatpush1.bf16.xpose.msra.mxu0 %v642
      %646 = vmatprep.subr.bf16.mxu0 0
      %647 = vmatpush1.bf16.xpose.msra.mxu0 0
      %648 = vmatprep.subr.bf16.mxu0 0
      %649 = vmatpush1.bf16.xpose.msra.mxu0 0
      %650 = vmatprep.subr.bf16.mxu0 0
      %651 = vmatpush1.bf16.xpose.msra.mxu0 0
      %652 = vmatprep.subr.bf16.mxu0 0
      %653 = vmatpush1.bf16.xpose.msra.mxu0 0
      %654 = vmatprep.subr.bf16.mxu0 0
      %655 = vmatpush1.bf16.xpose.msra.mxu0 0
      %656 = vmatprep.subr.bf16.mxu0 0
      %657 = vmatpush1.bf16.xpose.msra.mxu0 0
      %658 = vmatprep.subr.bf16.mxu0 0
      %659 = vmatpush1.bf16.xpose.msra.mxu0 0
      %660 = vmatprep.subr.bf16.mxu0 0
      %661 = vmatpush1.bf16.xpose.msra.mxu0 0
      %662 = vmatprep.subr.bf16.mxu0 0
      %663 = vmatpush1.bf16.xpose.msra.mxu0 0
      %664 = vmatprep.subr.bf16.mxu0 0
      %665 = vmatpush1.bf16.xpose.msra.mxu0 0
      %666 = vmatprep.subr.bf16.mxu0 0
      %667 = vmatpush1.bf16.xpose.msra.mxu0 0
      %668 = vmatprep.subr.bf16.mxu0 0
      %669 = vmatpush1.bf16.xpose.msra.mxu0 0
      %670 = vmatprep.subr.bf16.mxu0 0
      %671 = vmatpush1.bf16.xpose.msra.mxu0 0
      %672 = vmatprep.subr.bf16.mxu0 0
      %673 = vmatpush1.bf16.xpose.msra.mxu0 0
      %674 = vmatprep.subr.bf16.mxu0 0
      %675 = vmatpush1.bf16.xpose.msra.mxu0 0
      %676 = vmatprep.mubr.bf16.mxu0 0
      %677 = vmatmul.mubr.bf16.gmra.mrb[0].mxu0 %v639
      %v678 = vpop.f32.mrb[0].mxu0
      %v679 = vadd.f32 0.0, %v678
      %v680 = vpop.f32.mrb[0].mxu0
      %v681 = vpop.f32.mrb[0].mxu0
      %v682 = vpop.f32.mrb[0].mxu0
      %683 = vdwg.mxu0
      %v684 = vmul.f32 %v628, 0.25
      %v685 = vmul.f32 %v679, 0.25
      %v686 = vadd.f32 %v684, %v152
      %v687 = vadd.f32 %v685, %v152
      %v688 = vsel %vm457, %v686, -inf
      %689 = vmax.xlane.f32.xlu0 %v688
      %v690 = vpop.xlane.xlu0 %689
      %v691 = vsel %vm457, %v687, -inf
      %692 = vmax.xlane.f32.xlu0 %v691
      %v693 = vpop.xlane.xlu0 %692
      %v694 = vsub.f32 %v686, %v690
      %v695 = vsub.f32 %v687, %v693
      %v696 = vmul.f32 %v694, 1.442695
      %v697 = vpow.pop %v696
      %v698 = vmul.f32 %v695, 1.442695
      %v699 = vpow.pop %v698
      %v700 = vsel %vm457, %v697, 0.0
      %701 = vadd.xlane.f32.xlu0 %v700
      %v702 = vpop.xlane.xlu0 %701
      %v703 = vsel %vm457, %v699, 0.0
      %704 = vadd.xlane.f32.xlu0 %v703
      %v705 = vpop.xlane.xlu0 %704
      %v706 = vrcp.pop %v702
      %v707 = vmul.f32 %v697, %v706
      %v708 = vrcp.pop %v705
      %v709 = vmul.f32 %v699, %v708
      %v710 = vpack.c.bf16 %v707, %v707
      %v711 = vpack.c.bf16 %v709, %v709
      %712 = vrot.lane.b32.xlu0 %v352, 80
      %v713 = vpop.permute.xlu0 %712
      %v715 = vsel %vm457, %v710, 0
      %v718 = vsel %vm488, %v713, 0
      %720 = vmatprep.subr.bf16.mxu0 0
      %721 = vmatpush1.bf16.msra.mxu0 %v718
      %722 = vmatprep.subr.bf16.mxu0 0
      %723 = vmatpush1.bf16.msra.mxu0 0
      %724 = vmatprep.subr.bf16.mxu0 0
      %725 = vmatpush1.bf16.msra.mxu0 0
      %726 = vmatprep.subr.bf16.mxu0 0
      %727 = vmatpush1.bf16.msra.mxu0 0
      %728 = vmatprep.subr.bf16.mxu0 0
      %729 = vmatpush1.bf16.msra.mxu0 0
      %730 = vmatprep.subr.bf16.mxu0 0
      %731 = vmatpush1.bf16.msra.mxu0 0
      %732 = vmatprep.subr.bf16.mxu0 0
      %733 = vmatpush1.bf16.msra.mxu0 0
      %734 = vmatprep.subr.bf16.mxu0 0
      %735 = vmatpush1.bf16.msra.mxu0 0
      %736 = vmatprep.subr.bf16.mxu0 0
      %737 = vmatpush1.bf16.msra.mxu0 0
      %738 = vmatprep.subr.bf16.mxu0 0
      %739 = vmatpush1.bf16.msra.mxu0 0
      %740 = vmatprep.subr.bf16.mxu0 0
      %741 = vmatpush1.bf16.msra.mxu0 0
      %742 = vmatprep.subr.bf16.mxu0 0
      %743 = vmatpush1.bf16.msra.mxu0 0
      %744 = vmatprep.subr.bf16.mxu0 0
      %745 = vmatpush1.bf16.msra.mxu0 0
      %746 = vmatprep.subr.bf16.mxu0 0
      %747 = vmatpush1.bf16.msra.mxu0 0
      %748 = vmatprep.subr.bf16.mxu0 0
      %749 = vmatpush1.bf16.msra.mxu0 0
      %750 = vmatprep.subr.bf16.mxu0 0
      %751 = vmatpush1.bf16.msra.mxu0 0
      %752 = vmatprep.mubr.bf16.mxu0 0
      %753 = vmatmul.mubr.bf16.gmra.mrb[0].mxu0 %v715
      %v754 = vpop.f32.mrb[0].mxu0
      %v755 = vadd.f32 0.0, %v754
      %v756 = vpop.f32.mrb[0].mxu0
      %v757 = vpop.f32.mrb[0].mxu0
      %v758 = vpop.f32.mrb[0].mxu0
      %759 = vdwg.mxu0
      %760 = vrot.lane.b32.xlu0 %v353, 80
      %v761 = vpop.permute.xlu0 %760
      %v763 = vsel %vm457, %v711, 0
      %v766 = vsel %vm488, %v761, 0
      %768 = vmatprep.subr.bf16.mxu0 0
      %769 = vmatpush1.bf16.msra.mxu0 %v766
      %770 = vmatprep.subr.bf16.mxu0 0
      %771 = vmatpush1.bf16.msra.mxu0 0
      %772 = vmatprep.subr.bf16.mxu0 0
      %773 = vmatpush1.bf16.msra.mxu0 0
      %774 = vmatprep.subr.bf16.mxu0 0
      %775 = vmatpush1.bf16.msra.mxu0 0
      %776 = vmatprep.subr.bf16.mxu0 0
      %777 = vmatpush1.bf16.msra.mxu0 0
      %778 = vmatprep.subr.bf16.mxu0 0
      %779 = vmatpush1.bf16.msra.mxu0 0
      %780 = vmatprep.subr.bf16.mxu0 0
      %781 = vmatpush1.bf16.msra.mxu0 0
      %782 = vmatprep.subr.bf16.mxu0 0
      %783 = vmatpush1.bf16.msra.mxu0 0
      %784 = vmatprep.subr.bf16.mxu0 0
      %785 = vmatpush1.bf16.msra.mxu0 0
      %786 = vmatprep.subr.bf16.mxu0 0
      %787 = vmatpush1.bf16.msra.mxu0 0
      %788 = vmatprep.subr.bf16.mxu0 0
      %789 = vmatpush1.bf16.msra.mxu0 0
      %790 = vmatprep.subr.bf16.mxu0 0
      %791 = vmatpush1.bf16.msra.mxu0 0
      %792 = vmatprep.subr.bf16.mxu0 0
      %793 = vmatpush1.bf16.msra.mxu0 0
      %794 = vmatprep.subr.bf16.mxu0 0
      %795 = vmatpush1.bf16.msra.mxu0 0
      %796 = vmatprep.subr.bf16.mxu0 0
      %797 = vmatpush1.bf16.msra.mxu0 0
      %798 = vmatprep.subr.bf16.mxu0 0
      %799 = vmatpush1.bf16.msra.mxu0 0
      %800 = vmatprep.mubr.bf16.mxu0 0
      %801 = vmatmul.mubr.bf16.gmra.mrb[0].mxu0 %v763
      %v802 = vpop.f32.mrb[0].mxu0
      %v803 = vadd.f32 0.0, %v802
      %v804 = vpop.f32.mrb[0].mxu0
      %v805 = vpop.f32.mrb[0].mxu0
      %v806 = vpop.f32.mrb[0].mxu0
      %807 = vdwg.mxu0
      %v808 = vpack.c.bf16 %v803, %v755
      %v811 = vunpack.c.l.b16 %v358
      %v812 = vunpack.c.l.b16 %v359
      %v813 = vpack.c.b16 %v812, %v811
      %v816 = vsel %vm360, %v808, 0
      %818 = vmatprep.subr.bf16.mxu0 0
      %819 = vmatpush1.bf16.msra.mxu0 %v813
      %820 = vmatprep.subr.bf16.mxu0 0
      %821 = vmatpush1.bf16.msra.mxu0 0
      %822 = vmatprep.subr.bf16.mxu0 0
      %823 = vmatpush1.bf16.msra.mxu0 0
      %824 = vmatprep.subr.bf16.mxu0 0
      %825 = vmatpush1.bf16.msra.mxu0 0
      %826 = vmatprep.subr.bf16.mxu0 0
      %827 = vmatpush1.bf16.msra.mxu0 0
      %828 = vmatprep.subr.bf16.mxu0 0
      %829 = vmatpush1.bf16.msra.mxu0 0
      %830 = vmatprep.subr.bf16.mxu0 0
      %831 = vmatpush1.bf16.msra.mxu0 0
      %832 = vmatprep.subr.bf16.mxu0 0
      %833 = vmatpush1.bf16.msra.mxu0 0
      %834 = vmatprep.subr.bf16.mxu0 0
      %835 = vmatpush1.bf16.msra.mxu0 0
      %836 = vmatprep.subr.bf16.mxu0 0
      %837 = vmatpush1.bf16.msra.mxu0 0
      %838 = vmatprep.subr.bf16.mxu0 0
      %839 = vmatpush1.bf16.msra.mxu0 0
      %840 = vmatprep.subr.bf16.mxu0 0
      %841 = vmatpush1.bf16.msra.mxu0 0
      %842 = vmatprep.subr.bf16.mxu0 0
      %843 = vmatpush1.bf16.msra.mxu0 0
      %844 = vmatprep.subr.bf16.mxu0 0
      %845 = vmatpush1.bf16.msra.mxu0 0
      %846 = vmatprep.subr.bf16.mxu0 0
      %847 = vmatpush1.bf16.msra.mxu0 0
      %848 = vmatprep.subr.bf16.mxu0 0
      %849 = vmatpush1.bf16.msra.mxu0 0
      %850 = vmatprep.mubr.bf16.mxu0 0
      %851 = vmatmul.mubr.bf16.gmra.mrb[0].mxu0 %v816
      %v852 = vpop.f32.mrb[0].mxu0
      %v853 = vadd.f32 0.0, %v852
      %v854 = vpop.f32.mrb[0].mxu0
      %v855 = vpop.f32.mrb[0].mxu0
      %v856 = vadd.f32 0.0, %v855
      %v857 = vpop.f32.mrb[0].mxu0
      %858 = vdwg.mxu0
      %v861 = vunpack.c.l.b16 %v356
      %v862 = vunpack.c.l.b16 %v357
      %v863 = vpack.c.b16 %v862, %v861
      %v866 = vsel %vm360, %v581, 0
      %868 = vmatprep.subr.bf16.mxu0 0
      %869 = vmatpush1.bf16.msra.mxu0 %v863
      %870 = vmatprep.subr.bf16.mxu0 0
      %871 = vmatpush1.bf16.msra.mxu0 0
      %872 = vmatprep.subr.bf16.mxu0 0
      %873 = vmatpush1.bf16.msra.mxu0 0
      %874 = vmatprep.subr.bf16.mxu0 0
      %875 = vmatpush1.bf16.msra.mxu0 0
      %876 = vmatprep.subr.bf16.mxu0 0
      %877 = vmatpush1.bf16.msra.mxu0 0
      %878 = vmatprep.subr.bf16.mxu0 0
      %879 = vmatpush1.bf16.msra.mxu0 0
      %880 = vmatprep.subr.bf16.mxu0 0
      %881 = vmatpush1.bf16.msra.mxu0 0
      %882 = vmatprep.subr.bf16.mxu0 0
      %883 = vmatpush1.bf16.msra.mxu0 0
      %884 = vmatprep.subr.bf16.mxu0 0
      %885 = vmatpush1.bf16.msra.mxu0 0
      %886 = vmatprep.subr.bf16.mxu0 0
      %887 = vmatpush1.bf16.msra.mxu0 0
      %888 = vmatprep.subr.bf16.mxu0 0
      %889 = vmatpush1.bf16.msra.mxu0 0
      %890 = vmatprep.subr.bf16.mxu0 0
      %891 = vmatpush1.bf16.msra.mxu0 0
      %892 = vmatprep.subr.bf16.mxu0 0
      %893 = vmatpush1.bf16.msra.mxu0 0
      %894 = vmatprep.subr.bf16.mxu0 0
      %895 = vmatpush1.bf16.msra.mxu0 0
      %896 = vmatprep.subr.bf16.mxu0 0
      %897 = vmatpush1.bf16.msra.mxu0 0
      %898 = vmatprep.subr.bf16.mxu0 0
      %899 = vmatpush1.bf16.msra.mxu0 0
      %900 = vmatprep.mubr.bf16.mxu0 0
      %901 = vmatmul.mubr.bf16.gmra.mrb[0].mxu0 %v866
      %v902 = vpop.f32.mrb[0].mxu0
      %v903 = vadd.f32 %v853, %v902
      %v904 = vpop.f32.mrb[0].mxu0
      %v905 = vpop.f32.mrb[0].mxu0
      %v906 = vadd.f32 %v856, %v905
      %v907 = vpop.f32.mrb[0].mxu0
      %908 = vdwg.mxu0
      %v909 = vadd.f32 %v205, %v903
      %v910 = vadd.f32 %v206, %v906
      %s911 = scalar_lea.vmem %s10, %s154
      %v912 = vld [vmem:[%s911] sm:$0x1]
      %v914 = vlaneseq
      %v915 = vshrl.u32 %v914, 7
      %v916 = vsub.s32 0, %v915
      %v917 = vrot.slane %v912, %v916
      %v919 = vadd.f32 %v909, %v917
      %v920 = vadd.f32 %v910, %v917
      %s921 = scalar_lea.vmem %s11, %s154
      %v922 = vld [vmem:[%s921] sm:$0x1]
      %s923 = scalar_lea.vmem %s12, %s154
      %v924 = vld [vmem:[%s923] sm:$0x1]
      %v925 = vsel %vm73, %v919, 0.0
      %926 = vadd.xlane.f32.xlu0 %v925
      %v927 = vpop.xlane.xlu0 %926
      %v928 = vsel %vm73, %v920, 0.0
      %929 = vadd.xlane.f32.xlu0 %v928
      %v930 = vpop.xlane.xlu0 %929
      %v931 = vmul.f32 %v927, %v80
      %v932 = vmul.f32 %v930, %v80
      %v933 = vsub.f32 %v919, %v931
      %v934 = vsub.f32 %v920, %v932
      %v935 = vmul.f32 %v933, %v933
      %v936 = vmul.f32 %v934, %v934
      %v937 = vsel %vm73, %v935, 0.0
      %938 = vadd.xlane.f32.xlu0 %v937
      %v939 = vpop.xlane.xlu0 %938
      %v940 = vsel %vm73, %v936, 0.0
      %941 = vadd.xlane.f32.xlu0 %v940
      %v942 = vpop.xlane.xlu0 %941
      %v943 = vmul.f32 %v939, %v80
      %v944 = vmul.f32 %v942, %v80
      %v945 = vadd.f32 %v943, 1e-08
      %v946 = vadd.f32 %v944, 1e-08
      %v947 = vrsqrt.pop %v945
      %v948 = vrsqrt.pop %v946
      %v949 = vmul.f32 %v933, %v947
      %v950 = vmul.f32 %v934, %v948
      %v952 = vlaneseq
      %v953 = vshrl.u32 %v952, 7
      %v954 = vsub.s32 0, %v953
      %v955 = vrot.slane %v922, %v954
      %v957 = vmul.f32 %v949, %v955
      %v958 = vmul.f32 %v950, %v955
      %v960 = vlaneseq
      %v961 = vshrl.u32 %v960, 7
      %v962 = vsub.s32 0, %v961
      %v963 = vrot.slane %v924, %v962
      %v965 = vadd.f32 %v957, %v963
      %v966 = vadd.f32 %v958, %v963
      %v967 = vpack.c.bf16 %v966, %v965
      %s968 = smul.addr %s208, 4
      %s969 = scalar_lea.vmem %s13, %s968
      %v970 = vld [vmem:[%s969] sm:$0xf]
      %v971 = vld [vmem:[%s969 + $0x4] sm:$0xf]
      %v972 = vld [vmem:[%s969 + $0x8] sm:$0xf]
      %v973 = vld [vmem:[%s969 + $0xc] sm:$0xf]
      %s974 = scalar_lea.vmem %s14, %s154
      %v975 = vld [vmem:[%s974] sm:$0x1]
      %v977 = vlaneseq
      %v978 = vshrl.u32 %v977, 7
      %v979 = vsub.s32 0, %v978
      %v980 = vrot.slane %v975, %v979
      %v986 = vunpack.c.l.b16 %v970
      %v987 = vunpack.c.l.b16 %v971
      %v988 = vunpack.c.l.b16 %v972
      %v989 = vunpack.c.l.b16 %v973
      %v990 = vpack.c.b16 %v987, %v986
      %v991 = vpack.c.b16 %v989, %v988
      %v995 = vsel %vm73, %v967, 0
      %997 = vmatprep.subr.bf16.mxu0 0
      %998 = vmatpush1.bf16.msra.mxu0 %v990
      %999 = vmatprep.subr.bf16.mxu0 0
      %1000 = vmatpush1.bf16.msra.mxu0 %v991
      %1001 = vmatprep.subr.bf16.mxu0 0
      %1002 = vmatpush1.bf16.msra.mxu0 0
      %1003 = vmatprep.subr.bf16.mxu0 0
      %1004 = vmatpush1.bf16.msra.mxu0 0
      %1005 = vmatprep.subr.bf16.mxu0 0
      %1006 = vmatpush1.bf16.msra.mxu0 0
      %1007 = vmatprep.subr.bf16.mxu0 0
      %1008 = vmatpush1.bf16.msra.mxu0 0
      %1009 = vmatprep.subr.bf16.mxu0 0
      %1010 = vmatpush1.bf16.msra.mxu0 0
      %1011 = vmatprep.subr.bf16.mxu0 0
      %1012 = vmatpush1.bf16.msra.mxu0 0
      %1013 = vmatprep.subr.bf16.mxu0 0
      %1014 = vmatpush1.bf16.msra.mxu0 0
      %1015 = vmatprep.subr.bf16.mxu0 0
      %1016 = vmatpush1.bf16.msra.mxu0 0
      %1017 = vmatprep.subr.bf16.mxu0 0
      %1018 = vmatpush1.bf16.msra.mxu0 0
      %1019 = vmatprep.subr.bf16.mxu0 0
      %1020 = vmatpush1.bf16.msra.mxu0 0
      %1021 = vmatprep.subr.bf16.mxu0 0
      %1022 = vmatpush1.bf16.msra.mxu0 0
      %1023 = vmatprep.subr.bf16.mxu0 0
      %1024 = vmatpush1.bf16.msra.mxu0 0
      %1025 = vmatprep.subr.bf16.mxu0 0
      %1026 = vmatpush1.bf16.msra.mxu0 0
      %1027 = vmatprep.subr.bf16.mxu0 0
      %1028 = vmatpush1.bf16.msra.mxu0 0
      %1029 = vmatprep.mubr.bf16.mxu0 0
      %1030 = vmatmul.mubr.bf16.gmra.mrb[0].mxu0 %v995
      %v1031 = vpop.f32.mrb[0].mxu0
      %v1032 = vadd.f32 %v980, %v1031
      %v1033 = vpop.f32.mrb[0].mxu0
      %v1034 = vpop.f32.mrb[0].mxu0
      %v1035 = vadd.f32 %v980, %v1034
      %v1036 = vpop.f32.mrb[0].mxu0
      %1037 = vdwg.mxu0
      %v1038 = vmax.f32 %v1032, 0.0
      %v1039 = vmax.f32 %v1035, 0.0
      %v1040 = vpack.c.bf16 %v1039, %v1038
      %s1041 = smul.addr %s208, 4
      %s1042 = scalar_lea.vmem %s15, %s1041
      %v1043 = vld [vmem:[%s1042] sm:$0xf]
      %v1044 = vld [vmem:[%s1042 + $0x4] sm:$0xf]
      %v1045 = vld [vmem:[%s1042 + $0x8] sm:$0xf]
      %v1046 = vld [vmem:[%s1042 + $0xc] sm:$0xf]
      %v1051 = vunpack.c.l.b16 %v1043
      %v1052 = vunpack.c.l.b16 %v1044
      %v1053 = vunpack.c.l.b16 %v1045
      %v1054 = vunpack.c.l.b16 %v1046
      %v1055 = vpack.c.b16 %v1052, %v1051
      %v1056 = vpack.c.b16 %v1054, %v1053
      %v1060 = vsel %vm73, %v1040, 0
      %1062 = vmatprep.subr.bf16.mxu0 0
      %1063 = vmatpush1.bf16.msra.mxu0 %v1055
      %1064 = vmatprep.subr.bf16.mxu0 0
      %1065 = vmatpush1.bf16.msra.mxu0 %v1056
      %1066 = vmatprep.subr.bf16.mxu0 0
      %1067 = vmatpush1.bf16.msra.mxu0 0
      %1068 = vmatprep.subr.bf16.mxu0 0
      %1069 = vmatpush1.bf16.msra.mxu0 0
      %1070 = vmatprep.subr.bf16.mxu0 0
      %1071 = vmatpush1.bf16.msra.mxu0 0
      %1072 = vmatprep.subr.bf16.mxu0 0
      %1073 = vmatpush1.bf16.msra.mxu0 0
      %1074 = vmatprep.subr.bf16.mxu0 0
      %1075 = vmatpush1.bf16.msra.mxu0 0
      %1076 = vmatprep.subr.bf16.mxu0 0
      %1077 = vmatpush1.bf16.msra.mxu0 0
      %1078 = vmatprep.subr.bf16.mxu0 0
      %1079 = vmatpush1.bf16.msra.mxu0 0
      %1080 = vmatprep.subr.bf16.mxu0 0
      %1081 = vmatpush1.bf16.msra.mxu0 0
      %1082 = vmatprep.subr.bf16.mxu0 0
      %1083 = vmatpush1.bf16.msra.mxu0 0
      %1084 = vmatprep.subr.bf16.mxu0 0
      %1085 = vmatpush1.bf16.msra.mxu0 0
      %1086 = vmatprep.subr.bf16.mxu0 0
      %1087 = vmatpush1.bf16.msra.mxu0 0
      %1088 = vmatprep.subr.bf16.mxu0 0
      %1089 = vmatpush1.bf16.msra.mxu0 0
      %1090 = vmatprep.subr.bf16.mxu0 0
      %1091 = vmatpush1.bf16.msra.mxu0 0
      %1092 = vmatprep.subr.bf16.mxu0 0
      %1093 = vmatpush1.bf16.msra.mxu0 0
      %1094 = vmatprep.mubr.bf16.mxu0 0
      %1095 = vmatmul.mubr.bf16.gmra.mrb[0].mxu0 %v1060
      %v1096 = vpop.f32.mrb[0].mxu0
      %v1097 = vadd.f32 0.0, %v1096
      %v1098 = vpop.f32.mrb[0].mxu0
      %v1099 = vpop.f32.mrb[0].mxu0
      %v1100 = vadd.f32 0.0, %v1099
      %v1101 = vpop.f32.mrb[0].mxu0
      %1102 = vdwg.mxu0
      %v1103 = vadd.f32 %v965, %v1097
      %v1104 = vadd.f32 %v966, %v1100
      %s1105 = scalar_lea.vmem %s16, %s154
      %v1106 = vld [vmem:[%s1105] sm:$0x1]
      %v1108 = vlaneseq
      %v1109 = vshrl.u32 %v1108, 7
      %v1110 = vsub.s32 0, %v1109
      %v1111 = vrot.slane %v1106, %v1110
      %v1113 = vadd.f32 %v1103, %v1111
      %v1114 = vadd.f32 %v1104, %v1111
    $region82: #{sasrec_forward.10} parent=1 // loop_footer
      %s158 = sadd.s32 1, %s154
    $region83: #{sasrec_forward.10} parent=1 // loop_footer_branch
      %153 = sbr.rel target = $region79
    $region84: #{sasrec_forward.10} parent=1 // loop_exit
      _
    %v1115 = vsel %vm73, %v159, 0.0
    %1116 = vadd.xlane.f32.xlu0 %v1115
    %v1117 = vpop.xlane.xlu0 %1116
    %v1118 = vsel %vm73, %v160, 0.0
    %1119 = vadd.xlane.f32.xlu0 %v1118
    %v1120 = vpop.xlane.xlu0 %1119
    %v1121 = vmul.f32 %v1117, %v80
    %v1122 = vmul.f32 %v1120, %v80
    %v1123 = vsub.f32 %v159, %v1121
    %v1124 = vsub.f32 %v160, %v1122
    %v1125 = vmul.f32 %v1123, %v1123
    %v1126 = vmul.f32 %v1124, %v1124
    %v1127 = vsel %vm73, %v1125, 0.0
    %1128 = vadd.xlane.f32.xlu0 %v1127
    %v1129 = vpop.xlane.xlu0 %1128
    %v1130 = vsel %vm73, %v1126, 0.0
    %1131 = vadd.xlane.f32.xlu0 %v1130
    %v1132 = vpop.xlane.xlu0 %1131
    %v1133 = vmul.f32 %v1129, %v80
    %v1134 = vmul.f32 %v1132, %v80
    %v1135 = vadd.f32 %v1133, 1e-08
    %v1136 = vadd.f32 %v1134, 1e-08
    %v1137 = vrsqrt.pop %v1135
    %v1138 = vrsqrt.pop %v1136
    %v1139 = vmul.f32 %v1123, %v1137
    %v1140 = vmul.f32 %v1124, %v1138
    %v1141 = vmul.f32 %v1139, %v105
    %v1142 = vmul.f32 %v1140, %v105
    %v1143 = vadd.f32 %v1141, %v113
    %v1144 = vadd.f32 %v1142, %v113
    %v1145 = vmul.f32 %v1143, %v1143
    %v1146 = vmul.f32 %v1144, %v1144
    %v1147 = vsel %vm73, %v1145, 0.0
    %1148 = vadd.xlane.f32.xlu0 %v1147
    %v1149 = vpop.xlane.xlu0 %1148
    %v1150 = vsel %vm73, %v1146, 0.0
    %1151 = vadd.xlane.f32.xlu0 %v1150
    %v1152 = vpop.xlane.xlu0 %1151
    %v1153 = vrsqrt.pop %v1149
    %v1154 = vmul.f32 %v1149, %v1153
    %vm1155 = vcmp.eq.f32.partialorder %v1149, inf
    %v1156 = vsel %vm1155, %v1149, %v1154
    %vm1157 = vcmp.eq.f32.partialorder %v1149, 0.0
    %v1158 = vand.u32 %v1149, 2147483648
    %v1159 = vsel %vm1157, %v1158, %v1156
    %v1160 = vrsqrt.pop %v1152
    %v1161 = vmul.f32 %v1152, %v1160
    %vm1162 = vcmp.eq.f32.partialorder %v1152, inf
    %v1163 = vsel %vm1162, %v1152, %v1161
    %vm1164 = vcmp.eq.f32.partialorder %v1152, 0.0
    %v1165 = vand.u32 %v1152, 2147483648
    %v1166 = vsel %vm1164, %v1165, %v1163
    %v1167 = vmax.f32 %v1159, 1e-12
    %v1168 = vmax.f32 %v1166, 1e-12
    %v1169 = vrcp.pop %v1167
    %v1170 = vmul.f32 %v1143, %v1169
    %v1171 = vrcp.pop %v1168
    %v1172 = vmul.f32 %v1144, %v1171
    %1173 = vst.msk [vmem:[%s21] sm:$0xff] %vm73, %v1170
    %1174 = vst.msk [vmem:[%s21 + $0x8] sm:$0xff] %vm73, %v1172
    %v1175 = vld [vmem:[%s1] sm:$0xff]
    %v1176 = vld [vmem:[%s1 + $0x8] sm:$0xff]
    %v1177 = vmul.f32 %v1143, %v1175
    %v1178 = vmul.f32 %v1144, %v1176
    %v1179 = vsel %vm73, %v1177, 0.0
    %1180 = vadd.xlane.f32.xlu0 %v1179
    %v1181 = vpop.xlane.xlu0 %1180
    %v1182 = vsel %vm73, %v1178, 0.0
    %1183 = vadd.xlane.f32.xlu0 %v1182
    %v1184 = vpop.xlane.xlu0 %1183
    %v1187 = vlaneseq
    %v1188 = vshrl.u32 %v1187, 7
    %v1189 = vsub.s32 %v150, %v1188
    %v1190 = vrot.slane %v1181, %v1189
    %v1191 = vlaneseq
    %v1192 = vshrl.u32 %v1191, 7
    %v1193 = vsub.s32 %v150, %v1192
    %v1194 = vrot.slane %v1184, %v1193
    %vm1197 = vcmask 57344
    %1198 = vst.msk [vmem:[#allocation2] sm:$0x1] %vm1197, %v1190
    %1199 = vst.msk [vmem:[#allocation2 + $0x1] sm:$0x1] %vm1197, %v1194
    %v1200 = vld [vmem:[%s2] sm:$0xff]
    %v1201 = vld [vmem:[%s2 + $0x8] sm:$0xff]
    %v1202 = vmul.f32 %v1143, %v1200
    %v1203 = vmul.f32 %v1144, %v1201
    %v1204 = vsel %vm73, %v1202, 0.0
    %1205 = vadd.xlane.f32.xlu0 %v1204
    %v1206 = vpop.xlane.xlu0 %1205
    %v1207 = vsel %vm73, %v1203, 0.0
    %1208 = vadd.xlane.f32.xlu0 %v1207
    %v1209 = vpop.xlane.xlu0 %1208
    %v1212 = vlaneseq
    %v1213 = vshrl.u32 %v1212, 7
    %v1214 = vsub.s32 %v150, %v1213
    %v1215 = vrot.slane %v1206, %v1214
    %v1216 = vlaneseq
    %v1217 = vshrl.u32 %v1216, 7
    %v1218 = vsub.s32 %v150, %v1217
    %v1219 = vrot.slane %v1209, %v1218
    %1222 = vst.msk [vmem:[#allocation4] sm:$0x1] %vm1197, %v1215
    %1223 = vst.msk [vmem:[#allocation4 + $0x1] sm:$0x1] %vm1197, %v1219
    // Predicated region
    $region85: #{sasrec_forward.10} parent=1 // pred_check
      _
    $region86: #{sasrec_forward.10} parent=1 // pred_check_branch
      %1225 = sbr.rel (0) target = $region88
    $region87: #{sasrec_forward.10} parent=1 // pred_region
      %s1227 = ssub.s32 32, 32
      %1228 = vsyncadd [#allocation3], %s1227
      %s1229 = sshll.u32 [#allocation2], 4
      %s1230 = int_to_ptr.vmem [resolvable:$true] %s1229
      %1235 = dma.vmem_to_hbm [thread:$0]  %s1230, 32, %s19, [#allocation3], 16, 16, 1
    $region88: #{sasrec_forward.10} parent=1 // pred_fallthru
      _
    // Predicated region
    $region89: #{sasrec_forward.10} parent=1 // pred_check
      _
    $region90: #{sasrec_forward.10} parent=1 // pred_check_branch
      %1237 = sbr.rel (0) target = $region92
    $region91: #{sasrec_forward.10} parent=1 // pred_region
      %s1239 = ssub.s32 32, 32
      %1240 = vsyncadd [#allocation5], %s1239
      %s1241 = sshll.u32 [#allocation4], 4
      %s1242 = int_to_ptr.vmem [resolvable:$true] %s1241
      %1247 = dma.vmem_to_hbm [thread:$0]  %s1242, 32, %s20, [#allocation5], 16, 16, 1
    $region92: #{sasrec_forward.10} parent=1 // pred_fallthru
      _
    // Predicated region
    $region93: #{sasrec_forward.10} parent=1 // pred_check
      _
    $region94: #{sasrec_forward.10} parent=1 // pred_check_branch
      %1249 = sbr.rel (0) target = $region96
    $region95: #{sasrec_forward.10} parent=1 // pred_region
      _
    $region96: #{sasrec_forward.10} parent=1 // pred_fallthru
      _
    // Predicated region
    $region97: #{sasrec_forward.10} parent=1 // pred_check
      _
    $region98: #{sasrec_forward.10} parent=1 // pred_check_branch
      %1251 = sbr.rel (0) target = $region100
    $region99: #{sasrec_forward.10} parent=1 // pred_region
      _
    $region100: #{sasrec_forward.10} parent=1 // pred_fallthru
      _
    // Predicated region
    $region101: #{sasrec_forward.10} parent=1 // pred_check
      _
    $region102: #{sasrec_forward.10} parent=1 // pred_check_branch
      %1253 = sbr.rel (0) target = $region104
    $region103: #{sasrec_forward.10} parent=1 // pred_region
      %1254 = dma.done [#allocation3], 32
    $region104: #{sasrec_forward.10} parent=1 // pred_fallthru
      _
    // Predicated region
    $region105: #{sasrec_forward.10} parent=1 // pred_check
      _
    $region106: #{sasrec_forward.10} parent=1 // pred_check_branch
      %1256 = sbr.rel (0) target = $region108
    $region107: #{sasrec_forward.10} parent=1 // pred_region
      %1257 = dma.done [#allocation5], 32
    $region108: #{sasrec_forward.10} parent=1 // pred_fallthru
      _
    // Predicated region
    $region109: #{sasrec_forward.10} parent=1 // pred_check
      _
    $region110: #{sasrec_forward.10} parent=1 // pred_check_branch
      %1259 = sbr.rel (0) target = $region112
    $region111: #{sasrec_forward.10} parent=1 // pred_region
      _
    $region112: #{sasrec_forward.10} parent=1 // pred_fallthru
      _
    // Predicated region
    $region113: #{sasrec_forward.10} parent=1 // pred_check
      _
    $region114: #{sasrec_forward.10} parent=1 // pred_check_branch
      %1261 = sbr.rel (0) target = $region116
    $region115: #{sasrec_forward.10} parent=1 // pred_region
      _
    $region116: #{sasrec_forward.10} parent=1 // pred_fallthru
      _
    %1262 = vsyncpa [#allocation3], 1
    %1263 = vsyncpa [#allocation5], 1

</llo_original>
